<compile_context>
chip_gen: v5e
topology: v5e:2x2
jax: 0.10.0
libtpu: 0.0.40
codegen_flags: <defaults>
</compile_context>

<pallas_src>
import functools

import jax
import jax.numpy as jnp
from jax.experimental import pallas as pl
from jax.experimental.pallas import tpu as pltpu


_VMEM_LIMIT = 32 * 1024 * 1024  # safe on v5e / v6e / v7x


# ----------------------------- Pallas kernels -----------------------------


def _matmul_bias_act_kernel(a_ref, w_ref, b_ref, o_ref, *, relu):
    # a: (TM, K) bf16, w: (K, N) bf16, b: (1, N) f32 -> o: (TM, N)
    acc = jnp.dot(a_ref[...], w_ref[...], preferred_element_type=jnp.float32)
    acc = acc + b_ref[...]
    if relu:
        acc = jnp.maximum(acc, 0.0)
    o_ref[...] = acc.astype(o_ref.dtype)


def _conv2_pool_kernel(p_ref, w_ref, b_ref, o_ref):
    # p: (4, TM, K) bf16 -- im2col patches for the 4 positions of each 2x2 window.
    # conv2 + bias + max-pool fused: max over the 4 per-position matmuls, then +bias.
    w = w_ref[...]
    m = jnp.dot(p_ref[0], w, preferred_element_type=jnp.float32)
    for q in range(1, 4):
        m = jnp.maximum(m, jnp.dot(p_ref[q], w, preferred_element_type=jnp.float32))
    o_ref[...] = (m + b_ref[...]).astype(o_ref.dtype)


def _fc_fused_kernel(x_ref, w1_ref, b1_ref, w2_ref, b2_ref, o_ref):
    # fc1 + ReLU + fc2; the hidden activation never leaves VMEM.
    h = jnp.dot(x_ref[...], w1_ref[...], preferred_element_type=jnp.float32)
    h = jnp.maximum(h + b1_ref[...], 0.0).astype(w2_ref.dtype)
    out = jnp.dot(h, w2_ref[...], preferred_element_type=jnp.float32)
    o_ref[...] = (out + b2_ref[...]).astype(o_ref.dtype)


# --------------------------- pallas_call wrappers ---------------------------


def _row_tile(m, target):
    # Full-array block if it fits (exempt from the 8-row rule), else an 8-multiple tile.
    return m if m <= target else target


def _compiler_params():
    return pltpu.CompilerParams(
        dimension_semantics=("parallel",),
        vmem_limit_bytes=_VMEM_LIMIT,
    )


def matmul_bias_act(a, w, b, *, relu, out_dtype=jnp.bfloat16, tm=512):
    """a: (M, K) bf16, w: (K, N) bf16, b: (1, N) f32 -> (M, N) out_dtype."""
    M, K = a.shape
    N = w.shape[1]
    TM = _row_tile(M, tm)
    return pl.pallas_call(
        functools.partial(_matmul_bias_act_kernel, relu=relu),
        grid=(pl.cdiv(M, TM),),
        in_specs=[
            pl.BlockSpec((TM, K), lambda i: (i, 0)),
            pl.BlockSpec((K, N), lambda i: (0, 0)),
            pl.BlockSpec((1, N), lambda i: (0, 0)),
        ],
        out_specs=pl.BlockSpec((TM, N), lambda i: (i, 0)),
        out_shape=jax.ShapeDtypeStruct((M, N), out_dtype),
        compiler_params=_compiler_params(),
    )(a, w, b)


def conv2_bias_maxpool(patches4, w, b, *, out_dtype=jnp.bfloat16, tm=512):
    """patches4: (4, M, K) bf16, w: (K, N) bf16, b: (1, N) f32 -> (M, N) pooled."""
    _, M, K = patches4.shape
    N = w.shape[1]
    TM = _row_tile(M, tm)
    return pl.pallas_call(
        _conv2_pool_kernel,
        grid=(pl.cdiv(M, TM),),
        in_specs=[
            pl.BlockSpec((4, TM, K), lambda i: (0, i, 0)),
            pl.BlockSpec((K, N), lambda i: (0, 0)),
            pl.BlockSpec((1, N), lambda i: (0, 0)),
        ],
        out_specs=pl.BlockSpec((TM, N), lambda i: (i, 0)),
        out_shape=jax.ShapeDtypeStruct((M, N), out_dtype),
        compiler_params=_compiler_params(),
    )(patches4, w, b)


def fc1_relu_fc2(x, w1, b1, w2, b2, *, tb=256):
    """x: (B, K) bf16; fused fc1 + ReLU + fc2 -> (B, N) f32."""
    B, K = x.shape
    H = w1.shape[1]
    N = w2.shape[1]
    TB = _row_tile(B, tb)
    return pl.pallas_call(
        _fc_fused_kernel,
        grid=(pl.cdiv(B, TB),),
        in_specs=[
            pl.BlockSpec((TB, K), lambda i: (i, 0)),
            pl.BlockSpec((K, H), lambda i: (0, 0)),
            pl.BlockSpec((1, H), lambda i: (0, 0)),
            pl.BlockSpec((H, N), lambda i: (0, 0)),
            pl.BlockSpec((1, N), lambda i: (0, 0)),
        ],
        out_specs=pl.BlockSpec((TB, N), lambda i: (i, 0)),
        out_shape=jax.ShapeDtypeStruct((B, N), jnp.float32),
        compiler_params=_compiler_params(),
    )(x, w1, b1, w2, b2)


# --------------------------- XLA-side patch builders ---------------------------


def _im2col_conv1(x_nhwc):
    """(B, 28, 28, 1) -> (B*26*26, 9) patches; column order (dy, dx); no padding."""
    B = x_nhwc.shape[0]
    x = x_nhwc[..., 0]                                     # (B, 28, 28)
    cols = []
    for dy in range(3):
        for dx in range(3):
            cols.append(x[:, dy:dy + 26, dx:dx + 26])
    p = jnp.stack(cols, axis=-1)                           # (B, 26, 26, 9)
    return p.reshape(B * 26 * 26, 9)


def _conv2_pool_patches(y1):
    """(B, 26, 26, 16) -> (4, B*12*12, 144) patches.

    Plane q = 2*qy + qx holds, for each pooled location (b, r, s), the im2col patch
    of conv2 output position (2r+qy, 2s+qx); patch columns are ordered (c, dy, dx)
    to match PyTorch's (out_c, in_c, kh, kw) weight flatten.
    """
    B = y1.shape[0]
    planes = []
    for qy in range(2):
        for qx in range(2):
            per = []
            for dy in range(3):
                for dx in range(3):
                    r0 = qy + dy
                    c0 = qx + dx
                    per.append(y1[:, r0:r0 + 23:2, c0:c0 + 23:2, :])   # (B,12,12,16)
            p = jnp.stack(per, axis=3)                     # (B, 12, 12, 9, 16)
            p = jnp.transpose(p, (0, 1, 2, 4, 3))          # (B, 12, 12, 16, 9)
            planes.append(p.reshape(B * 12 * 12, 16 * 9))
    return jnp.stack(planes, axis=0)                       # (4, B*144, 144)


# ------------------------------ MnistNet model ------------------------------


def init_params(key, class_num=10):
    ks = jax.random.split(key, 8)
    scale = 0.05
    return {
        "w1": jax.random.normal(ks[0], (16, 1, 3, 3), jnp.float32) * scale,
        "b1": jax.random.normal(ks[1], (16,), jnp.float32) * scale,
        "w2": jax.random.normal(ks[2], (32, 16, 3, 3), jnp.float32) * scale,
        "b2": jax.random.normal(ks[3], (32,), jnp.float32) * scale,
        "fc1_w": jax.random.normal(ks[4], (64, 4608), jnp.float32) * scale,
        "fc1_b": jax.random.normal(ks[5], (64,), jnp.float32) * scale,
        "fc2_w": jax.random.normal(ks[6], (class_num, 64), jnp.float32) * scale,
        "fc2_b": jax.random.normal(ks[7], (64,) if False else (class_num,), jnp.float32) * scale,
    }


def prepare_params(params):
    """One-time weight reshapes / transposes / dtype casts (hoisted out of forward)."""
    class_num = params["fc2_w"].shape[0]
    w1 = params["w1"].reshape(16, 9).T.astype(jnp.bfloat16)               # (9, 16)
    w2 = params["w2"].reshape(32, 144).T.astype(jnp.bfloat16)             # (144, 32)
    # Fold PyTorch's NCHW flatten order (c, r, s) into fc1's weight so the pooled
    # (r, s, c)-ordered activation can be fed without a per-forward transpose.
    fc1 = params["fc1_w"].reshape(64, 32, 12, 12)
    fc1 = jnp.transpose(fc1, (2, 3, 1, 0)).reshape(4608, 64).astype(jnp.bfloat16)
    fc2 = params["fc2_w"].T.astype(jnp.bfloat16)                          # (64, class_num)
    return {
        "w1": w1, "b1": params["b1"].reshape(1, 16).astype(jnp.float32),
        "w2": w2, "b2": params["b2"].reshape(1, 32).astype(jnp.float32),
        "fc1_w": fc1, "fc1_b": params["fc1_b"].reshape(1, 64).astype(jnp.float32),
        "fc2_w": fc2, "fc2_b": params["fc2_b"].reshape(1, class_num).astype(jnp.float32),
    }


def mnist_net_forward(prepared, x_nchw):
    """x_nchw: (B, 1, 28, 28) float32 -> logits (B, class_num) float32."""
    B = x_nchw.shape[0]
    x = jnp.transpose(x_nchw, (0, 2, 3, 1)).astype(jnp.bfloat16)          # NHWC bf16

    # conv1 (1->16, 3x3, valid) + ReLU :: im2col + M-tiled Pallas matmul
    p1 = _im2col_conv1(x)                                                 # (B*676, 9)
    y1 = matmul_bias_act(p1, prepared["w1"], prepared["b1"], relu=True)   # (B*676, 16)
    y1 = y1.reshape(B, 26, 26, 16)

    # conv2 (16->32, 3x3) + bias + 2x2 max-pool :: single fused Pallas kernel
    p2 = _conv2_pool_patches(y1)                                          # (4, B*144, 144)
    pooled = conv2_bias_maxpool(p2, prepared["w2"], prepared["b2"])       # (B*144, 32)

    # flatten (PyTorch ordering folded into fc1 weights) + fused fc1+ReLU+fc2
    flat = pooled.reshape(B, 12 * 12 * 32)                                # (B, 4608)
    logits = fc1_relu_fc2(flat, prepared["fc1_w"], prepared["fc1_b"],
                          prepared["fc2_w"], prepared["fc2_b"])           # (B, class_num)
    return logits


# ------------------------------ reference (f32) ------------------------------


def _reference_forward(params, x_nchw):
    dn = ("NCHW", "OIHW", "NCHW")
    y = jax.lax.conv_general_dilated(x_nchw, params["w1"], (1, 1), "VALID",
                                     dimension_numbers=dn)
    y = jax.nn.relu(y + params["b1"].reshape(1, -1, 1, 1))
    y = jax.lax.conv_general_dilated(y, params["w2"], (1, 1), "VALID",
                                     dimension_numbers=dn)
    y = y + params["b2"].reshape(1, -1, 1, 1)
    y = jnp.maximum(jnp.maximum(y[:, :, 0::2, 0::2], y[:, :, 0::2, 1::2]),
                    jnp.maximum(y[:, :, 1::2, 0::2], y[:, :, 1::2, 1::2]))
    flat = y.reshape(y.shape[0], -1)
    h = jax.nn.relu(flat @ params["fc1_w"].T + params["fc1_b"])
    return h @ params["fc2_w"].T + params["fc2_b"]


if __name__ == "__main__":
    key = jax.random.PRNGKey(0)
    pkey, xkey = jax.random.split(key)
    params = init_params(pkey, class_num=10)
    prepared = prepare_params(params)

    # MNIST-shaped input: fc1 expects 4608 = 32*12*12, which fixes 1x28x28.
    x = jax.random.normal(xkey, (2, 1, 28, 28), jnp.float32)

    fwd = jax.jit(mnist_net_forward)
    logits = fwd(prepared, x)
    jax.block_until_ready(logits)
    assert logits.shape == (2, 10), logits.shape

    # Loose sanity check vs. pure-JAX f32 reference (bf16 operands in the kernels).
    ref = _reference_forward(params, x)
    max_err = float(jnp.max(jnp.abs(logits - ref)))
    assert max_err < 0.1, f"max |err| = {max_err}"

    print("KERNEL_OK")
</pallas_src>

<mosaic_0001>
module attributes {stable_mosaic.version = 11 : i64} {
  func.func @_matmul_bias_act_kernel(%arg0: i32, %arg1: memref<512x9xbf16, #tpu.memory_space<vmem>>, %arg2: memref<9x16xbf16, #tpu.memory_space<vmem>>, %arg3: memref<1x16xf32, #tpu.memory_space<vmem>>, %arg4: memref<512x16xbf16, #tpu.memory_space<vmem>>) attributes {dimension_semantics = [#tpu.dimension_semantics<parallel>], iteration_bounds = array<i64: 3>, scalar_prefetch = 0 : i64, scratch_operands = 0 : i64, tpu.core_type = #tpu.core_type<tc>, window_params = [{transform_indices = @transform_0, window_bounds = array<i64: 512, 9>}, {pipeline_mode = #tpu.pipeline_mode<synchronous>, transform_indices = @transform_1, window_bounds = array<i64: 9, 16>}, {pipeline_mode = #tpu.pipeline_mode<synchronous>, transform_indices = @transform_2, window_bounds = array<i64: 1, 16>}, {transform_indices = @transform_3, window_bounds = array<i64: 512, 16>}]} {
    %c0 = arith.constant 0 : index
    %c0_0 = arith.constant 0 : index
    %0 = vector.load %arg1[%c0, %c0_0] : memref<512x9xbf16, #tpu.memory_space<vmem>>, vector<512x9xbf16>
    %c0_1 = arith.constant 0 : index
    %c0_2 = arith.constant 0 : index
    %1 = vector.load %arg2[%c0_1, %c0_2] : memref<9x16xbf16, #tpu.memory_space<vmem>>, vector<9x16xbf16>
    %cst = arith.constant dense<0.000000e+00> : vector<512x16xf32>
    %2 = tpu.matmul %0, %1, %cst {dimension_numbers = #tpu.dot_dimension_numbers<[1], [0], [0], [1], [0, 0, 1, 1], [], []>} : vector<512x9xbf16>, vector<9x16xbf16>, vector<512x16xf32> -> vector<512x16xf32>
    %c0_3 = arith.constant 0 : index
    %c0_4 = arith.constant 0 : index
    %3 = vector.load %arg3[%c0_3, %c0_4] : memref<1x16xf32, #tpu.memory_space<vmem>>, vector<1x16xf32>
    %4 = vector.broadcast %3 : vector<1x16xf32> to vector<512x16xf32>
    %5 = arith.addf %2, %4 : vector<512x16xf32>
    %cst_5 = arith.constant 0.000000e+00 : f32
    %6 = vector.broadcast %cst_5 : f32 to vector<512x16xf32>
    %7 = arith.maximumf %5, %6 : vector<512x16xf32>
    %8 = arith.truncf %7 : vector<512x16xf32> to vector<512x16xbf16>
    %c0_6 = arith.constant 0 : index
    %c0_7 = arith.constant 0 : index
    %9 = vector.load %arg4[%c0_6, %c0_7] : memref<512x16xbf16, #tpu.memory_space<vmem>>, vector<512x16xbf16>
    tpu.vector_store %arg4[%c0_6, %c0_7], %8 {strides = array<i32>} : memref<512x16xbf16, #tpu.memory_space<vmem>>, vector<512x16xbf16>,
    return
  }
  func.func @transform_0(%arg0: i32) -> (i32, i32) {
    %c0_i32 = arith.constant 0 : i32
    %c0_i32_0 = arith.constant 0 : i32
    return %arg0, %c0_i32 : i32, i32
  }
  func.func @transform_1(%arg0: i32) -> (i32, i32) {
    %c0_i32 = arith.constant 0 : i32
    %c0_i32_0 = arith.constant 0 : i32
    %c0_i32_1 = arith.constant 0 : i32
    return %c0_i32, %c0_i32_0 : i32, i32
  }
  func.func @transform_2(%arg0: i32) -> (i32, i32) {
    %c0_i32 = arith.constant 0 : i32
    %c0_i32_0 = arith.constant 0 : i32
    %c0_i32_1 = arith.constant 0 : i32
    return %c0_i32, %c0_i32_0 : i32, i32
  }
  func.func @transform_3(%arg0: i32) -> (i32, i32) {
    %c0_i32 = arith.constant 0 : i32
    %c0_i32_0 = arith.constant 0 : i32
    return %arg0, %c0_i32 : i32, i32
  }
}

module attributes {stable_mosaic.version = 11 : i64} {
  func.func @_conv2_pool_kernel(%arg0: i32, %arg1: memref<4x288x144xbf16, #tpu.memory_space<vmem>>, %arg2: memref<144x32xbf16, #tpu.memory_space<vmem>>, %arg3: memref<1x32xf32, #tpu.memory_space<vmem>>, %arg4: memref<288x32xbf16, #tpu.memory_space<vmem>>) attributes {dimension_semantics = [#tpu.dimension_semantics<parallel>], iteration_bounds = array<i64: 1>, scalar_prefetch = 0 : i64, scratch_operands = 0 : i64, tpu.core_type = #tpu.core_type<tc>, window_params = [{transform_indices = @transform_0, window_bounds = array<i64: 4, 288, 144>}, {pipeline_mode = #tpu.pipeline_mode<synchronous>, transform_indices = @transform_1, window_bounds = array<i64: 144, 32>}, {pipeline_mode = #tpu.pipeline_mode<synchronous>, transform_indices = @transform_2, window_bounds = array<i64: 1, 32>}, {transform_indices = @transform_3, window_bounds = array<i64: 288, 32>}]} {
    %c0 = arith.constant 0 : index
    %c0_0 = arith.constant 0 : index
    %0 = vector.load %arg2[%c0, %c0_0] : memref<144x32xbf16, #tpu.memory_space<vmem>>, vector<144x32xbf16>
    %c0_1 = arith.constant 0 : index
    %c0_2 = arith.constant 0 : index
    %c0_3 = arith.constant 0 : index
    %1 = vector.load %arg1[%c0_1, %c0_2, %c0_3] : memref<4x288x144xbf16, #tpu.memory_space<vmem>>, vector<1x288x144xbf16>
    %2 = vector.shape_cast %1 : vector<1x288x144xbf16> to vector<288x144xbf16>
    %cst = arith.constant dense<0.000000e+00> : vector<288x32xf32>
    %3 = tpu.matmul %2, %0, %cst {dimension_numbers = #tpu.dot_dimension_numbers<[1], [0], [0], [1], [0, 0, 1, 1], [], []>} : vector<288x144xbf16>, vector<144x32xbf16>, vector<288x32xf32> -> vector<288x32xf32>
    %c1 = arith.constant 1 : index
    %c0_4 = arith.constant 0 : index
    %c0_5 = arith.constant 0 : index
    %4 = vector.load %arg1[%c1, %c0_4, %c0_5] : memref<4x288x144xbf16, #tpu.memory_space<vmem>>, vector<1x288x144xbf16>
    %5 = vector.shape_cast %4 : vector<1x288x144xbf16> to vector<288x144xbf16>
    %cst_6 = arith.constant dense<0.000000e+00> : vector<288x32xf32>
    %6 = tpu.matmul %5, %0, %cst_6 {dimension_numbers = #tpu.dot_dimension_numbers<[1], [0], [0], [1], [0, 0, 1, 1], [], []>} : vector<288x144xbf16>, vector<144x32xbf16>, vector<288x32xf32> -> vector<288x32xf32>
    %7 = arith.maximumf %3, %6 : vector<288x32xf32>
    %c2 = arith.constant 2 : index
    %c0_7 = arith.constant 0 : index
    %c0_8 = arith.constant 0 : index
    %8 = vector.load %arg1[%c2, %c0_7, %c0_8] : memref<4x288x144xbf16, #tpu.memory_space<vmem>>, vector<1x288x144xbf16>
    %9 = vector.shape_cast %8 : vector<1x288x144xbf16> to vector<288x144xbf16>
    %cst_9 = arith.constant dense<0.000000e+00> : vector<288x32xf32>
    %10 = tpu.matmul %9, %0, %cst_9 {dimension_numbers = #tpu.dot_dimension_numbers<[1], [0], [0], [1], [0, 0, 1, 1], [], []>} : vector<288x144xbf16>, vector<144x32xbf16>, vector<288x32xf32> -> vector<288x32xf32>
    %11 = arith.maximumf %7, %10 : vector<288x32xf32>
    %c3 = arith.constant 3 : index
    %c0_10 = arith.constant 0 : index
    %c0_11 = arith.constant 0 : index
    %12 = vector.load %arg1[%c3, %c0_10, %c0_11] : memref<4x288x144xbf16, #tpu.memory_space<vmem>>, vector<1x288x144xbf16>
    %13 = vector.shape_cast %12 : vector<1x288x144xbf16> to vector<288x144xbf16>
    %cst_12 = arith.constant dense<0.000000e+00> : vector<288x32xf32>
    %14 = tpu.matmul %13, %0, %cst_12 {dimension_numbers = #tpu.dot_dimension_numbers<[1], [0], [0], [1], [0, 0, 1, 1], [], []>} : vector<288x144xbf16>, vector<144x32xbf16>, vector<288x32xf32> -> vector<288x32xf32>
    %15 = arith.maximumf %11, %14 : vector<288x32xf32>
    %c0_13 = arith.constant 0 : index
    %c0_14 = arith.constant 0 : index
    %16 = vector.load %arg3[%c0_13, %c0_14] : memref<1x32xf32, #tpu.memory_space<vmem>>, vector<1x32xf32>
    %17 = vector.broadcast %16 : vector<1x32xf32> to vector<288x32xf32>
    %18 = arith.addf %15, %17 : vector<288x32xf32>
    %19 = arith.truncf %18 : vector<288x32xf32> to vector<288x32xbf16>
    %c0_15 = arith.constant 0 : index
    %c0_16 = arith.constant 0 : index
    %20 = vector.load %arg4[%c0_15, %c0_16] : memref<288x32xbf16, #tpu.memory_space<vmem>>, vector<288x32xbf16>
    tpu.vector_store %arg4[%c0_15, %c0_16], %19 {strides = array<i32>} : memref<288x32xbf16, #tpu.memory_space<vmem>>, vector<288x32xbf16>,
    return
  }
  func.func @transform_0(%arg0: i32) -> (i32, i32, i32) {
    %c0_i32 = arith.constant 0 : i32
    %c0_i32_0 = arith.constant 0 : i32
    %c0_i32_1 = arith.constant 0 : i32
    return %c0_i32, %arg0, %c0_i32_0 : i32, i32, i32
  }
  func.func @transform_1(%arg0: i32) -> (i32, i32) {
    %c0_i32 = arith.constant 0 : i32
    %c0_i32_0 = arith.constant 0 : i32
    %c0_i32_1 = arith.constant 0 : i32
    return %c0_i32, %c0_i32_0 : i32, i32
  }
  func.func @transform_2(%arg0: i32) -> (i32, i32) {
    %c0_i32 = arith.constant 0 : i32
    %c0_i32_0 = arith.constant 0 : i32
    %c0_i32_1 = arith.constant 0 : i32
    return %c0_i32, %c0_i32_0 : i32, i32
  }
  func.func @transform_3(%arg0: i32) -> (i32, i32) {
    %c0_i32 = arith.constant 0 : i32
    %c0_i32_0 = arith.constant 0 : i32
    return %arg0, %c0_i32 : i32, i32
  }
}

module attributes {stable_mosaic.version = 11 : i64} {
  func.func @_fc_fused_kernel(%arg0: i32, %arg1: memref<2x4608xbf16, #tpu.memory_space<vmem>>, %arg2: memref<4608x64xbf16, #tpu.memory_space<vmem>>, %arg3: memref<1x64xf32, #tpu.memory_space<vmem>>, %arg4: memref<64x10xbf16, #tpu.memory_space<vmem>>, %arg5: memref<1x10xf32, #tpu.memory_space<vmem>>, %arg6: memref<2x10xf32, #tpu.memory_space<vmem>>) attributes {dimension_semantics = [#tpu.dimension_semantics<parallel>], iteration_bounds = array<i64: 1>, scalar_prefetch = 0 : i64, scratch_operands = 0 : i64, tpu.core_type = #tpu.core_type<tc>, window_params = [{transform_indices = @transform_0, window_bounds = array<i64: 2, 4608>}, {pipeline_mode = #tpu.pipeline_mode<synchronous>, transform_indices = @transform_1, window_bounds = array<i64: 4608, 64>}, {pipeline_mode = #tpu.pipeline_mode<synchronous>, transform_indices = @transform_2, window_bounds = array<i64: 1, 64>}, {pipeline_mode = #tpu.pipeline_mode<synchronous>, transform_indices = @transform_3, window_bounds = array<i64: 64, 10>}, {pipeline_mode = #tpu.pipeline_mode<synchronous>, transform_indices = @transform_4, window_bounds = array<i64: 1, 10>}, {transform_indices = @transform_5, window_bounds = array<i64: 2, 10>}]} {
    %c0 = arith.constant 0 : index
    %c0_0 = arith.constant 0 : index
    %0 = vector.load %arg1[%c0, %c0_0] : memref<2x4608xbf16, #tpu.memory_space<vmem>>, vector<2x4608xbf16>
    %c0_1 = arith.constant 0 : index
    %c0_2 = arith.constant 0 : index
    %1 = vector.load %arg2[%c0_1, %c0_2] : memref<4608x64xbf16, #tpu.memory_space<vmem>>, vector<4608x64xbf16>
    %cst = arith.constant dense<0.000000e+00> : vector<2x64xf32>
    %2 = tpu.matmul %0, %1, %cst {dimension_numbers = #tpu.dot_dimension_numbers<[1], [0], [0], [1], [0, 0, 1, 1], [], []>} : vector<2x4608xbf16>, vector<4608x64xbf16>, vector<2x64xf32> -> vector<2x64xf32>
    %c0_3 = arith.constant 0 : index
    %c0_4 = arith.constant 0 : index
    %3 = vector.load %arg3[%c0_3, %c0_4] : memref<1x64xf32, #tpu.memory_space<vmem>>, vector<1x64xf32>
    %4 = vector.broadcast %3 : vector<1x64xf32> to vector<2x64xf32>
    %5 = arith.addf %2, %4 : vector<2x64xf32>
    %cst_5 = arith.constant 0.000000e+00 : f32
    %6 = vector.broadcast %cst_5 : f32 to vector<2x64xf32>
    %7 = arith.maximumf %5, %6 : vector<2x64xf32>
    %8 = arith.truncf %7 : vector<2x64xf32> to vector<2x64xbf16>
    %c0_6 = arith.constant 0 : index
    %c0_7 = arith.constant 0 : index
    %9 = vector.load %arg4[%c0_6, %c0_7] : memref<64x10xbf16, #tpu.memory_space<vmem>>, vector<64x10xbf16>
    %cst_8 = arith.constant dense<0.000000e+00> : vector<2x10xf32>
    %10 = tpu.matmul %8, %9, %cst_8 {dimension_numbers = #tpu.dot_dimension_numbers<[1], [0], [0], [1], [0, 0, 1, 1], [], []>} : vector<2x64xbf16>, vector<64x10xbf16>, vector<2x10xf32> -> vector<2x10xf32>
    %c0_9 = arith.constant 0 : index
    %c0_10 = arith.constant 0 : index
    %11 = vector.load %arg5[%c0_9, %c0_10] : memref<1x10xf32, #tpu.memory_space<vmem>>, vector<1x10xf32>
    %12 = vector.broadcast %11 : vector<1x10xf32> to vector<2x10xf32>
    %13 = arith.addf %10, %12 : vector<2x10xf32>
    %c0_11 = arith.constant 0 : index
    %c0_12 = arith.constant 0 : index
    %14 = vector.load %arg6[%c0_11, %c0_12] : memref<2x10xf32, #tpu.memory_space<vmem>>, vector<2x10xf32>
    tpu.vector_store %arg6[%c0_11, %c0_12], %13 {strides = array<i32>} : memref<2x10xf32, #tpu.memory_space<vmem>>, vector<2x10xf32>,
    return
  }
  func.func @transform_0(%arg0: i32) -> (i32, i32) {
    %c0_i32 = arith.constant 0 : i32
    %c0_i32_0 = arith.constant 0 : i32
    return %arg0, %c0_i32 : i32, i32
  }
  func.func @transform_1(%arg0: i32) -> (i32, i32) {
    %c0_i32 = arith.constant 0 : i32
    %c0_i32_0 = arith.constant 0 : i32
    %c0_i32_1 = arith.constant 0 : i32
    return %c0_i32, %c0_i32_0 : i32, i32
  }
  func.func @transform_2(%arg0: i32) -> (i32, i32) {
    %c0_i32 = arith.constant 0 : i32
    %c0_i32_0 = arith.constant 0 : i32
    %c0_i32_1 = arith.constant 0 : i32
    return %c0_i32, %c0_i32_0 : i32, i32
  }
  func.func @transform_3(%arg0: i32) -> (i32, i32) {
    %c0_i32 = arith.constant 0 : i32
    %c0_i32_0 = arith.constant 0 : i32
    %c0_i32_1 = arith.constant 0 : i32
    return %c0_i32, %c0_i32_0 : i32, i32
  }
  func.func @transform_4(%arg0: i32) -> (i32, i32) {
    %c0_i32 = arith.constant 0 : i32
    %c0_i32_0 = arith.constant 0 : i32
    %c0_i32_1 = arith.constant 0 : i32
    return %c0_i32, %c0_i32_0 : i32, i32
  }
  func.func @transform_5(%arg0: i32) -> (i32, i32) {
    %c0_i32 = arith.constant 0 : i32
    %c0_i32_0 = arith.constant 0 : i32
    return %arg0, %c0_i32 : i32, i32
  }
}

</mosaic_0001>

<llo_original>
// kernel: mnist_net_forward.3
$region0: #{mnist_net_forward.3}
  #allocation0 [shape = 'u32[]', space=smem, size = 0x4, offset = 0x4, fixed_abs, tag = 'smem constant byte address 0x4 - core index']
  #allocation1 [shape = 'u32[72,128]{1,0:T(1,128)}', space=vmem, size = 0x9000, scoped, tag = 'internal scratch']
  %s0 = inlined_call_operand.vmem [shape: bf16[1352,9], index: 0, kind: input, shape index: {}]
  %s1 = inlined_call_operand.vmem [shape: bf16[9,16], index: 1, kind: input, shape index: {}]
  %s2 = inlined_call_operand.vmem [shape: f32[1,16], index: 2, kind: input, shape index: {}]
  %s3 = inlined_call_operand.vmem [shape: bf16[1352,16], index: 3, kind: output, shape index: {}]
  %s4 = sld [smem:[#allocation0]]
  $region89: #{mnist_net_forward.3} parent=0
    _
  %s6 = ssub.s32 1, %s4
  %s7 = scalar_select 0, %s6, %s4
  $region1: #{mnist_net_forward.3} parent=0
    #allocation2 [shape = 'u8[262144]{0}', space=vmem, size = 0x40000, scoped, tag = 'output window, operand 0']
    loop: start=0, step=1, limit=5
    $region2: #{mnist_net_forward.3} parent=1 // loop_pre_header
      _
    $region3: #{mnist_net_forward.3} parent=1 // loop_header
      %s9 = sphi 0, %s13
      %p10 = scmp.ge.s32.totalorder %s9, 5
      %s19 = sphi 0, %s21
      %s22 = sphi 0, %s19
      %s23 = sphi 0, %s22
      %s39 = sphi 0, %s23
      %s43 = sphi 0, %s43
      %s45 = sphi 0, %s43
      %s46 = sphi 0, %s45
      %s60 = sphi 0, %s46
      %s64 = sphi 0, %s64
      %s66 = sphi 0, %s64
      %s67 = sphi 0, %s66
      %s81 = sphi 0, %s67
      %s87 = sphi 0, %s89
      %s90 = sphi 0, %s87
      %s91 = sphi 0, %s90
      %s107 = sphi 0, %s91
    $region4: #{mnist_net_forward.3} parent=1 // loop_header_branch
      %12 = sbr.rel (%p10) target = $region8
    $region5: #{mnist_net_forward.3} parent=1 // loop_body
      %s14 = ssub.s32 %s9, 1
      %s15 = ssub.s32 %s9, 2
      %s16 = sadd.s32 %s9, 1
      %s17 = ssub.s32 %s9, %s16
      %p18 = scmp.eq.s32.totalorder %s17, 0
      %s20 = sadd.s32 %s19, 1
      %s21 = scalar_select %p18, %s19, %s20
      %p24 = pneg %p18
      %p25 = scmp.eq.s32.totalorder %s9, 2
      %p26 = por %p24, %p25
      %p27 = scmp.ne.s32.totalorder %s19, %s22
      %p28 = scmp.eq.s32.totalorder %s9, 0
      %p29 = por %p27, %p28
      %p30 = scmp.ne.s32.totalorder %s19, %s22
      %p31 = scmp.eq.s32.totalorder %s14, 2
      %p32 = por %p30, %p31
      %p33 = scmp.ne.s32.totalorder %s22, %s23
      %p34 = scmp.eq.s32.totalorder %s14, 0
      %p35 = por %p33, %p34
      %p36 = scmp.ne.s32.totalorder %s22, %s23
      %p37 = scmp.eq.s32.totalorder %s15, 2
      %p38 = por %p36, %p37
      %p40 = scmp.ne.s32.totalorder %s23, %s39
      %p41 = scmp.eq.s32.totalorder %s15, 0
      %p42 = por %p40, %p41
      %s44 = sadd.s32 %s43, 1
      %p47 = scmp.eq.s32.totalorder %s9, 2
      %p48 = scmp.ne.s32.totalorder %s43, %s45
      %p49 = scmp.eq.s32.totalorder %s9, 0
      %p50 = por %p48, %p49
      %p51 = scmp.ne.s32.totalorder %s43, %s45
      %p52 = scmp.eq.s32.totalorder %s14, 2
      %p53 = por %p51, %p52
      %p54 = scmp.ne.s32.totalorder %s45, %s46
      %p55 = scmp.eq.s32.totalorder %s14, 0
      %p56 = por %p54, %p55
      %p57 = scmp.ne.s32.totalorder %s45, %s46
      %p58 = scmp.eq.s32.totalorder %s15, 2
      %p59 = por %p57, %p58
      %p61 = scmp.ne.s32.totalorder %s46, %s60
      %p62 = scmp.eq.s32.totalorder %s15, 0
      %p63 = por %p61, %p62
      %s65 = sadd.s32 %s64, 1
      %p68 = scmp.eq.s32.totalorder %s9, 2
      %p69 = scmp.ne.s32.totalorder %s64, %s66
      %p70 = scmp.eq.s32.totalorder %s9, 0
      %p71 = por %p69, %p70
      %p72 = scmp.ne.s32.totalorder %s64, %s66
      %p73 = scmp.eq.s32.totalorder %s14, 2
      %p74 = por %p72, %p73
      %p75 = scmp.ne.s32.totalorder %s66, %s67
      %p76 = scmp.eq.s32.totalorder %s14, 0
      %p77 = por %p75, %p76
      %p78 = scmp.ne.s32.totalorder %s66, %s67
      %p79 = scmp.eq.s32.totalorder %s15, 2
      %p80 = por %p78, %p79
      %p82 = scmp.ne.s32.totalorder %s67, %s81
      %p83 = scmp.eq.s32.totalorder %s15, 0
      %p84 = por %p82, %p83
      %s85 = ssub.s32 %s9, %s16
      %p86 = scmp.eq.s32.totalorder %s85, 0
      %s88 = sadd.s32 %s87, 1
      %s89 = scalar_select %p86, %s87, %s88
      %p92 = pneg %p86
      %p93 = scmp.eq.s32.totalorder %s9, 2
      %p94 = por %p92, %p93
      %p95 = scmp.ne.s32.totalorder %s87, %s90
      %p96 = scmp.eq.s32.totalorder %s9, 0
      %p97 = por %p95, %p96
      %p98 = scmp.ne.s32.totalorder %s87, %s90
      %p99 = scmp.eq.s32.totalorder %s14, 2
      %p100 = por %p98, %p99
      %p101 = scmp.ne.s32.totalorder %s90, %s91
      %p102 = scmp.eq.s32.totalorder %s14, 0
      %p103 = por %p101, %p102
      %p104 = scmp.ne.s32.totalorder %s90, %s91
      %p105 = scmp.eq.s32.totalorder %s15, 2
      %p106 = por %p104, %p105
      %p108 = scmp.ne.s32.totalorder %s91, %s107
      %p109 = scmp.eq.s32.totalorder %s15, 0
      %p110 = por %p108, %p109
      %p111 = scmp.le.s32.totalorder 1, %s9
      %p112 = scmp.lt.s32.totalorder %s9, 4
      %p113 = pnand %p111, %p112
      %p114 = pneg %p113
      // Predicated region
      $region9: #{mnist_net_forward.3} parent=5 // pred_check
        _
      $region10: #{mnist_net_forward.3} parent=5 // pred_check_branch
        %116 = sbr.rel (%p113) target = $region12
      $region11: #{mnist_net_forward.3} parent=5 // pred_region
        %s117 = ssub.s32 %s9, 1
        // Predicated region
        $region13: #{mnist_net_forward.3} parent=11 // pred_check
          %p118 = pneg %p56
        $region14: #{mnist_net_forward.3} parent=11 // pred_check_branch
          %120 = sbr.rel (%p118) target = $region16
        $region15: #{mnist_net_forward.3} parent=11 // pred_region
          _
        $region16: #{mnist_net_forward.3} parent=11 // pred_fallthru
          _
        // Predicated region
        $region17: #{mnist_net_forward.3} parent=11 // pred_check
          %p121 = pneg %p77
        $region18: #{mnist_net_forward.3} parent=11 // pred_check_branch
          %123 = sbr.rel (%p121) target = $region20
        $region19: #{mnist_net_forward.3} parent=11 // pred_region
          _
        $region20: #{mnist_net_forward.3} parent=11 // pred_fallthru
          _
      $region12: #{mnist_net_forward.3} parent=5 // pred_fallthru
        _
      %p124 = scmp.lt.s32.totalorder %s9, 3
      // Predicated region
      $region21: #{mnist_net_forward.3} parent=5 // pred_check
        %p125 = pneg %p124
      $region22: #{mnist_net_forward.3} parent=5 // pred_check_branch
        %127 = sbr.rel (%p125) target = $region24
      $region23: #{mnist_net_forward.3} parent=5 // pred_region
        // Predicated region
        $region25: #{mnist_net_forward.3} parent=23 // pred_check
          %p128 = pneg %p29
        $region26: #{mnist_net_forward.3} parent=23 // pred_check_branch
          %130 = sbr.rel (%p128) target = $region28
        $region27: #{mnist_net_forward.3} parent=23 // pred_region
          %s131 = smul.u32 64, %s9
          %s132 = ssub.s32 169, %s131
          %p133 = scmp.lt.s32.totalorder %s132, 64
          %s134 = scalar_select %p133, %s132, 64
          %s135 = smul.u32 4, %s134
          %p136 = scmp.lt.s32.totalorder %s131, 168
          %s137 = scalar_select %p136, %s131, 168
          %s138 = smul.addr %s137, 4
          %s139 = scalar_lea.vmem %s0, %s138
          %s140 = smul.u32 64, %s9
          %s141 = ssub.s32 169, %s140
          %p142 = scmp.lt.s32.totalorder %s141, 64
          %s143 = scalar_select %p142, %s141, 64
          %s144 = smul.u32 4, %s143
        $region28: #{mnist_net_forward.3} parent=23 // pred_fallthru
          _
      $region24: #{mnist_net_forward.3} parent=5 // pred_fallthru
        _
      %p145 = scmp.le.s32.totalorder 1, %s9
      %p146 = scmp.lt.s32.totalorder %s9, 4
      %p147 = pnand %p145, %p146
      %p148 = pneg %p147
      // Predicated region
      $region29: #{mnist_net_forward.3} parent=5 // pred_check
        _
      $region30: #{mnist_net_forward.3} parent=5 // pred_check_branch
        %150 = sbr.rel (%p147) target = $region32
      $region31: #{mnist_net_forward.3} parent=5 // pred_region
        %s151 = ssub.s32 %s9, 1
        %s152 = smul.u32 64, %s14
        %s153 = ssub.s32 169, %s152
        %p154 = scmp.lt.s32.totalorder %s153, 64
        %s155 = scalar_select %p154, %s153, 64
        %s156 = smul.u32 4, %s155
        %p157 = scmp.lt.s32.totalorder %s152, 168
        %s158 = scalar_select %p157, %s152, 168
        %s159 = smul.addr %s158, 4
        %s160 = scalar_lea.vmem %s0, %s159
        %p161 = pneg %p35
        %p162 = pneg %p32
        %p163 = pneg %p56
        %p164 = pneg %p53
        %p165 = pneg %p77
        %p166 = pneg %p74
        %p167 = pneg %p103
        %p168 = pneg %p100
        %s169 = sand.u32 %s90, 1
        %s170 = sand.u32 %s90, 1
        %s171 = smul.addr %s170, 256
        %s172 = scalar_lea.vmem [#allocation2], %s171
        %s173 = smul.u32 64, %s14
        %s174 = ssub.s32 169, %s173
        %p175 = scmp.lt.s32.totalorder %s174, 64
        %s176 = scalar_select %p175, %s174, 64
        %s177 = smul.u32 4, %s176
        %p178 = scmp.lt.s32.totalorder %s173, 168
        %s179 = scalar_select %p178, %s173, 168
        %s180 = smul.addr %s179, 4
        %s181 = scalar_lea.vmem %s0, %s180
        %s182 = smul.u32 64, %s14
        %s183 = ssub.s32 169, %s182
        %p184 = scmp.lt.s32.totalorder %s183, 64
        %s185 = scalar_select %p184, %s183, 64
        %s186 = smul.u32 4, %s185
        %s187 = smul.u32 64, %s14
        %s188 = ssub.s32 169, %s187
        %p189 = scmp.lt.s32.totalorder %s188, 64
        %s190 = scalar_select %p189, %s188, 64
        %s191 = smul.u32 4, %s190
        %v193 = vld [vmem:[%s181] sm:$0xf]
        %v194 = vld [vmem:[%s181 + $0x4] sm:$0xf]
        %v195 = vld [vmem:[%s181 + $0x8] sm:$0xf]
        %v196 = vld [vmem:[%s181 + $0xc] sm:$0xf]
        %v197 = vld [vmem:[%s181 + $0x10] sm:$0xf]
        %v198 = vld [vmem:[%s181 + $0x14] sm:$0xf]
        %v199 = vld [vmem:[%s181 + $0x18] sm:$0xf]
        %v200 = vld [vmem:[%s181 + $0x1c] sm:$0xf]
        %v201 = vld [vmem:[%s181 + $0x20] sm:$0xf]
        %v202 = vld [vmem:[%s181 + $0x24] sm:$0xf]
        %v203 = vld [vmem:[%s181 + $0x28] sm:$0xf]
        %v204 = vld [vmem:[%s181 + $0x2c] sm:$0xf]
        %v205 = vld [vmem:[%s181 + $0x30] sm:$0xf]
        %v206 = vld [vmem:[%s181 + $0x34] sm:$0xf]
        %v207 = vld [vmem:[%s181 + $0x38] sm:$0xf]
        %v208 = vld [vmem:[%s181 + $0x3c] sm:$0xf]
        %v209 = vld [vmem:[%s181 + $0x40] sm:$0xf]
        %v210 = vld [vmem:[%s181 + $0x44] sm:$0xf]
        %v211 = vld [vmem:[%s181 + $0x48] sm:$0xf]
        %v212 = vld [vmem:[%s181 + $0x4c] sm:$0xf]
        %v213 = vld [vmem:[%s181 + $0x50] sm:$0xf]
        %v214 = vld [vmem:[%s181 + $0x54] sm:$0xf]
        %v215 = vld [vmem:[%s181 + $0x58] sm:$0xf]
        %v216 = vld [vmem:[%s181 + $0x5c] sm:$0xf]
        %v217 = vld [vmem:[%s181 + $0x60] sm:$0xf]
        %v218 = vld [vmem:[%s181 + $0x64] sm:$0xf]
        %v219 = vld [vmem:[%s181 + $0x68] sm:$0xf]
        %v220 = vld [vmem:[%s181 + $0x6c] sm:$0xf]
        %v221 = vld [vmem:[%s181 + $0x70] sm:$0xf]
        %v222 = vld [vmem:[%s181 + $0x74] sm:$0xf]
        %v223 = vld [vmem:[%s181 + $0x78] sm:$0xf]
        %v224 = vld [vmem:[%s181 + $0x7c] sm:$0xf]
        %v225 = vld [vmem:[%s181 + $0x80] sm:$0xf]
        %v226 = vld [vmem:[%s181 + $0x84] sm:$0xf]
        %v227 = vld [vmem:[%s181 + $0x88] sm:$0xf]
        %v228 = vld [vmem:[%s181 + $0x8c] sm:$0xf]
        %v229 = vld [vmem:[%s181 + $0x90] sm:$0xf]
        %v230 = vld [vmem:[%s181 + $0x94] sm:$0xf]
        %v231 = vld [vmem:[%s181 + $0x98] sm:$0xf]
        %v232 = vld [vmem:[%s181 + $0x9c] sm:$0xf]
        %v233 = vld [vmem:[%s181 + $0xa0] sm:$0xf]
        %v234 = vld [vmem:[%s181 + $0xa4] sm:$0xf]
        %v235 = vld [vmem:[%s181 + $0xa8] sm:$0xf]
        %v236 = vld [vmem:[%s181 + $0xac] sm:$0xf]
        %v237 = vld [vmem:[%s181 + $0xb0] sm:$0xf]
        %v238 = vld [vmem:[%s181 + $0xb4] sm:$0xf]
        %v239 = vld [vmem:[%s181 + $0xb8] sm:$0xf]
        %v240 = vld [vmem:[%s181 + $0xbc] sm:$0xf]
        %v241 = vld [vmem:[%s181 + $0xc0] sm:$0xf]
        %v242 = vld [vmem:[%s181 + $0xc4] sm:$0xf]
        %v243 = vld [vmem:[%s181 + $0xc8] sm:$0xf]
        %v244 = vld [vmem:[%s181 + $0xcc] sm:$0xf]
        %v245 = vld [vmem:[%s181 + $0xd0] sm:$0xf]
        %v246 = vld [vmem:[%s181 + $0xd4] sm:$0xf]
        %v247 = vld [vmem:[%s181 + $0xd8] sm:$0xf]
        %v248 = vld [vmem:[%s181 + $0xdc] sm:$0xf]
        %v249 = vld [vmem:[%s181 + $0xe0] sm:$0xf]
        %v250 = vld [vmem:[%s181 + $0xe4] sm:$0xf]
        %v251 = vld [vmem:[%s181 + $0xe8] sm:$0xf]
        %v252 = vld [vmem:[%s181 + $0xec] sm:$0xf]
        %v253 = vld [vmem:[%s181 + $0xf0] sm:$0xf]
        %v254 = vld [vmem:[%s181 + $0xf4] sm:$0xf]
        %v255 = vld [vmem:[%s181 + $0xf8] sm:$0xf]
        %v256 = vld [vmem:[%s181 + $0xfc] sm:$0xf]
        %v257 = vld [vmem:[%s1] sm:$0xf]
        %v258 = vld [vmem:[%s1 + $0x4] sm:$0x1]
        %v259 = vld [vmem:[%s2] sm:$0x1]
        %v261 = vperm.slane %v259, 0
        %v327 = vunpack.c.l.b16 %v193
        %v328 = vunpack.c.l.b16 %v194
        %v329 = vunpack.c.l.b16 %v195
        %v330 = vunpack.c.l.b16 %v196
        %v331 = vunpack.c.l.b16 %v197
        %v332 = vunpack.c.l.b16 %v198
        %v333 = vunpack.c.l.b16 %v199
        %v334 = vunpack.c.l.b16 %v200
        %v335 = vunpack.c.l.b16 %v201
        %v336 = vunpack.c.l.b16 %v202
        %v337 = vunpack.c.l.b16 %v203
        %v338 = vunpack.c.l.b16 %v204
        %v339 = vunpack.c.l.b16 %v205
        %v340 = vunpack.c.l.b16 %v206
        %v341 = vunpack.c.l.b16 %v207
        %v342 = vunpack.c.l.b16 %v208
        %v343 = vunpack.c.l.b16 %v209
        %v344 = vunpack.c.l.b16 %v210
        %v345 = vunpack.c.l.b16 %v211
        %v346 = vunpack.c.l.b16 %v212
        %v347 = vunpack.c.l.b16 %v213
        %v348 = vunpack.c.l.b16 %v214
        %v349 = vunpack.c.l.b16 %v215
        %v350 = vunpack.c.l.b16 %v216
        %v351 = vunpack.c.l.b16 %v217
        %v352 = vunpack.c.l.b16 %v218
        %v353 = vunpack.c.l.b16 %v219
        %v354 = vunpack.c.l.b16 %v220
        %v355 = vunpack.c.l.b16 %v221
        %v356 = vunpack.c.l.b16 %v222
        %v357 = vunpack.c.l.b16 %v223
        %v358 = vunpack.c.l.b16 %v224
        %v359 = vunpack.c.l.b16 %v225
        %v360 = vunpack.c.l.b16 %v226
        %v361 = vunpack.c.l.b16 %v227
        %v362 = vunpack.c.l.b16 %v228
        %v363 = vunpack.c.l.b16 %v229
        %v364 = vunpack.c.l.b16 %v230
        %v365 = vunpack.c.l.b16 %v231
        %v366 = vunpack.c.l.b16 %v232
        %v367 = vunpack.c.l.b16 %v233
        %v368 = vunpack.c.l.b16 %v234
        %v369 = vunpack.c.l.b16 %v235
        %v370 = vunpack.c.l.b16 %v236
        %v371 = vunpack.c.l.b16 %v237
        %v372 = vunpack.c.l.b16 %v238
        %v373 = vunpack.c.l.b16 %v239
        %v374 = vunpack.c.l.b16 %v240
        %v375 = vunpack.c.l.b16 %v241
        %v376 = vunpack.c.l.b16 %v242
        %v377 = vunpack.c.l.b16 %v243
        %v378 = vunpack.c.l.b16 %v244
        %v379 = vunpack.c.l.b16 %v245
        %v380 = vunpack.c.l.b16 %v246
        %v381 = vunpack.c.l.b16 %v247
        %v382 = vunpack.c.l.b16 %v248
        %v383 = vunpack.c.l.b16 %v249
        %v384 = vunpack.c.l.b16 %v250
        %v385 = vunpack.c.l.b16 %v251
        %v386 = vunpack.c.l.b16 %v252
        %v387 = vunpack.c.l.b16 %v253
        %v388 = vunpack.c.l.b16 %v254
        %v389 = vunpack.c.l.b16 %v255
        %v390 = vunpack.c.l.b16 %v256
        %v391 = vpack.c.b16 %v328, %v327
        %v392 = vpack.c.b16 %v330, %v329
        %v393 = vpack.c.b16 %v332, %v331
        %v394 = vpack.c.b16 %v334, %v333
        %v395 = vpack.c.b16 %v336, %v335
        %v396 = vpack.c.b16 %v338, %v337
        %v397 = vpack.c.b16 %v340, %v339
        %v398 = vpack.c.b16 %v342, %v341
        %v399 = vpack.c.b16 %v344, %v343
        %v400 = vpack.c.b16 %v346, %v345
        %v401 = vpack.c.b16 %v348, %v347
        %v402 = vpack.c.b16 %v350, %v349
        %v403 = vpack.c.b16 %v352, %v351
        %v404 = vpack.c.b16 %v354, %v353
        %v405 = vpack.c.b16 %v356, %v355
        %v406 = vpack.c.b16 %v358, %v357
        %v407 = vpack.c.b16 %v360, %v359
        %v408 = vpack.c.b16 %v362, %v361
        %v409 = vpack.c.b16 %v364, %v363
        %v410 = vpack.c.b16 %v366, %v365
        %v411 = vpack.c.b16 %v368, %v367
        %v412 = vpack.c.b16 %v370, %v369
        %v413 = vpack.c.b16 %v372, %v371
        %v414 = vpack.c.b16 %v374, %v373
        %v415 = vpack.c.b16 %v376, %v375
        %v416 = vpack.c.b16 %v378, %v377
        %v417 = vpack.c.b16 %v380, %v379
        %v418 = vpack.c.b16 %v382, %v381
        %v419 = vpack.c.b16 %v384, %v383
        %v420 = vpack.c.b16 %v386, %v385
        %v421 = vpack.c.b16 %v388, %v387
        %v422 = vpack.c.b16 %v390, %v389
        %v425 = vunpack.c.l.b16 %v257
        %v426 = vunpack.c.l.b16 %v258
        %v427 = vpack.c.b16 %v426, %v425
        %vm428 = vcmask 72704
        %v430 = vsel %vm428, %v391, 0
        %v433 = vsel %vm428, %v392, 0
        %v436 = vsel %vm428, %v393, 0
        %v439 = vsel %vm428, %v394, 0
        %v442 = vsel %vm428, %v395, 0
        %v445 = vsel %vm428, %v396, 0
        %v448 = vsel %vm428, %v397, 0
        %v451 = vsel %vm428, %v398, 0
        %v454 = vsel %vm428, %v399, 0
        %v457 = vsel %vm428, %v400, 0
        %v460 = vsel %vm428, %v401, 0
        %v463 = vsel %vm428, %v402, 0
        %v466 = vsel %vm428, %v403, 0
        %v469 = vsel %vm428, %v404, 0
        %v472 = vsel %vm428, %v405, 0
        %v475 = vsel %vm428, %v406, 0
        %v478 = vsel %vm428, %v407, 0
        %v481 = vsel %vm428, %v408, 0
        %v484 = vsel %vm428, %v409, 0
        %v487 = vsel %vm428, %v410, 0
        %v490 = vsel %vm428, %v411, 0
        %v493 = vsel %vm428, %v412, 0
        %v496 = vsel %vm428, %v413, 0
        %v499 = vsel %vm428, %v414, 0
        %v502 = vsel %vm428, %v415, 0
        %v505 = vsel %vm428, %v416, 0
        %v508 = vsel %vm428, %v417, 0
        %v511 = vsel %vm428, %v418, 0
        %v514 = vsel %vm428, %v419, 0
        %v517 = vsel %vm428, %v420, 0
        %v520 = vsel %vm428, %v421, 0
        %v523 = vsel %vm428, %v422, 0
        %vm525 = vcmask 1043456
        %vm526 = vcmask 1044480
        %v527 = vsel %vm525, 4294967295, 65535
        %v528 = vsel %vm526, %v527, 0
        %v530 = vand.u32 %v427, %v528
        %532 = vmatpush.bf16.msra.mxu0 0
        %533 = vmatpush.bf16.msra.mxu0 0
        %534 = vmatpush.bf16.msra.mxu0 0
        %535 = vmatpush.bf16.msra.mxu0 0
        %536 = vmatpush.bf16.msra.mxu0 0
        %537 = vmatpush.bf16.msra.mxu0 0
        %538 = vmatpush.bf16.msra.mxu0 0
        %539 = vmatpush.bf16.msra.mxu0 %v530
        %540 = vmatmul.bf16.gmra.mxu0 %v430
        %v541 = vpop.f32.mrf.mxu0
        %v542 = vadd.f32 %v261, %v541
        %v543 = vpop.f32.mrf.mxu0
        %v544 = vadd.f32 %v261, %v543
        %545 = vmatmul.bf16.gmra.mxu0 %v433
        %v546 = vpop.f32.mrf.mxu0
        %v547 = vadd.f32 %v261, %v546
        %v548 = vpop.f32.mrf.mxu0
        %v549 = vadd.f32 %v261, %v548
        %550 = vmatmul.bf16.gmra.mxu0 %v436
        %v551 = vpop.f32.mrf.mxu0
        %v552 = vadd.f32 %v261, %v551
        %v553 = vpop.f32.mrf.mxu0
        %v554 = vadd.f32 %v261, %v553
        %555 = vmatmul.bf16.gmra.mxu0 %v439
        %v556 = vpop.f32.mrf.mxu0
        %v557 = vadd.f32 %v261, %v556
        %v558 = vpop.f32.mrf.mxu0
        %v559 = vadd.f32 %v261, %v558
        %560 = vmatmul.bf16.gmra.mxu0 %v442
        %v561 = vpop.f32.mrf.mxu0
        %v562 = vadd.f32 %v261, %v561
        %v563 = vpop.f32.mrf.mxu0
        %v564 = vadd.f32 %v261, %v563
        %565 = vmatmul.bf16.gmra.mxu0 %v445
        %v566 = vpop.f32.mrf.mxu0
        %v567 = vadd.f32 %v261, %v566
        %v568 = vpop.f32.mrf.mxu0
        %v569 = vadd.f32 %v261, %v568
        %570 = vmatmul.bf16.gmra.mxu0 %v448
        %v571 = vpop.f32.mrf.mxu0
        %v572 = vadd.f32 %v261, %v571
        %v573 = vpop.f32.mrf.mxu0
        %v574 = vadd.f32 %v261, %v573
        %575 = vmatmul.bf16.gmra.mxu0 %v451
        %v576 = vpop.f32.mrf.mxu0
        %v577 = vadd.f32 %v261, %v576
        %v578 = vpop.f32.mrf.mxu0
        %v579 = vadd.f32 %v261, %v578
        %580 = vmatmul.bf16.gmra.mxu0 %v454
        %v581 = vpop.f32.mrf.mxu0
        %v582 = vadd.f32 %v261, %v581
        %v583 = vpop.f32.mrf.mxu0
        %v584 = vadd.f32 %v261, %v583
        %585 = vmatmul.bf16.gmra.mxu0 %v457
        %v586 = vpop.f32.mrf.mxu0
        %v587 = vadd.f32 %v261, %v586
        %v588 = vpop.f32.mrf.mxu0
        %v589 = vadd.f32 %v261, %v588
        %590 = vmatmul.bf16.gmra.mxu0 %v460
        %v591 = vpop.f32.mrf.mxu0
        %v592 = vadd.f32 %v261, %v591
        %v593 = vpop.f32.mrf.mxu0
        %v594 = vadd.f32 %v261, %v593
        %595 = vmatmul.bf16.gmra.mxu0 %v463
        %v596 = vpop.f32.mrf.mxu0
        %v597 = vadd.f32 %v261, %v596
        %v598 = vpop.f32.mrf.mxu0
        %v599 = vadd.f32 %v261, %v598
        %600 = vmatmul.bf16.gmra.mxu0 %v466
        %v601 = vpop.f32.mrf.mxu0
        %v602 = vadd.f32 %v261, %v601
        %v603 = vpop.f32.mrf.mxu0
        %v604 = vadd.f32 %v261, %v603
        %605 = vmatmul.bf16.gmra.mxu0 %v469
        %v606 = vpop.f32.mrf.mxu0
        %v607 = vadd.f32 %v261, %v606
        %v608 = vpop.f32.mrf.mxu0
        %v609 = vadd.f32 %v261, %v608
        %610 = vmatmul.bf16.gmra.mxu0 %v472
        %v611 = vpop.f32.mrf.mxu0
        %v612 = vadd.f32 %v261, %v611
        %v613 = vpop.f32.mrf.mxu0
        %v614 = vadd.f32 %v261, %v613
        %615 = vmatmul.bf16.gmra.mxu0 %v475
        %v616 = vpop.f32.mrf.mxu0
        %v617 = vadd.f32 %v261, %v616
        %v618 = vpop.f32.mrf.mxu0
        %v619 = vadd.f32 %v261, %v618
        %620 = vmatmul.bf16.gmra.mxu0 %v478
        %v621 = vpop.f32.mrf.mxu0
        %v622 = vadd.f32 %v261, %v621
        %v623 = vpop.f32.mrf.mxu0
        %v624 = vadd.f32 %v261, %v623
        %625 = vmatmul.bf16.gmra.mxu0 %v481
        %v626 = vpop.f32.mrf.mxu0
        %v627 = vadd.f32 %v261, %v626
        %v628 = vpop.f32.mrf.mxu0
        %v629 = vadd.f32 %v261, %v628
        %630 = vmatmul.bf16.gmra.mxu0 %v484
        %v631 = vpop.f32.mrf.mxu0
        %v632 = vadd.f32 %v261, %v631
        %v633 = vpop.f32.mrf.mxu0
        %v634 = vadd.f32 %v261, %v633
        %635 = vmatmul.bf16.gmra.mxu0 %v487
        %v636 = vpop.f32.mrf.mxu0
        %v637 = vadd.f32 %v261, %v636
        %v638 = vpop.f32.mrf.mxu0
        %v639 = vadd.f32 %v261, %v638
        %640 = vmatmul.bf16.gmra.mxu0 %v490
        %v641 = vpop.f32.mrf.mxu0
        %v642 = vadd.f32 %v261, %v641
        %v643 = vpop.f32.mrf.mxu0
        %v644 = vadd.f32 %v261, %v643
        %645 = vmatmul.bf16.gmra.mxu0 %v493
        %v646 = vpop.f32.mrf.mxu0
        %v647 = vadd.f32 %v261, %v646
        %v648 = vpop.f32.mrf.mxu0
        %v649 = vadd.f32 %v261, %v648
        %650 = vmatmul.bf16.gmra.mxu0 %v496
        %v651 = vpop.f32.mrf.mxu0
        %v652 = vadd.f32 %v261, %v651
        %v653 = vpop.f32.mrf.mxu0
        %v654 = vadd.f32 %v261, %v653
        %655 = vmatmul.bf16.gmra.mxu0 %v499
        %v656 = vpop.f32.mrf.mxu0
        %v657 = vadd.f32 %v261, %v656
        %v658 = vpop.f32.mrf.mxu0
        %v659 = vadd.f32 %v261, %v658
        %660 = vmatmul.bf16.gmra.mxu0 %v502
        %v661 = vpop.f32.mrf.mxu0
        %v662 = vadd.f32 %v261, %v661
        %v663 = vpop.f32.mrf.mxu0
        %v664 = vadd.f32 %v261, %v663
        %665 = vmatmul.bf16.gmra.mxu0 %v505
        %v666 = vpop.f32.mrf.mxu0
        %v667 = vadd.f32 %v261, %v666
        %v668 = vpop.f32.mrf.mxu0
        %v669 = vadd.f32 %v261, %v668
        %670 = vmatmul.bf16.gmra.mxu0 %v508
        %v671 = vpop.f32.mrf.mxu0
        %v672 = vadd.f32 %v261, %v671
        %v673 = vpop.f32.mrf.mxu0
        %v674 = vadd.f32 %v261, %v673
        %675 = vmatmul.bf16.gmra.mxu0 %v511
        %v676 = vpop.f32.mrf.mxu0
        %v677 = vadd.f32 %v261, %v676
        %v678 = vpop.f32.mrf.mxu0
        %v679 = vadd.f32 %v261, %v678
        %680 = vmatmul.bf16.gmra.mxu0 %v514
        %v681 = vpop.f32.mrf.mxu0
        %v682 = vadd.f32 %v261, %v681
        %v683 = vpop.f32.mrf.mxu0
        %v684 = vadd.f32 %v261, %v683
        %685 = vmatmul.bf16.gmra.mxu0 %v517
        %v686 = vpop.f32.mrf.mxu0
        %v687 = vadd.f32 %v261, %v686
        %v688 = vpop.f32.mrf.mxu0
        %v689 = vadd.f32 %v261, %v688
        %690 = vmatmul.bf16.gmra.mxu0 %v520
        %v691 = vpop.f32.mrf.mxu0
        %v692 = vadd.f32 %v261, %v691
        %v693 = vpop.f32.mrf.mxu0
        %v694 = vadd.f32 %v261, %v693
        %695 = vmatmul.bf16.gmra.mxu0 %v523
        %v696 = vpop.f32.mrf.mxu0
        %v697 = vadd.f32 %v261, %v696
        %v698 = vpop.f32.mrf.mxu0
        %v699 = vadd.f32 %v261, %v698
        %700 = vdwg.mxu0
        %v701 = vmax.f32 %v542, 0.0
        %v702 = vmax.f32 %v544, 0.0
        %v703 = vmax.f32 %v547, 0.0
        %v704 = vmax.f32 %v549, 0.0
        %v705 = vmax.f32 %v552, 0.0
        %v706 = vmax.f32 %v554, 0.0
        %v707 = vmax.f32 %v557, 0.0
        %v708 = vmax.f32 %v559, 0.0
        %v709 = vmax.f32 %v562, 0.0
        %v710 = vmax.f32 %v564, 0.0
        %v711 = vmax.f32 %v567, 0.0
        %v712 = vmax.f32 %v569, 0.0
        %v713 = vmax.f32 %v572, 0.0
        %v714 = vmax.f32 %v574, 0.0
        %v715 = vmax.f32 %v577, 0.0
        %v716 = vmax.f32 %v579, 0.0
        %v717 = vmax.f32 %v582, 0.0
        %v718 = vmax.f32 %v584, 0.0
        %v719 = vmax.f32 %v587, 0.0
        %v720 = vmax.f32 %v589, 0.0
        %v721 = vmax.f32 %v592, 0.0
        %v722 = vmax.f32 %v594, 0.0
        %v723 = vmax.f32 %v597, 0.0
        %v724 = vmax.f32 %v599, 0.0
        %v725 = vmax.f32 %v602, 0.0
        %v726 = vmax.f32 %v604, 0.0
        %v727 = vmax.f32 %v607, 0.0
        %v728 = vmax.f32 %v609, 0.0
        %v729 = vmax.f32 %v612, 0.0
        %v730 = vmax.f32 %v614, 0.0
        %v731 = vmax.f32 %v617, 0.0
        %v732 = vmax.f32 %v619, 0.0
        %v733 = vmax.f32 %v622, 0.0
        %v734 = vmax.f32 %v624, 0.0
        %v735 = vmax.f32 %v627, 0.0
        %v736 = vmax.f32 %v629, 0.0
        %v737 = vmax.f32 %v632, 0.0
        %v738 = vmax.f32 %v634, 0.0
        %v739 = vmax.f32 %v637, 0.0
        %v740 = vmax.f32 %v639, 0.0
        %v741 = vmax.f32 %v642, 0.0
        %v742 = vmax.f32 %v644, 0.0
        %v743 = vmax.f32 %v647, 0.0
        %v744 = vmax.f32 %v649, 0.0
        %v745 = vmax.f32 %v652, 0.0
        %v746 = vmax.f32 %v654, 0.0
        %v747 = vmax.f32 %v657, 0.0
        %v748 = vmax.f32 %v659, 0.0
        %v749 = vmax.f32 %v662, 0.0
        %v750 = vmax.f32 %v664, 0.0
        %v751 = vmax.f32 %v667, 0.0
        %v752 = vmax.f32 %v669, 0.0
        %v753 = vmax.f32 %v672, 0.0
        %v754 = vmax.f32 %v674, 0.0
        %v755 = vmax.f32 %v677, 0.0
        %v756 = vmax.f32 %v679, 0.0
        %v757 = vmax.f32 %v682, 0.0
        %v758 = vmax.f32 %v684, 0.0
        %v759 = vmax.f32 %v687, 0.0
        %v760 = vmax.f32 %v689, 0.0
        %v761 = vmax.f32 %v692, 0.0
        %v762 = vmax.f32 %v694, 0.0
        %v763 = vmax.f32 %v697, 0.0
        %v764 = vmax.f32 %v699, 0.0
        %v765 = vpack.c.bf16 %v701, %v701
        %v766 = vpack.c.bf16 %v702, %v702
        %v767 = vpack.c.bf16 %v703, %v703
        %v768 = vpack.c.bf16 %v704, %v704
        %v769 = vpack.c.bf16 %v705, %v705
        %v770 = vpack.c.bf16 %v706, %v706
        %v771 = vpack.c.bf16 %v707, %v707
        %v772 = vpack.c.bf16 %v708, %v708
        %v773 = vpack.c.bf16 %v709, %v709
        %v774 = vpack.c.bf16 %v710, %v710
        %v775 = vpack.c.bf16 %v711, %v711
        %v776 = vpack.c.bf16 %v712, %v712
        %v777 = vpack.c.bf16 %v713, %v713
        %v778 = vpack.c.bf16 %v714, %v714
        %v779 = vpack.c.bf16 %v715, %v715
        %v780 = vpack.c.bf16 %v716, %v716
        %v781 = vpack.c.bf16 %v717, %v717
        %v782 = vpack.c.bf16 %v718, %v718
        %v783 = vpack.c.bf16 %v719, %v719
        %v784 = vpack.c.bf16 %v720, %v720
        %v785 = vpack.c.bf16 %v721, %v721
        %v786 = vpack.c.bf16 %v722, %v722
        %v787 = vpack.c.bf16 %v723, %v723
        %v788 = vpack.c.bf16 %v724, %v724
        %v789 = vpack.c.bf16 %v725, %v725
        %v790 = vpack.c.bf16 %v726, %v726
        %v791 = vpack.c.bf16 %v727, %v727
        %v792 = vpack.c.bf16 %v728, %v728
        %v793 = vpack.c.bf16 %v729, %v729
        %v794 = vpack.c.bf16 %v730, %v730
        %v795 = vpack.c.bf16 %v731, %v731
        %v796 = vpack.c.bf16 %v732, %v732
        %v797 = vpack.c.bf16 %v733, %v733
        %v798 = vpack.c.bf16 %v734, %v734
        %v799 = vpack.c.bf16 %v735, %v735
        %v800 = vpack.c.bf16 %v736, %v736
        %v801 = vpack.c.bf16 %v737, %v737
        %v802 = vpack.c.bf16 %v738, %v738
        %v803 = vpack.c.bf16 %v739, %v739
        %v804 = vpack.c.bf16 %v740, %v740
        %v805 = vpack.c.bf16 %v741, %v741
        %v806 = vpack.c.bf16 %v742, %v742
        %v807 = vpack.c.bf16 %v743, %v743
        %v808 = vpack.c.bf16 %v744, %v744
        %v809 = vpack.c.bf16 %v745, %v745
        %v810 = vpack.c.bf16 %v746, %v746
        %v811 = vpack.c.bf16 %v747, %v747
        %v812 = vpack.c.bf16 %v748, %v748
        %v813 = vpack.c.bf16 %v749, %v749
        %v814 = vpack.c.bf16 %v750, %v750
        %v815 = vpack.c.bf16 %v751, %v751
        %v816 = vpack.c.bf16 %v752, %v752
        %v817 = vpack.c.bf16 %v753, %v753
        %v818 = vpack.c.bf16 %v754, %v754
        %v819 = vpack.c.bf16 %v755, %v755
        %v820 = vpack.c.bf16 %v756, %v756
        %v821 = vpack.c.bf16 %v757, %v757
        %v822 = vpack.c.bf16 %v758, %v758
        %v823 = vpack.c.bf16 %v759, %v759
        %v824 = vpack.c.bf16 %v760, %v760
        %v825 = vpack.c.bf16 %v761, %v761
        %v826 = vpack.c.bf16 %v762, %v762
        %v827 = vpack.c.bf16 %v763, %v763
        %v828 = vpack.c.bf16 %v764, %v764
        %vm829 = vcmask 125952
        %830 = vst.msk [vmem:[%s172] sm:$0xf] %vm829, %v765
        %831 = vst.msk [vmem:[%s172 + $0x4] sm:$0xf] %vm829, %v766
        %832 = vst.msk [vmem:[%s172 + $0x8] sm:$0xf] %vm829, %v767
        %833 = vst.msk [vmem:[%s172 + $0xc] sm:$0xf] %vm829, %v768
        %834 = vst.msk [vmem:[%s172 + $0x10] sm:$0xf] %vm829, %v769
        %835 = vst.msk [vmem:[%s172 + $0x14] sm:$0xf] %vm829, %v770
        %836 = vst.msk [vmem:[%s172 + $0x18] sm:$0xf] %vm829, %v771
        %837 = vst.msk [vmem:[%s172 + $0x1c] sm:$0xf] %vm829, %v772
        %838 = vst.msk [vmem:[%s172 + $0x20] sm:$0xf] %vm829, %v773
        %839 = vst.msk [vmem:[%s172 + $0x24] sm:$0xf] %vm829, %v774
        %840 = vst.msk [vmem:[%s172 + $0x28] sm:$0xf] %vm829, %v775
        %841 = vst.msk [vmem:[%s172 + $0x2c] sm:$0xf] %vm829, %v776
        %842 = vst.msk [vmem:[%s172 + $0x30] sm:$0xf] %vm829, %v777
        %843 = vst.msk [vmem:[%s172 + $0x34] sm:$0xf] %vm829, %v778
        %844 = vst.msk [vmem:[%s172 + $0x38] sm:$0xf] %vm829, %v779
        %845 = vst.msk [vmem:[%s172 + $0x3c] sm:$0xf] %vm829, %v780
        %846 = vst.msk [vmem:[%s172 + $0x40] sm:$0xf] %vm829, %v781
        %847 = vst.msk [vmem:[%s172 + $0x44] sm:$0xf] %vm829, %v782
        %848 = vst.msk [vmem:[%s172 + $0x48] sm:$0xf] %vm829, %v783
        %849 = vst.msk [vmem:[%s172 + $0x4c] sm:$0xf] %vm829, %v784
        %850 = vst.msk [vmem:[%s172 + $0x50] sm:$0xf] %vm829, %v785
        %851 = vst.msk [vmem:[%s172 + $0x54] sm:$0xf] %vm829, %v786
        %852 = vst.msk [vmem:[%s172 + $0x58] sm:$0xf] %vm829, %v787
        %853 = vst.msk [vmem:[%s172 + $0x5c] sm:$0xf] %vm829, %v788
        %854 = vst.msk [vmem:[%s172 + $0x60] sm:$0xf] %vm829, %v789
        %855 = vst.msk [vmem:[%s172 + $0x64] sm:$0xf] %vm829, %v790
        %856 = vst.msk [vmem:[%s172 + $0x68] sm:$0xf] %vm829, %v791
        %857 = vst.msk [vmem:[%s172 + $0x6c] sm:$0xf] %vm829, %v792
        %858 = vst.msk [vmem:[%s172 + $0x70] sm:$0xf] %vm829, %v793
        %859 = vst.msk [vmem:[%s172 + $0x74] sm:$0xf] %vm829, %v794
        %860 = vst.msk [vmem:[%s172 + $0x78] sm:$0xf] %vm829, %v795
        %861 = vst.msk [vmem:[%s172 + $0x7c] sm:$0xf] %vm829, %v796
        %862 = vst.msk [vmem:[%s172 + $0x80] sm:$0xf] %vm829, %v797
        %863 = vst.msk [vmem:[%s172 + $0x84] sm:$0xf] %vm829, %v798
        %864 = vst.msk [vmem:[%s172 + $0x88] sm:$0xf] %vm829, %v799
        %865 = vst.msk [vmem:[%s172 + $0x8c] sm:$0xf] %vm829, %v800
        %866 = vst.msk [vmem:[%s172 + $0x90] sm:$0xf] %vm829, %v801
        %867 = vst.msk [vmem:[%s172 + $0x94] sm:$0xf] %vm829, %v802
        %868 = vst.msk [vmem:[%s172 + $0x98] sm:$0xf] %vm829, %v803
        %869 = vst.msk [vmem:[%s172 + $0x9c] sm:$0xf] %vm829, %v804
        %870 = vst.msk [vmem:[%s172 + $0xa0] sm:$0xf] %vm829, %v805
        %871 = vst.msk [vmem:[%s172 + $0xa4] sm:$0xf] %vm829, %v806
        %872 = vst.msk [vmem:[%s172 + $0xa8] sm:$0xf] %vm829, %v807
        %873 = vst.msk [vmem:[%s172 + $0xac] sm:$0xf] %vm829, %v808
        %874 = vst.msk [vmem:[%s172 + $0xb0] sm:$0xf] %vm829, %v809
        %875 = vst.msk [vmem:[%s172 + $0xb4] sm:$0xf] %vm829, %v810
        %876 = vst.msk [vmem:[%s172 + $0xb8] sm:$0xf] %vm829, %v811
        %877 = vst.msk [vmem:[%s172 + $0xbc] sm:$0xf] %vm829, %v812
        %878 = vst.msk [vmem:[%s172 + $0xc0] sm:$0xf] %vm829, %v813
        %879 = vst.msk [vmem:[%s172 + $0xc4] sm:$0xf] %vm829, %v814
        %880 = vst.msk [vmem:[%s172 + $0xc8] sm:$0xf] %vm829, %v815
        %881 = vst.msk [vmem:[%s172 + $0xcc] sm:$0xf] %vm829, %v816
        %882 = vst.msk [vmem:[%s172 + $0xd0] sm:$0xf] %vm829, %v817
        %883 = vst.msk [vmem:[%s172 + $0xd4] sm:$0xf] %vm829, %v818
        %884 = vst.msk [vmem:[%s172 + $0xd8] sm:$0xf] %vm829, %v819
        %885 = vst.msk [vmem:[%s172 + $0xdc] sm:$0xf] %vm829, %v820
        %886 = vst.msk [vmem:[%s172 + $0xe0] sm:$0xf] %vm829, %v821
        %887 = vst.msk [vmem:[%s172 + $0xe4] sm:$0xf] %vm829, %v822
        %888 = vst.msk [vmem:[%s172 + $0xe8] sm:$0xf] %vm829, %v823
        %889 = vst.msk [vmem:[%s172 + $0xec] sm:$0xf] %vm829, %v824
        %890 = vst.msk [vmem:[%s172 + $0xf0] sm:$0xf] %vm829, %v825
        %891 = vst.msk [vmem:[%s172 + $0xf4] sm:$0xf] %vm829, %v826
        %892 = vst.msk [vmem:[%s172 + $0xf8] sm:$0xf] %vm829, %v827
        %893 = vst.msk [vmem:[%s172 + $0xfc] sm:$0xf] %vm829, %v828
        %s894 = sand.u32 %s90, 1
        %s895 = sand.u32 %s90, 1
        %s896 = smul.addr %s895, 256
        %s897 = scalar_lea.vmem [#allocation2], %s896
        // Predicated region
        $region33: #{mnist_net_forward.3} parent=31 // pred_check
          %p898 = pneg %p100
        $region34: #{mnist_net_forward.3} parent=31 // pred_check_branch
          %900 = sbr.rel (%p898) target = $region36
        $region35: #{mnist_net_forward.3} parent=31 // pred_region
          %s901 = smul.u32 64, %s14
          %s902 = ssub.s32 169, %s901
          %p903 = scmp.lt.s32.totalorder %s902, 64
          %s904 = scalar_select %p903, %s902, 64
          %s905 = smul.u32 4, %s904
          %p906 = scmp.ne.s32.totalorder 0, %s905
          %s907 = smul.addr %s901, 4
          %s908 = scalar_lea.vmem %s3, %s907
          // Predicated region
          $region37: #{mnist_net_forward.3} parent=35 // pred_check
            %p909 = pneg %p906
          $region38: #{mnist_net_forward.3} parent=35 // pred_check_branch
            %911 = sbr.rel (%p909) target = $region40
          $region39: #{mnist_net_forward.3} parent=35 // pred_region
            // Predicated region
            $region41: #{mnist_net_forward.3} parent=39 // pred_check
              _
            $region42: #{mnist_net_forward.3} parent=39 // pred_check_branch
              %913 = sbr.rel target = $region44
            $region43: #{mnist_net_forward.3} parent=39 // pred_region
              // Predicated region
              $region63: #{mnist_net_forward.3} parent=43 // pred_check
                _
              $region64: #{mnist_net_forward.3} parent=43 // pred_check_branch
                %1025 = sbr.rel (0) target = $region66
              $region65: #{mnist_net_forward.3} parent=43 // pred_region
                %s1027 = ssub.s32 16, 1
                %s1028 = sshrl.u32 %s904, 5
                // While loop
                $region67: #{mnist_net_forward.3} parent=65 // loop_pre_header
                  _
                $region68: #{mnist_net_forward.3} parent=65 // loop_header
                  %s1030 = sphi 0, %s1032
                  %p1031 = scmp.ge.s32.totalorder %s1030, %s1028
                  %s1035 = sphi 0, %s1104
                  %s1036 = sphi %s897, %s1107
                  %s1037 = sphi %s908, %s1108
                $region69: #{mnist_net_forward.3} parent=65 // loop_header_branch
                  %1034 = sbr.rel (%p1031) target = $region73
                $region70: #{mnist_net_forward.3} parent=65 // loop_body
                  %v1038 = vld [vmem:[%s1036] sm:%s1027]
                  %1039 = vst [vmem:[%s1037] sm:%s1027] %v1038
                  %v1040 = vld [vmem:[%s1036 + $0x4] sm:%s1027]
                  %1041 = vst [vmem:[%s1037 + $0x4] sm:%s1027] %v1040
                  %v1042 = vld [vmem:[%s1036 + $0x8] sm:%s1027]
                  %1043 = vst [vmem:[%s1037 + $0x8] sm:%s1027] %v1042
                  %v1044 = vld [vmem:[%s1036 + $0xc] sm:%s1027]
                  %1045 = vst [vmem:[%s1037 + $0xc] sm:%s1027] %v1044
                  %v1046 = vld [vmem:[%s1036 + $0x10] sm:%s1027]
                  %1047 = vst [vmem:[%s1037 + $0x10] sm:%s1027] %v1046
                  %v1048 = vld [vmem:[%s1036 + $0x14] sm:%s1027]
                  %1049 = vst [vmem:[%s1037 + $0x14] sm:%s1027] %v1048
                  %v1050 = vld [vmem:[%s1036 + $0x18] sm:%s1027]
                  %1051 = vst [vmem:[%s1037 + $0x18] sm:%s1027] %v1050
                  %v1052 = vld [vmem:[%s1036 + $0x1c] sm:%s1027]
                  %1053 = vst [vmem:[%s1037 + $0x1c] sm:%s1027] %v1052
                  %v1054 = vld [vmem:[%s1036 + $0x20] sm:%s1027]
                  %1055 = vst [vmem:[%s1037 + $0x20] sm:%s1027] %v1054
                  %v1056 = vld [vmem:[%s1036 + $0x24] sm:%s1027]
                  %1057 = vst [vmem:[%s1037 + $0x24] sm:%s1027] %v1056
                  %v1058 = vld [vmem:[%s1036 + $0x28] sm:%s1027]
                  %1059 = vst [vmem:[%s1037 + $0x28] sm:%s1027] %v1058
                  %v1060 = vld [vmem:[%s1036 + $0x2c] sm:%s1027]
                  %1061 = vst [vmem:[%s1037 + $0x2c] sm:%s1027] %v1060
                  %v1062 = vld [vmem:[%s1036 + $0x30] sm:%s1027]
                  %1063 = vst [vmem:[%s1037 + $0x30] sm:%s1027] %v1062
                  %v1064 = vld [vmem:[%s1036 + $0x34] sm:%s1027]
                  %1065 = vst [vmem:[%s1037 + $0x34] sm:%s1027] %v1064
                  %v1066 = vld [vmem:[%s1036 + $0x38] sm:%s1027]
                  %1067 = vst [vmem:[%s1037 + $0x38] sm:%s1027] %v1066
                  %v1068 = vld [vmem:[%s1036 + $0x3c] sm:%s1027]
                  %1069 = vst [vmem:[%s1037 + $0x3c] sm:%s1027] %v1068
                  %v1070 = vld [vmem:[%s1036 + $0x40] sm:%s1027]
                  %1071 = vst [vmem:[%s1037 + $0x40] sm:%s1027] %v1070
                  %v1072 = vld [vmem:[%s1036 + $0x44] sm:%s1027]
                  %1073 = vst [vmem:[%s1037 + $0x44] sm:%s1027] %v1072
                  %v1074 = vld [vmem:[%s1036 + $0x48] sm:%s1027]
                  %1075 = vst [vmem:[%s1037 + $0x48] sm:%s1027] %v1074
                  %v1076 = vld [vmem:[%s1036 + $0x4c] sm:%s1027]
                  %1077 = vst [vmem:[%s1037 + $0x4c] sm:%s1027] %v1076
                  %v1078 = vld [vmem:[%s1036 + $0x50] sm:%s1027]
                  %1079 = vst [vmem:[%s1037 + $0x50] sm:%s1027] %v1078
                  %v1080 = vld [vmem:[%s1036 + $0x54] sm:%s1027]
                  %1081 = vst [vmem:[%s1037 + $0x54] sm:%s1027] %v1080
                  %v1082 = vld [vmem:[%s1036 + $0x58] sm:%s1027]
                  %1083 = vst [vmem:[%s1037 + $0x58] sm:%s1027] %v1082
                  %v1084 = vld [vmem:[%s1036 + $0x5c] sm:%s1027]
                  %1085 = vst [vmem:[%s1037 + $0x5c] sm:%s1027] %v1084
                  %v1086 = vld [vmem:[%s1036 + $0x60] sm:%s1027]
                  %1087 = vst [vmem:[%s1037 + $0x60] sm:%s1027] %v1086
                  %v1088 = vld [vmem:[%s1036 + $0x64] sm:%s1027]
                  %1089 = vst [vmem:[%s1037 + $0x64] sm:%s1027] %v1088
                  %v1090 = vld [vmem:[%s1036 + $0x68] sm:%s1027]
                  %1091 = vst [vmem:[%s1037 + $0x68] sm:%s1027] %v1090
                  %v1092 = vld [vmem:[%s1036 + $0x6c] sm:%s1027]
                  %1093 = vst [vmem:[%s1037 + $0x6c] sm:%s1027] %v1092
                  %v1094 = vld [vmem:[%s1036 + $0x70] sm:%s1027]
                  %1095 = vst [vmem:[%s1037 + $0x70] sm:%s1027] %v1094
                  %v1096 = vld [vmem:[%s1036 + $0x74] sm:%s1027]
                  %1097 = vst [vmem:[%s1037 + $0x74] sm:%s1027] %v1096
                  %v1098 = vld [vmem:[%s1036 + $0x78] sm:%s1027]
                  %1099 = vst [vmem:[%s1037 + $0x78] sm:%s1027] %v1098
                  %v1100 = vld [vmem:[%s1036 + $0x7c] sm:%s1027]
                  %1101 = vst [vmem:[%s1037 + $0x7c] sm:%s1027] %v1100
                  %s1102 = sadd.s32 1, %s1035
                  %p1103 = scmp.ge.s32.totalorder %s1102, %s1028
                  %s1104 = scalar_select %p1103, 0, %s1102
                  %s1105 = smul.u32 %s1104, 128
                  %s1106 = smul.u32 %s1104, 128
                  %s1107 = scalar_lea.vmem %s897, %s1105 [#allocation2]
                  %s1108 = scalar_lea.vmem %s908, %s1106
                $region71: #{mnist_net_forward.3} parent=65 // loop_footer
                  %s1032 = sadd.s32 %s1030, 1
                $region72: #{mnist_net_forward.3} parent=65 // loop_footer_branch
                  %1029 = sbr.rel target = $region68
                $region73: #{mnist_net_forward.3} parent=65 // loop_exit
                  _
                %s1109 = sshrl.u32 %s904, 5
                %s1110 = sand.u32 %s904, 31
                %s1111 = smul.u32 %s1109, 32
                %s1112 = smul.u32 4, %s1111
                %s1113 = scalar_lea.vmem %s897, %s1112 [#allocation2]
                %s1114 = smul.u32 4, %s1111
                %s1115 = scalar_lea.vmem %s908, %s1114
                // While loop
                $region74: #{mnist_net_forward.3} parent=65 // loop_pre_header
                  _
                $region75: #{mnist_net_forward.3} parent=65 // loop_header
                  %s1117 = sphi 0, %s1119
                  %p1118 = scmp.ge.s32.totalorder %s1117, %s1110
                  %s1122 = sphi 0, %s1129
                  %s1123 = sphi %s1113, %s1132
                  %s1124 = sphi %s1115, %s1133
                $region76: #{mnist_net_forward.3} parent=65 // loop_header_branch
                  %1121 = sbr.rel (%p1118) target = $region80
                $region77: #{mnist_net_forward.3} parent=65 // loop_body
                  %v1125 = vld [vmem:[%s1123] sm:%s1027]
                  %1126 = vst [vmem:[%s1124] sm:%s1027] %v1125
                  %s1127 = sadd.s32 1, %s1122
                  %p1128 = scmp.ge.s32.totalorder %s1127, %s1110
                  %s1129 = scalar_select %p1128, 0, %s1127
                  %s1130 = smul.u32 %s1129, 4
                  %s1131 = smul.u32 %s1129, 4
                  %s1132 = scalar_lea.vmem %s1113, %s1130 [#allocation2]
                  %s1133 = scalar_lea.vmem %s1115, %s1131
                $region78: #{mnist_net_forward.3} parent=65 // loop_footer
                  %s1119 = sadd.s32 %s1117, 1
                $region79: #{mnist_net_forward.3} parent=65 // loop_footer_branch
                  %1116 = sbr.rel target = $region75
                $region80: #{mnist_net_forward.3} parent=65 // loop_exit
                  _
              $region66: #{mnist_net_forward.3} parent=43 // pred_fallthru
                _
            $region44: #{mnist_net_forward.3} parent=39 // pred_fallthru
              _
            // Predicated region
            $region45: #{mnist_net_forward.3} parent=39 // pred_check
              _
            $region46: #{mnist_net_forward.3} parent=39 // pred_check_branch
              %915 = sbr.rel (0) target = $region48
            $region47: #{mnist_net_forward.3} parent=39 // pred_region
              %s917 = ssub.s32 16, 1
              %s918 = sshrl.u32 %s904, 5
              // While loop
              $region49: #{mnist_net_forward.3} parent=47 // loop_pre_header
                _
              $region50: #{mnist_net_forward.3} parent=47 // loop_header
                %s920 = sphi 0, %s922
                %p921 = scmp.ge.s32.totalorder %s920, %s918
                %s925 = sphi 0, %s994
                %s926 = sphi %s897, %s997
                %s927 = sphi %s908, %s998
              $region51: #{mnist_net_forward.3} parent=47 // loop_header_branch
                %924 = sbr.rel (%p921) target = $region55
              $region52: #{mnist_net_forward.3} parent=47 // loop_body
                %v928 = vld [vmem:[%s926] sm:%s917]
                %929 = vst [vmem:[%s927] sm:%s917] %v928
                %v930 = vld [vmem:[%s926 + $0x4] sm:%s917]
                %931 = vst [vmem:[%s927 + $0x4] sm:%s917] %v930
                %v932 = vld [vmem:[%s926 + $0x8] sm:%s917]
                %933 = vst [vmem:[%s927 + $0x8] sm:%s917] %v932
                %v934 = vld [vmem:[%s926 + $0xc] sm:%s917]
                %935 = vst [vmem:[%s927 + $0xc] sm:%s917] %v934
                %v936 = vld [vmem:[%s926 + $0x10] sm:%s917]
                %937 = vst [vmem:[%s927 + $0x10] sm:%s917] %v936
                %v938 = vld [vmem:[%s926 + $0x14] sm:%s917]
                %939 = vst [vmem:[%s927 + $0x14] sm:%s917] %v938
                %v940 = vld [vmem:[%s926 + $0x18] sm:%s917]
                %941 = vst [vmem:[%s927 + $0x18] sm:%s917] %v940
                %v942 = vld [vmem:[%s926 + $0x1c] sm:%s917]
                %943 = vst [vmem:[%s927 + $0x1c] sm:%s917] %v942
                %v944 = vld [vmem:[%s926 + $0x20] sm:%s917]
                %945 = vst [vmem:[%s927 + $0x20] sm:%s917] %v944
                %v946 = vld [vmem:[%s926 + $0x24] sm:%s917]
                %947 = vst [vmem:[%s927 + $0x24] sm:%s917] %v946
                %v948 = vld [vmem:[%s926 + $0x28] sm:%s917]
                %949 = vst [vmem:[%s927 + $0x28] sm:%s917] %v948
                %v950 = vld [vmem:[%s926 + $0x2c] sm:%s917]
                %951 = vst [vmem:[%s927 + $0x2c] sm:%s917] %v950
                %v952 = vld [vmem:[%s926 + $0x30] sm:%s917]
                %953 = vst [vmem:[%s927 + $0x30] sm:%s917] %v952
                %v954 = vld [vmem:[%s926 + $0x34] sm:%s917]
                %955 = vst [vmem:[%s927 + $0x34] sm:%s917] %v954
                %v956 = vld [vmem:[%s926 + $0x38] sm:%s917]
                %957 = vst [vmem:[%s927 + $0x38] sm:%s917] %v956
                %v958 = vld [vmem:[%s926 + $0x3c] sm:%s917]
                %959 = vst [vmem:[%s927 + $0x3c] sm:%s917] %v958
                %v960 = vld [vmem:[%s926 + $0x40] sm:%s917]
                %961 = vst [vmem:[%s927 + $0x40] sm:%s917] %v960
                %v962 = vld [vmem:[%s926 + $0x44] sm:%s917]
                %963 = vst [vmem:[%s927 + $0x44] sm:%s917] %v962
                %v964 = vld [vmem:[%s926 + $0x48] sm:%s917]
                %965 = vst [vmem:[%s927 + $0x48] sm:%s917] %v964
                %v966 = vld [vmem:[%s926 + $0x4c] sm:%s917]
                %967 = vst [vmem:[%s927 + $0x4c] sm:%s917] %v966
                %v968 = vld [vmem:[%s926 + $0x50] sm:%s917]
                %969 = vst [vmem:[%s927 + $0x50] sm:%s917] %v968
                %v970 = vld [vmem:[%s926 + $0x54] sm:%s917]
                %971 = vst [vmem:[%s927 + $0x54] sm:%s917] %v970
                %v972 = vld [vmem:[%s926 + $0x58] sm:%s917]
                %973 = vst [vmem:[%s927 + $0x58] sm:%s917] %v972
                %v974 = vld [vmem:[%s926 + $0x5c] sm:%s917]
                %975 = vst [vmem:[%s927 + $0x5c] sm:%s917] %v974
                %v976 = vld [vmem:[%s926 + $0x60] sm:%s917]
                %977 = vst [vmem:[%s927 + $0x60] sm:%s917] %v976
                %v978 = vld [vmem:[%s926 + $0x64] sm:%s917]
                %979 = vst [vmem:[%s927 + $0x64] sm:%s917] %v978
                %v980 = vld [vmem:[%s926 + $0x68] sm:%s917]
                %981 = vst [vmem:[%s927 + $0x68] sm:%s917] %v980
                %v982 = vld [vmem:[%s926 + $0x6c] sm:%s917]
                %983 = vst [vmem:[%s927 + $0x6c] sm:%s917] %v982
                %v984 = vld [vmem:[%s926 + $0x70] sm:%s917]
                %985 = vst [vmem:[%s927 + $0x70] sm:%s917] %v984
                %v986 = vld [vmem:[%s926 + $0x74] sm:%s917]
                %987 = vst [vmem:[%s927 + $0x74] sm:%s917] %v986
                %v988 = vld [vmem:[%s926 + $0x78] sm:%s917]
                %989 = vst [vmem:[%s927 + $0x78] sm:%s917] %v988
                %v990 = vld [vmem:[%s926 + $0x7c] sm:%s917]
                %991 = vst [vmem:[%s927 + $0x7c] sm:%s917] %v990
                %s992 = sadd.s32 1, %s925
                %p993 = scmp.ge.s32.totalorder %s992, %s918
                %s994 = scalar_select %p993, 0, %s992
                %s995 = smul.u32 %s994, 128
                %s996 = smul.u32 %s994, 128
                %s997 = scalar_lea.vmem %s897, %s995 [#allocation2]
                %s998 = scalar_lea.vmem %s908, %s996
              $region53: #{mnist_net_forward.3} parent=47 // loop_footer
                %s922 = sadd.s32 %s920, 1
              $region54: #{mnist_net_forward.3} parent=47 // loop_footer_branch
                %919 = sbr.rel target = $region50
              $region55: #{mnist_net_forward.3} parent=47 // loop_exit
                _
              %s999 = sshrl.u32 %s904, 5
              %s1000 = sand.u32 %s904, 31
              %s1001 = smul.u32 %s999, 32
              %s1002 = smul.u32 4, %s1001
              %s1003 = scalar_lea.vmem %s897, %s1002 [#allocation2]
              %s1004 = smul.u32 4, %s1001
              %s1005 = scalar_lea.vmem %s908, %s1004
              // While loop
              $region56: #{mnist_net_forward.3} parent=47 // loop_pre_header
                _
              $region57: #{mnist_net_forward.3} parent=47 // loop_header
                %s1007 = sphi 0, %s1009
                %p1008 = scmp.ge.s32.totalorder %s1007, %s1000
                %s1012 = sphi 0, %s1019
                %s1013 = sphi %s1003, %s1022
                %s1014 = sphi %s1005, %s1023
              $region58: #{mnist_net_forward.3} parent=47 // loop_header_branch
                %1011 = sbr.rel (%p1008) target = $region62
              $region59: #{mnist_net_forward.3} parent=47 // loop_body
                %v1015 = vld [vmem:[%s1013] sm:%s917]
                %1016 = vst [vmem:[%s1014] sm:%s917] %v1015
                %s1017 = sadd.s32 1, %s1012
                %p1018 = scmp.ge.s32.totalorder %s1017, %s1000
                %s1019 = scalar_select %p1018, 0, %s1017
                %s1020 = smul.u32 %s1019, 4
                %s1021 = smul.u32 %s1019, 4
                %s1022 = scalar_lea.vmem %s1003, %s1020 [#allocation2]
                %s1023 = scalar_lea.vmem %s1005, %s1021
              $region60: #{mnist_net_forward.3} parent=47 // loop_footer
                %s1009 = sadd.s32 %s1007, 1
              $region61: #{mnist_net_forward.3} parent=47 // loop_footer_branch
                %1006 = sbr.rel target = $region57
              $region62: #{mnist_net_forward.3} parent=47 // loop_exit
                _
            $region48: #{mnist_net_forward.3} parent=39 // pred_fallthru
              _
          $region40: #{mnist_net_forward.3} parent=35 // pred_fallthru
            _
          %1134 = vnop
        $region36: #{mnist_net_forward.3} parent=31 // pred_fallthru
          _
      $region32: #{mnist_net_forward.3} parent=5 // pred_fallthru
        _
      %p1135 = scmp.le.s32.totalorder 2, %s9
      // Predicated region
      $region81: #{mnist_net_forward.3} parent=5 // pred_check
        %p1136 = pneg %p1135
      $region82: #{mnist_net_forward.3} parent=5 // pred_check_branch
        %1138 = sbr.rel (%p1136) target = $region84
      $region83: #{mnist_net_forward.3} parent=5 // pred_region
        %s1139 = ssub.s32 %s9, 2
        // Predicated region
        $region85: #{mnist_net_forward.3} parent=83 // pred_check
          %p1140 = pneg %p106
        $region86: #{mnist_net_forward.3} parent=83 // pred_check_branch
          %1142 = sbr.rel (%p1140) target = $region88
        $region87: #{mnist_net_forward.3} parent=83 // pred_region
          %s1143 = sand.u32 %s91, 1
          %s1144 = sand.u32 %s91, 1
          %s1145 = smul.addr %s1144, 256
          %s1146 = scalar_lea.vmem [#allocation2], %s1145
        $region88: #{mnist_net_forward.3} parent=83 // pred_fallthru
          _
      $region84: #{mnist_net_forward.3} parent=5 // pred_fallthru
        _
    $region6: #{mnist_net_forward.3} parent=1 // loop_footer
      %s13 = sadd.s32 1, %s9
    $region7: #{mnist_net_forward.3} parent=1 // loop_footer_branch
      %8 = sbr.rel target = $region3
    $region8: #{mnist_net_forward.3} parent=1 // loop_exit
      _

// kernel: mnist_net_forward.4
$region0: #{mnist_net_forward.4}
  #allocation0 [shape = 'u32[]', space=smem, size = 0x4, offset = 0x4, fixed_abs, tag = 'smem constant byte address 0x4 - core index']
  #allocation1 [shape = 'u32[72,128]{1,0:T(1,128)}', space=vmem, size = 0x9000, scoped, tag = 'internal scratch']
  %s0 = inlined_call_operand.vmem [shape: bf16[4,288,144], index: 0, kind: input, shape index: {}]
  %s1 = inlined_call_operand.vmem [shape: bf16[144,32], index: 1, kind: input, shape index: {}]
  %s2 = inlined_call_operand.vmem [shape: f32[1,32], index: 2, kind: input, shape index: {}]
  %s3 = inlined_call_operand.vmem [shape: bf16[288,32], index: 3, kind: output, shape index: {}]
  %s4 = sld [smem:[#allocation0]]
  $region22: #{mnist_net_forward.4} parent=0
    _
  %s6 = ssub.s32 1, %s4
  %s7 = scalar_select 0, %s6, %s4
  // Predicated region
  $region2: #{mnist_net_forward.4} parent=0 // pred_check
    _
  $region3: #{mnist_net_forward.4} parent=0 // pred_check_branch
    %9 = sbr.rel (0) target = $region5
  $region4: #{mnist_net_forward.4} parent=0 // pred_region
    _
  $region5: #{mnist_net_forward.4} parent=0 // pred_fallthru
    _
  // Predicated region
  $region6: #{mnist_net_forward.4} parent=0 // pred_check
    _
  $region7: #{mnist_net_forward.4} parent=0 // pred_check_branch
    %11 = sbr.rel (0) target = $region9
  $region8: #{mnist_net_forward.4} parent=0 // pred_region
    _
  $region9: #{mnist_net_forward.4} parent=0 // pred_fallthru
    _
  // Predicated region
  $region10: #{mnist_net_forward.4} parent=0 // pred_check
    _
  $region11: #{mnist_net_forward.4} parent=0 // pred_check_branch
    %13 = sbr.rel (0) target = $region13
  $region12: #{mnist_net_forward.4} parent=0 // pred_region
    _
  $region13: #{mnist_net_forward.4} parent=0 // pred_fallthru
    _
  %v15 = vld [vmem:[%s1] sm:$0xf]
  %v16 = vld [vmem:[%s1 + $0x4] sm:$0xf]
  %v17 = vld [vmem:[%s1 + $0x8] sm:$0xf]
  %v18 = vld [vmem:[%s1 + $0xc] sm:$0xf]
  %v19 = vld [vmem:[%s1 + $0x10] sm:$0xf]
  %v20 = vld [vmem:[%s1 + $0x14] sm:$0xf]
  %v21 = vld [vmem:[%s1 + $0x18] sm:$0xf]
  %v22 = vld [vmem:[%s1 + $0x1c] sm:$0xf]
  %v23 = vld [vmem:[%s1 + $0x20] sm:$0xf]
  %v24 = vld [vmem:[%s1 + $0x24] sm:$0xf]
  %v25 = vld [vmem:[%s1 + $0x28] sm:$0xf]
  %v26 = vld [vmem:[%s1 + $0x2c] sm:$0xf]
  %v27 = vld [vmem:[%s1 + $0x30] sm:$0xf]
  %v28 = vld [vmem:[%s1 + $0x34] sm:$0xf]
  %v29 = vld [vmem:[%s1 + $0x38] sm:$0xf]
  %v30 = vld [vmem:[%s1 + $0x3c] sm:$0xf]
  %v31 = vld [vmem:[%s1 + $0x40] sm:$0xf]
  %v32 = vld [vmem:[%s1 + $0x44] sm:$0xf]
  %v33 = vld [vmem:[%s0] sm:$0xff]
  %v34 = vld [vmem:[%s0 + $0x8] sm:$0xff]
  %v35 = vld [vmem:[%s0 + $0x10] sm:$0xff]
  %v36 = vld [vmem:[%s0 + $0x18] sm:$0xff]
  %v37 = vld [vmem:[%s0 + $0x20] sm:$0xff]
  %v38 = vld [vmem:[%s0 + $0x28] sm:$0xff]
  %v39 = vld [vmem:[%s0 + $0x30] sm:$0xff]
  %v40 = vld [vmem:[%s0 + $0x38] sm:$0xff]
  %v41 = vld [vmem:[%s0 + $0x40] sm:$0xff]
  %v42 = vld [vmem:[%s0 + $0x48] sm:$0xff]
  %v43 = vld [vmem:[%s0 + $0x50] sm:$0xff]
  %v44 = vld [vmem:[%s0 + $0x58] sm:$0xff]
  %v45 = vld [vmem:[%s0 + $0x60] sm:$0xff]
  %v46 = vld [vmem:[%s0 + $0x68] sm:$0xff]
  %v47 = vld [vmem:[%s0 + $0x70] sm:$0xff]
  %v48 = vld [vmem:[%s0 + $0x78] sm:$0xff]
  %v49 = vld [vmem:[%s0 + $0x80] sm:$0xff]
  %v50 = vld [vmem:[%s0 + $0x88] sm:$0xff]
  %v51 = vld [vmem:[%s0 + $0x90] sm:$0xff]
  %v52 = vld [vmem:[%s0 + $0x98] sm:$0xff]
  %v53 = vld [vmem:[%s0 + $0xa0] sm:$0xff]
  %v54 = vld [vmem:[%s0 + $0xa8] sm:$0xff]
  %v55 = vld [vmem:[%s0 + $0xb0] sm:$0xff]
  %v56 = vld [vmem:[%s0 + $0xb8] sm:$0xff]
  %v57 = vld [vmem:[%s0 + $0xc0] sm:$0xff]
  %v58 = vld [vmem:[%s0 + $0xc8] sm:$0xff]
  %v59 = vld [vmem:[%s0 + $0xd0] sm:$0xff]
  %v60 = vld [vmem:[%s0 + $0xd8] sm:$0xff]
  %v61 = vld [vmem:[%s0 + $0xe0] sm:$0xff]
  %v62 = vld [vmem:[%s0 + $0xe8] sm:$0xff]
  %v63 = vld [vmem:[%s0 + $0xf0] sm:$0xff]
  %v64 = vld [vmem:[%s0 + $0xf8] sm:$0xff]
  %v65 = vld [vmem:[%s0 + $0x100] sm:$0xff]
  %v66 = vld [vmem:[%s0 + $0x108] sm:$0xff]
  %v67 = vld [vmem:[%s0 + $0x110] sm:$0xff]
  %v68 = vld [vmem:[%s0 + $0x118] sm:$0xff]
  %v105 = vunpack.c.l.b16 %v33
  %v106 = vunpack.c.h.b16 %v33
  %v107 = vunpack.c.l.b16 %v34
  %v108 = vunpack.c.h.b16 %v34
  %v109 = vunpack.c.l.b16 %v35
  %v110 = vunpack.c.h.b16 %v35
  %v111 = vunpack.c.l.b16 %v36
  %v112 = vunpack.c.h.b16 %v36
  %v113 = vunpack.c.l.b16 %v37
  %v114 = vunpack.c.h.b16 %v37
  %v115 = vunpack.c.l.b16 %v38
  %v116 = vunpack.c.h.b16 %v38
  %v117 = vunpack.c.l.b16 %v39
  %v118 = vunpack.c.h.b16 %v39
  %v119 = vunpack.c.l.b16 %v40
  %v120 = vunpack.c.h.b16 %v40
  %v121 = vunpack.c.l.b16 %v41
  %v122 = vunpack.c.h.b16 %v41
  %v123 = vunpack.c.l.b16 %v42
  %v124 = vunpack.c.h.b16 %v42
  %v125 = vunpack.c.l.b16 %v43
  %v126 = vunpack.c.h.b16 %v43
  %v127 = vunpack.c.l.b16 %v44
  %v128 = vunpack.c.h.b16 %v44
  %v129 = vunpack.c.l.b16 %v45
  %v130 = vunpack.c.h.b16 %v45
  %v131 = vunpack.c.l.b16 %v46
  %v132 = vunpack.c.h.b16 %v46
  %v133 = vunpack.c.l.b16 %v47
  %v134 = vunpack.c.h.b16 %v47
  %v135 = vunpack.c.l.b16 %v48
  %v136 = vunpack.c.h.b16 %v48
  %v137 = vunpack.c.l.b16 %v49
  %v138 = vunpack.c.h.b16 %v49
  %v139 = vunpack.c.l.b16 %v50
  %v140 = vunpack.c.h.b16 %v50
  %v141 = vunpack.c.l.b16 %v51
  %v142 = vunpack.c.h.b16 %v51
  %v143 = vunpack.c.l.b16 %v52
  %v144 = vunpack.c.h.b16 %v52
  %v145 = vunpack.c.l.b16 %v53
  %v146 = vunpack.c.h.b16 %v53
  %v147 = vunpack.c.l.b16 %v54
  %v148 = vunpack.c.h.b16 %v54
  %v149 = vunpack.c.l.b16 %v55
  %v150 = vunpack.c.h.b16 %v55
  %v151 = vunpack.c.l.b16 %v56
  %v152 = vunpack.c.h.b16 %v56
  %v153 = vunpack.c.l.b16 %v57
  %v154 = vunpack.c.h.b16 %v57
  %v155 = vunpack.c.l.b16 %v58
  %v156 = vunpack.c.h.b16 %v58
  %v157 = vunpack.c.l.b16 %v59
  %v158 = vunpack.c.h.b16 %v59
  %v159 = vunpack.c.l.b16 %v60
  %v160 = vunpack.c.h.b16 %v60
  %v161 = vunpack.c.l.b16 %v61
  %v162 = vunpack.c.h.b16 %v61
  %v163 = vunpack.c.l.b16 %v62
  %v164 = vunpack.c.h.b16 %v62
  %v165 = vunpack.c.l.b16 %v63
  %v166 = vunpack.c.h.b16 %v63
  %v167 = vunpack.c.l.b16 %v64
  %v168 = vunpack.c.h.b16 %v64
  %v169 = vunpack.c.l.b16 %v65
  %v170 = vunpack.c.h.b16 %v65
  %v171 = vunpack.c.l.b16 %v66
  %v172 = vunpack.c.h.b16 %v66
  %v173 = vunpack.c.l.b16 %v67
  %v174 = vunpack.c.h.b16 %v67
  %v175 = vunpack.c.l.b16 %v68
  %v176 = vunpack.c.h.b16 %v68
  %v177 = vpack.c.b16 %v107, %v105
  %v178 = vpack.c.b16 %v108, %v106
  %v179 = vpack.c.b16 %v111, %v109
  %v180 = vpack.c.b16 %v112, %v110
  %v181 = vpack.c.b16 %v115, %v113
  %v182 = vpack.c.b16 %v116, %v114
  %v183 = vpack.c.b16 %v119, %v117
  %v184 = vpack.c.b16 %v120, %v118
  %v185 = vpack.c.b16 %v123, %v121
  %v186 = vpack.c.b16 %v124, %v122
  %v187 = vpack.c.b16 %v127, %v125
  %v188 = vpack.c.b16 %v128, %v126
  %v189 = vpack.c.b16 %v131, %v129
  %v190 = vpack.c.b16 %v132, %v130
  %v191 = vpack.c.b16 %v135, %v133
  %v192 = vpack.c.b16 %v136, %v134
  %v193 = vpack.c.b16 %v139, %v137
  %v194 = vpack.c.b16 %v140, %v138
  %v195 = vpack.c.b16 %v143, %v141
  %v196 = vpack.c.b16 %v144, %v142
  %v197 = vpack.c.b16 %v147, %v145
  %v198 = vpack.c.b16 %v148, %v146
  %v199 = vpack.c.b16 %v151, %v149
  %v200 = vpack.c.b16 %v152, %v150
  %v201 = vpack.c.b16 %v155, %v153
  %v202 = vpack.c.b16 %v156, %v154
  %v203 = vpack.c.b16 %v159, %v157
  %v204 = vpack.c.b16 %v160, %v158
  %v205 = vpack.c.b16 %v163, %v161
  %v206 = vpack.c.b16 %v164, %v162
  %v207 = vpack.c.b16 %v167, %v165
  %v208 = vpack.c.b16 %v168, %v166
  %v209 = vpack.c.b16 %v171, %v169
  %v210 = vpack.c.b16 %v172, %v170
  %v211 = vpack.c.b16 %v175, %v173
  %v212 = vpack.c.b16 %v176, %v174
  %v249 = vunpack.c.l.b16 %v15
  %v250 = vunpack.c.l.b16 %v16
  %v251 = vunpack.c.l.b16 %v17
  %v252 = vunpack.c.l.b16 %v18
  %v253 = vunpack.c.l.b16 %v19
  %v254 = vunpack.c.l.b16 %v20
  %v255 = vunpack.c.l.b16 %v21
  %v256 = vunpack.c.l.b16 %v22
  %v257 = vunpack.c.l.b16 %v23
  %v258 = vunpack.c.l.b16 %v24
  %v259 = vunpack.c.l.b16 %v25
  %v260 = vunpack.c.l.b16 %v26
  %v261 = vunpack.c.l.b16 %v27
  %v262 = vunpack.c.l.b16 %v28
  %v263 = vunpack.c.l.b16 %v29
  %v264 = vunpack.c.l.b16 %v30
  %v265 = vunpack.c.l.b16 %v31
  %v266 = vunpack.c.l.b16 %v32
  %v267 = vpack.c.b16 %v250, %v249
  %v268 = vpack.c.b16 %v252, %v251
  %v269 = vpack.c.b16 %v254, %v253
  %v270 = vpack.c.b16 %v256, %v255
  %v271 = vpack.c.b16 %v258, %v257
  %v272 = vpack.c.b16 %v260, %v259
  %v273 = vpack.c.b16 %v262, %v261
  %v274 = vpack.c.b16 %v264, %v263
  %v275 = vpack.c.b16 %v266, %v265
  %vm285 = vcmask 130048
  %v287 = vsel %vm285, %v178, 0
  %v290 = vsel %vm285, %v180, 0
  %v293 = vsel %vm285, %v182, 0
  %v296 = vsel %vm285, %v184, 0
  %v299 = vsel %vm285, %v186, 0
  %v302 = vsel %vm285, %v188, 0
  %v305 = vsel %vm285, %v190, 0
  %v308 = vsel %vm285, %v192, 0
  %v311 = vsel %vm285, %v194, 0
  %v314 = vsel %vm285, %v196, 0
  %v317 = vsel %vm285, %v198, 0
  %v320 = vsel %vm285, %v200, 0
  %v323 = vsel %vm285, %v202, 0
  %v326 = vsel %vm285, %v204, 0
  %v329 = vsel %vm285, %v206, 0
  %v332 = vsel %vm285, %v208, 0
  %v335 = vsel %vm285, %v210, 0
  %v338 = vsel %vm285, %v212, 0
  %340 = vmatpush.bf16.msra.mxu0 %v274
  %341 = vmatpush.bf16.msra.mxu0 %v273
  %342 = vmatpush.bf16.msra.mxu0 %v272
  %343 = vmatpush.bf16.msra.mxu0 %v271
  %344 = vmatpush.bf16.msra.mxu0 %v270
  %345 = vmatpush.bf16.msra.mxu0 %v269
  %346 = vmatpush.bf16.msra.mxu0 %v268
  %347 = vmatpush.bf16.msra.mxu0 %v267
  %348 = vmatmul.bf16.gmra.mxu0 %v177
  %v349 = vpop.f32.mrf.mxu0
  %v350 = vadd.f32 0.0, %v349
  %v351 = vpop.f32.mrf.mxu0
  %v352 = vadd.f32 0.0, %v351
  %353 = vmatmul.bf16.gmra.mxu0 %v179
  %v354 = vpop.f32.mrf.mxu0
  %v355 = vadd.f32 0.0, %v354
  %v356 = vpop.f32.mrf.mxu0
  %v357 = vadd.f32 0.0, %v356
  %358 = vmatmul.bf16.gmra.mxu0 %v181
  %v359 = vpop.f32.mrf.mxu0
  %v360 = vadd.f32 0.0, %v359
  %v361 = vpop.f32.mrf.mxu0
  %v362 = vadd.f32 0.0, %v361
  %363 = vmatmul.bf16.gmra.mxu0 %v183
  %v364 = vpop.f32.mrf.mxu0
  %v365 = vadd.f32 0.0, %v364
  %v366 = vpop.f32.mrf.mxu0
  %v367 = vadd.f32 0.0, %v366
  %368 = vmatmul.bf16.gmra.mxu0 %v185
  %v369 = vpop.f32.mrf.mxu0
  %v370 = vadd.f32 0.0, %v369
  %v371 = vpop.f32.mrf.mxu0
  %v372 = vadd.f32 0.0, %v371
  %373 = vmatmul.bf16.gmra.mxu0 %v187
  %v374 = vpop.f32.mrf.mxu0
  %v375 = vadd.f32 0.0, %v374
  %v376 = vpop.f32.mrf.mxu0
  %v377 = vadd.f32 0.0, %v376
  %378 = vmatmul.bf16.gmra.mxu0 %v189
  %v379 = vpop.f32.mrf.mxu0
  %v380 = vadd.f32 0.0, %v379
  %v381 = vpop.f32.mrf.mxu0
  %v382 = vadd.f32 0.0, %v381
  %383 = vmatmul.bf16.gmra.mxu0 %v191
  %v384 = vpop.f32.mrf.mxu0
  %v385 = vadd.f32 0.0, %v384
  %v386 = vpop.f32.mrf.mxu0
  %v387 = vadd.f32 0.0, %v386
  %388 = vmatmul.bf16.gmra.mxu0 %v193
  %v389 = vpop.f32.mrf.mxu0
  %v390 = vadd.f32 0.0, %v389
  %v391 = vpop.f32.mrf.mxu0
  %v392 = vadd.f32 0.0, %v391
  %393 = vmatmul.bf16.gmra.mxu0 %v195
  %v394 = vpop.f32.mrf.mxu0
  %v395 = vadd.f32 0.0, %v394
  %v396 = vpop.f32.mrf.mxu0
  %v397 = vadd.f32 0.0, %v396
  %398 = vmatmul.bf16.gmra.mxu0 %v197
  %v399 = vpop.f32.mrf.mxu0
  %v400 = vadd.f32 0.0, %v399
  %v401 = vpop.f32.mrf.mxu0
  %v402 = vadd.f32 0.0, %v401
  %403 = vmatmul.bf16.gmra.mxu0 %v199
  %v404 = vpop.f32.mrf.mxu0
  %v405 = vadd.f32 0.0, %v404
  %v406 = vpop.f32.mrf.mxu0
  %v407 = vadd.f32 0.0, %v406
  %408 = vmatmul.bf16.gmra.mxu0 %v201
  %v409 = vpop.f32.mrf.mxu0
  %v410 = vadd.f32 0.0, %v409
  %v411 = vpop.f32.mrf.mxu0
  %v412 = vadd.f32 0.0, %v411
  %413 = vmatmul.bf16.gmra.mxu0 %v203
  %v414 = vpop.f32.mrf.mxu0
  %v415 = vadd.f32 0.0, %v414
  %v416 = vpop.f32.mrf.mxu0
  %v417 = vadd.f32 0.0, %v416
  %418 = vmatmul.bf16.gmra.mxu0 %v205
  %v419 = vpop.f32.mrf.mxu0
  %v420 = vadd.f32 0.0, %v419
  %v421 = vpop.f32.mrf.mxu0
  %v422 = vadd.f32 0.0, %v421
  %423 = vmatmul.bf16.gmra.mxu0 %v207
  %v424 = vpop.f32.mrf.mxu0
  %v425 = vadd.f32 0.0, %v424
  %v426 = vpop.f32.mrf.mxu0
  %v427 = vadd.f32 0.0, %v426
  %428 = vmatmul.bf16.gmra.mxu0 %v209
  %v429 = vpop.f32.mrf.mxu0
  %v430 = vadd.f32 0.0, %v429
  %v431 = vpop.f32.mrf.mxu0
  %v432 = vadd.f32 0.0, %v431
  %433 = vmatmul.bf16.gmra.mxu0 %v211
  %v434 = vpop.f32.mrf.mxu0
  %v435 = vadd.f32 0.0, %v434
  %v436 = vpop.f32.mrf.mxu0
  %v437 = vadd.f32 0.0, %v436
  %438 = vdwg.mxu0
  %439 = vmatpush.bf16.msra.mxu0 0
  %440 = vmatpush.bf16.msra.mxu0 0
  %441 = vmatpush.bf16.msra.mxu0 0
  %442 = vmatpush.bf16.msra.mxu0 0
  %443 = vmatpush.bf16.msra.mxu0 0
  %444 = vmatpush.bf16.msra.mxu0 0
  %445 = vmatpush.bf16.msra.mxu0 0
  %446 = vmatpush.bf16.msra.mxu0 %v275
  %447 = vmatmul.bf16.gmra.mxu0 %v287
  %v448 = vpop.f32.mrf.mxu0
  %v449 = vadd.f32 %v350, %v448
  %v450 = vpop.f32.mrf.mxu0
  %v451 = vadd.f32 %v352, %v450
  %452 = vmatmul.bf16.gmra.mxu0 %v290
  %v453 = vpop.f32.mrf.mxu0
  %v454 = vadd.f32 %v355, %v453
  %v455 = vpop.f32.mrf.mxu0
  %v456 = vadd.f32 %v357, %v455
  %457 = vmatmul.bf16.gmra.mxu0 %v293
  %v458 = vpop.f32.mrf.mxu0
  %v459 = vadd.f32 %v360, %v458
  %v460 = vpop.f32.mrf.mxu0
  %v461 = vadd.f32 %v362, %v460
  %462 = vmatmul.bf16.gmra.mxu0 %v296
  %v463 = vpop.f32.mrf.mxu0
  %v464 = vadd.f32 %v365, %v463
  %v465 = vpop.f32.mrf.mxu0
  %v466 = vadd.f32 %v367, %v465
  %467 = vmatmul.bf16.gmra.mxu0 %v299
  %v468 = vpop.f32.mrf.mxu0
  %v469 = vadd.f32 %v370, %v468
  %v470 = vpop.f32.mrf.mxu0
  %v471 = vadd.f32 %v372, %v470
  %472 = vmatmul.bf16.gmra.mxu0 %v302
  %v473 = vpop.f32.mrf.mxu0
  %v474 = vadd.f32 %v375, %v473
  %v475 = vpop.f32.mrf.mxu0
  %v476 = vadd.f32 %v377, %v475
  %477 = vmatmul.bf16.gmra.mxu0 %v305
  %v478 = vpop.f32.mrf.mxu0
  %v479 = vadd.f32 %v380, %v478
  %v480 = vpop.f32.mrf.mxu0
  %v481 = vadd.f32 %v382, %v480
  %482 = vmatmul.bf16.gmra.mxu0 %v308
  %v483 = vpop.f32.mrf.mxu0
  %v484 = vadd.f32 %v385, %v483
  %v485 = vpop.f32.mrf.mxu0
  %v486 = vadd.f32 %v387, %v485
  %487 = vmatmul.bf16.gmra.mxu0 %v311
  %v488 = vpop.f32.mrf.mxu0
  %v489 = vadd.f32 %v390, %v488
  %v490 = vpop.f32.mrf.mxu0
  %v491 = vadd.f32 %v392, %v490
  %492 = vmatmul.bf16.gmra.mxu0 %v314
  %v493 = vpop.f32.mrf.mxu0
  %v494 = vadd.f32 %v395, %v493
  %v495 = vpop.f32.mrf.mxu0
  %v496 = vadd.f32 %v397, %v495
  %497 = vmatmul.bf16.gmra.mxu0 %v317
  %v498 = vpop.f32.mrf.mxu0
  %v499 = vadd.f32 %v400, %v498
  %v500 = vpop.f32.mrf.mxu0
  %v501 = vadd.f32 %v402, %v500
  %502 = vmatmul.bf16.gmra.mxu0 %v320
  %v503 = vpop.f32.mrf.mxu0
  %v504 = vadd.f32 %v405, %v503
  %v505 = vpop.f32.mrf.mxu0
  %v506 = vadd.f32 %v407, %v505
  %507 = vmatmul.bf16.gmra.mxu0 %v323
  %v508 = vpop.f32.mrf.mxu0
  %v509 = vadd.f32 %v410, %v508
  %v510 = vpop.f32.mrf.mxu0
  %v511 = vadd.f32 %v412, %v510
  %512 = vmatmul.bf16.gmra.mxu0 %v326
  %v513 = vpop.f32.mrf.mxu0
  %v514 = vadd.f32 %v415, %v513
  %v515 = vpop.f32.mrf.mxu0
  %v516 = vadd.f32 %v417, %v515
  %517 = vmatmul.bf16.gmra.mxu0 %v329
  %v518 = vpop.f32.mrf.mxu0
  %v519 = vadd.f32 %v420, %v518
  %v520 = vpop.f32.mrf.mxu0
  %v521 = vadd.f32 %v422, %v520
  %522 = vmatmul.bf16.gmra.mxu0 %v332
  %v523 = vpop.f32.mrf.mxu0
  %v524 = vadd.f32 %v425, %v523
  %v525 = vpop.f32.mrf.mxu0
  %v526 = vadd.f32 %v427, %v525
  %527 = vmatmul.bf16.gmra.mxu0 %v335
  %v528 = vpop.f32.mrf.mxu0
  %v529 = vadd.f32 %v430, %v528
  %v530 = vpop.f32.mrf.mxu0
  %v531 = vadd.f32 %v432, %v530
  %532 = vmatmul.bf16.gmra.mxu0 %v338
  %v533 = vpop.f32.mrf.mxu0
  %v534 = vadd.f32 %v435, %v533
  %v535 = vpop.f32.mrf.mxu0
  %v536 = vadd.f32 %v437, %v535
  %537 = vdwg.mxu0
  %s538 = scalar_lea.vmem %s0, 288
  %v539 = vld [vmem:[%s538] sm:$0xff]
  %v540 = vld [vmem:[%s538 + $0x8] sm:$0xff]
  %v541 = vld [vmem:[%s538 + $0x10] sm:$0xff]
  %v542 = vld [vmem:[%s538 + $0x18] sm:$0xff]
  %v543 = vld [vmem:[%s538 + $0x20] sm:$0xff]
  %v544 = vld [vmem:[%s538 + $0x28] sm:$0xff]
  %v545 = vld [vmem:[%s538 + $0x30] sm:$0xff]
  %v546 = vld [vmem:[%s538 + $0x38] sm:$0xff]
  %v547 = vld [vmem:[%s538 + $0x40] sm:$0xff]
  %v548 = vld [vmem:[%s538 + $0x48] sm:$0xff]
  %v549 = vld [vmem:[%s538 + $0x50] sm:$0xff]
  %v550 = vld [vmem:[%s538 + $0x58] sm:$0xff]
  %v551 = vld [vmem:[%s538 + $0x60] sm:$0xff]
  %v552 = vld [vmem:[%s538 + $0x68] sm:$0xff]
  %v553 = vld [vmem:[%s538 + $0x70] sm:$0xff]
  %v554 = vld [vmem:[%s538 + $0x78] sm:$0xff]
  %v555 = vld [vmem:[%s538 + $0x80] sm:$0xff]
  %v556 = vld [vmem:[%s538 + $0x88] sm:$0xff]
  %v557 = vld [vmem:[%s538 + $0x90] sm:$0xff]
  %v558 = vld [vmem:[%s538 + $0x98] sm:$0xff]
  %v559 = vld [vmem:[%s538 + $0xa0] sm:$0xff]
  %v560 = vld [vmem:[%s538 + $0xa8] sm:$0xff]
  %v561 = vld [vmem:[%s538 + $0xb0] sm:$0xff]
  %v562 = vld [vmem:[%s538 + $0xb8] sm:$0xff]
  %v563 = vld [vmem:[%s538 + $0xc0] sm:$0xff]
  %v564 = vld [vmem:[%s538 + $0xc8] sm:$0xff]
  %v565 = vld [vmem:[%s538 + $0xd0] sm:$0xff]
  %v566 = vld [vmem:[%s538 + $0xd8] sm:$0xff]
  %v567 = vld [vmem:[%s538 + $0xe0] sm:$0xff]
  %v568 = vld [vmem:[%s538 + $0xe8] sm:$0xff]
  %v569 = vld [vmem:[%s538 + $0xf0] sm:$0xff]
  %v570 = vld [vmem:[%s538 + $0xf8] sm:$0xff]
  %v571 = vld [vmem:[%s538 + $0x100] sm:$0xff]
  %v572 = vld [vmem:[%s538 + $0x108] sm:$0xff]
  %v573 = vld [vmem:[%s538 + $0x110] sm:$0xff]
  %v574 = vld [vmem:[%s538 + $0x118] sm:$0xff]
  %v611 = vunpack.c.l.b16 %v539
  %v612 = vunpack.c.h.b16 %v539
  %v613 = vunpack.c.l.b16 %v540
  %v614 = vunpack.c.h.b16 %v540
  %v615 = vunpack.c.l.b16 %v541
  %v616 = vunpack.c.h.b16 %v541
  %v617 = vunpack.c.l.b16 %v542
  %v618 = vunpack.c.h.b16 %v542
  %v619 = vunpack.c.l.b16 %v543
  %v620 = vunpack.c.h.b16 %v543
  %v621 = vunpack.c.l.b16 %v544
  %v622 = vunpack.c.h.b16 %v544
  %v623 = vunpack.c.l.b16 %v545
  %v624 = vunpack.c.h.b16 %v545
  %v625 = vunpack.c.l.b16 %v546
  %v626 = vunpack.c.h.b16 %v546
  %v627 = vunpack.c.l.b16 %v547
  %v628 = vunpack.c.h.b16 %v547
  %v629 = vunpack.c.l.b16 %v548
  %v630 = vunpack.c.h.b16 %v548
  %v631 = vunpack.c.l.b16 %v549
  %v632 = vunpack.c.h.b16 %v549
  %v633 = vunpack.c.l.b16 %v550
  %v634 = vunpack.c.h.b16 %v550
  %v635 = vunpack.c.l.b16 %v551
  %v636 = vunpack.c.h.b16 %v551
  %v637 = vunpack.c.l.b16 %v552
  %v638 = vunpack.c.h.b16 %v552
  %v639 = vunpack.c.l.b16 %v553
  %v640 = vunpack.c.h.b16 %v553
  %v641 = vunpack.c.l.b16 %v554
  %v642 = vunpack.c.h.b16 %v554
  %v643 = vunpack.c.l.b16 %v555
  %v644 = vunpack.c.h.b16 %v555
  %v645 = vunpack.c.l.b16 %v556
  %v646 = vunpack.c.h.b16 %v556
  %v647 = vunpack.c.l.b16 %v557
  %v648 = vunpack.c.h.b16 %v557
  %v649 = vunpack.c.l.b16 %v558
  %v650 = vunpack.c.h.b16 %v558
  %v651 = vunpack.c.l.b16 %v559
  %v652 = vunpack.c.h.b16 %v559
  %v653 = vunpack.c.l.b16 %v560
  %v654 = vunpack.c.h.b16 %v560
  %v655 = vunpack.c.l.b16 %v561
  %v656 = vunpack.c.h.b16 %v561
  %v657 = vunpack.c.l.b16 %v562
  %v658 = vunpack.c.h.b16 %v562
  %v659 = vunpack.c.l.b16 %v563
  %v660 = vunpack.c.h.b16 %v563
  %v661 = vunpack.c.l.b16 %v564
  %v662 = vunpack.c.h.b16 %v564
  %v663 = vunpack.c.l.b16 %v565
  %v664 = vunpack.c.h.b16 %v565
  %v665 = vunpack.c.l.b16 %v566
  %v666 = vunpack.c.h.b16 %v566
  %v667 = vunpack.c.l.b16 %v567
  %v668 = vunpack.c.h.b16 %v567
  %v669 = vunpack.c.l.b16 %v568
  %v670 = vunpack.c.h.b16 %v568
  %v671 = vunpack.c.l.b16 %v569
  %v672 = vunpack.c.h.b16 %v569
  %v673 = vunpack.c.l.b16 %v570
  %v674 = vunpack.c.h.b16 %v570
  %v675 = vunpack.c.l.b16 %v571
  %v676 = vunpack.c.h.b16 %v571
  %v677 = vunpack.c.l.b16 %v572
  %v678 = vunpack.c.h.b16 %v572
  %v679 = vunpack.c.l.b16 %v573
  %v680 = vunpack.c.h.b16 %v573
  %v681 = vunpack.c.l.b16 %v574
  %v682 = vunpack.c.h.b16 %v574
  %v683 = vpack.c.b16 %v613, %v611
  %v684 = vpack.c.b16 %v614, %v612
  %v685 = vpack.c.b16 %v617, %v615
  %v686 = vpack.c.b16 %v618, %v616
  %v687 = vpack.c.b16 %v621, %v619
  %v688 = vpack.c.b16 %v622, %v620
  %v689 = vpack.c.b16 %v625, %v623
  %v690 = vpack.c.b16 %v626, %v624
  %v691 = vpack.c.b16 %v629, %v627
  %v692 = vpack.c.b16 %v630, %v628
  %v693 = vpack.c.b16 %v633, %v631
  %v694 = vpack.c.b16 %v634, %v632
  %v695 = vpack.c.b16 %v637, %v635
  %v696 = vpack.c.b16 %v638, %v636
  %v697 = vpack.c.b16 %v641, %v639
  %v698 = vpack.c.b16 %v642, %v640
  %v699 = vpack.c.b16 %v645, %v643
  %v700 = vpack.c.b16 %v646, %v644
  %v701 = vpack.c.b16 %v649, %v647
  %v702 = vpack.c.b16 %v650, %v648
  %v703 = vpack.c.b16 %v653, %v651
  %v704 = vpack.c.b16 %v654, %v652
  %v705 = vpack.c.b16 %v657, %v655
  %v706 = vpack.c.b16 %v658, %v656
  %v707 = vpack.c.b16 %v661, %v659
  %v708 = vpack.c.b16 %v662, %v660
  %v709 = vpack.c.b16 %v665, %v663
  %v710 = vpack.c.b16 %v666, %v664
  %v711 = vpack.c.b16 %v669, %v667
  %v712 = vpack.c.b16 %v670, %v668
  %v713 = vpack.c.b16 %v673, %v671
  %v714 = vpack.c.b16 %v674, %v672
  %v715 = vpack.c.b16 %v677, %v675
  %v716 = vpack.c.b16 %v678, %v676
  %v717 = vpack.c.b16 %v681, %v679
  %v718 = vpack.c.b16 %v682, %v680
  %v738 = vsel %vm285, %v684, 0
  %v741 = vsel %vm285, %v686, 0
  %v744 = vsel %vm285, %v688, 0
  %v747 = vsel %vm285, %v690, 0
  %v750 = vsel %vm285, %v692, 0
  %v753 = vsel %vm285, %v694, 0
  %v756 = vsel %vm285, %v696, 0
  %v759 = vsel %vm285, %v698, 0
  %v762 = vsel %vm285, %v700, 0
  %v765 = vsel %vm285, %v702, 0
  %v768 = vsel %vm285, %v704, 0
  %v771 = vsel %vm285, %v706, 0
  %v774 = vsel %vm285, %v708, 0
  %v777 = vsel %vm285, %v710, 0
  %v780 = vsel %vm285, %v712, 0
  %v783 = vsel %vm285, %v714, 0
  %v786 = vsel %vm285, %v716, 0
  %v789 = vsel %vm285, %v718, 0
  %791 = vmatpush.bf16.msra.mxu0 %v274
  %792 = vmatpush.bf16.msra.mxu0 %v273
  %793 = vmatpush.bf16.msra.mxu0 %v272
  %794 = vmatpush.bf16.msra.mxu0 %v271
  %795 = vmatpush.bf16.msra.mxu0 %v270
  %796 = vmatpush.bf16.msra.mxu0 %v269
  %797 = vmatpush.bf16.msra.mxu0 %v268
  %798 = vmatpush.bf16.msra.mxu0 %v267
  %799 = vmatmul.bf16.gmra.mxu0 %v683
  %v800 = vpop.f32.mrf.mxu0
  %v801 = vadd.f32 0.0, %v800
  %v802 = vpop.f32.mrf.mxu0
  %v803 = vadd.f32 0.0, %v802
  %804 = vmatmul.bf16.gmra.mxu0 %v685
  %v805 = vpop.f32.mrf.mxu0
  %v806 = vadd.f32 0.0, %v805
  %v807 = vpop.f32.mrf.mxu0
  %v808 = vadd.f32 0.0, %v807
  %809 = vmatmul.bf16.gmra.mxu0 %v687
  %v810 = vpop.f32.mrf.mxu0
  %v811 = vadd.f32 0.0, %v810
  %v812 = vpop.f32.mrf.mxu0
  %v813 = vadd.f32 0.0, %v812
  %814 = vmatmul.bf16.gmra.mxu0 %v689
  %v815 = vpop.f32.mrf.mxu0
  %v816 = vadd.f32 0.0, %v815
  %v817 = vpop.f32.mrf.mxu0
  %v818 = vadd.f32 0.0, %v817
  %819 = vmatmul.bf16.gmra.mxu0 %v691
  %v820 = vpop.f32.mrf.mxu0
  %v821 = vadd.f32 0.0, %v820
  %v822 = vpop.f32.mrf.mxu0
  %v823 = vadd.f32 0.0, %v822
  %824 = vmatmul.bf16.gmra.mxu0 %v693
  %v825 = vpop.f32.mrf.mxu0
  %v826 = vadd.f32 0.0, %v825
  %v827 = vpop.f32.mrf.mxu0
  %v828 = vadd.f32 0.0, %v827
  %829 = vmatmul.bf16.gmra.mxu0 %v695
  %v830 = vpop.f32.mrf.mxu0
  %v831 = vadd.f32 0.0, %v830
  %v832 = vpop.f32.mrf.mxu0
  %v833 = vadd.f32 0.0, %v832
  %834 = vmatmul.bf16.gmra.mxu0 %v697
  %v835 = vpop.f32.mrf.mxu0
  %v836 = vadd.f32 0.0, %v835
  %v837 = vpop.f32.mrf.mxu0
  %v838 = vadd.f32 0.0, %v837
  %839 = vmatmul.bf16.gmra.mxu0 %v699
  %v840 = vpop.f32.mrf.mxu0
  %v841 = vadd.f32 0.0, %v840
  %v842 = vpop.f32.mrf.mxu0
  %v843 = vadd.f32 0.0, %v842
  %844 = vmatmul.bf16.gmra.mxu0 %v701
  %v845 = vpop.f32.mrf.mxu0
  %v846 = vadd.f32 0.0, %v845
  %v847 = vpop.f32.mrf.mxu0
  %v848 = vadd.f32 0.0, %v847
  %849 = vmatmul.bf16.gmra.mxu0 %v703
  %v850 = vpop.f32.mrf.mxu0
  %v851 = vadd.f32 0.0, %v850
  %v852 = vpop.f32.mrf.mxu0
  %v853 = vadd.f32 0.0, %v852
  %854 = vmatmul.bf16.gmra.mxu0 %v705
  %v855 = vpop.f32.mrf.mxu0
  %v856 = vadd.f32 0.0, %v855
  %v857 = vpop.f32.mrf.mxu0
  %v858 = vadd.f32 0.0, %v857
  %859 = vmatmul.bf16.gmra.mxu0 %v707
  %v860 = vpop.f32.mrf.mxu0
  %v861 = vadd.f32 0.0, %v860
  %v862 = vpop.f32.mrf.mxu0
  %v863 = vadd.f32 0.0, %v862
  %864 = vmatmul.bf16.gmra.mxu0 %v709
  %v865 = vpop.f32.mrf.mxu0
  %v866 = vadd.f32 0.0, %v865
  %v867 = vpop.f32.mrf.mxu0
  %v868 = vadd.f32 0.0, %v867
  %869 = vmatmul.bf16.gmra.mxu0 %v711
  %v870 = vpop.f32.mrf.mxu0
  %v871 = vadd.f32 0.0, %v870
  %v872 = vpop.f32.mrf.mxu0
  %v873 = vadd.f32 0.0, %v872
  %874 = vmatmul.bf16.gmra.mxu0 %v713
  %v875 = vpop.f32.mrf.mxu0
  %v876 = vadd.f32 0.0, %v875
  %v877 = vpop.f32.mrf.mxu0
  %v878 = vadd.f32 0.0, %v877
  %879 = vmatmul.bf16.gmra.mxu0 %v715
  %v880 = vpop.f32.mrf.mxu0
  %v881 = vadd.f32 0.0, %v880
  %v882 = vpop.f32.mrf.mxu0
  %v883 = vadd.f32 0.0, %v882
  %884 = vmatmul.bf16.gmra.mxu0 %v717
  %v885 = vpop.f32.mrf.mxu0
  %v886 = vadd.f32 0.0, %v885
  %v887 = vpop.f32.mrf.mxu0
  %v888 = vadd.f32 0.0, %v887
  %889 = vdwg.mxu0
  %890 = vmatpush.bf16.msra.mxu0 0
  %891 = vmatpush.bf16.msra.mxu0 0
  %892 = vmatpush.bf16.msra.mxu0 0
  %893 = vmatpush.bf16.msra.mxu0 0
  %894 = vmatpush.bf16.msra.mxu0 0
  %895 = vmatpush.bf16.msra.mxu0 0
  %896 = vmatpush.bf16.msra.mxu0 0
  %897 = vmatpush.bf16.msra.mxu0 %v275
  %898 = vmatmul.bf16.gmra.mxu0 %v738
  %v899 = vpop.f32.mrf.mxu0
  %v900 = vadd.f32 %v801, %v899
  %v901 = vpop.f32.mrf.mxu0
  %v902 = vadd.f32 %v803, %v901
  %903 = vmatmul.bf16.gmra.mxu0 %v741
  %v904 = vpop.f32.mrf.mxu0
  %v905 = vadd.f32 %v806, %v904
  %v906 = vpop.f32.mrf.mxu0
  %v907 = vadd.f32 %v808, %v906
  %908 = vmatmul.bf16.gmra.mxu0 %v744
  %v909 = vpop.f32.mrf.mxu0
  %v910 = vadd.f32 %v811, %v909
  %v911 = vpop.f32.mrf.mxu0
  %v912 = vadd.f32 %v813, %v911
  %913 = vmatmul.bf16.gmra.mxu0 %v747
  %v914 = vpop.f32.mrf.mxu0
  %v915 = vadd.f32 %v816, %v914
  %v916 = vpop.f32.mrf.mxu0
  %v917 = vadd.f32 %v818, %v916
  %918 = vmatmul.bf16.gmra.mxu0 %v750
  %v919 = vpop.f32.mrf.mxu0
  %v920 = vadd.f32 %v821, %v919
  %v921 = vpop.f32.mrf.mxu0
  %v922 = vadd.f32 %v823, %v921
  %923 = vmatmul.bf16.gmra.mxu0 %v753
  %v924 = vpop.f32.mrf.mxu0
  %v925 = vadd.f32 %v826, %v924
  %v926 = vpop.f32.mrf.mxu0
  %v927 = vadd.f32 %v828, %v926
  %928 = vmatmul.bf16.gmra.mxu0 %v756
  %v929 = vpop.f32.mrf.mxu0
  %v930 = vadd.f32 %v831, %v929
  %v931 = vpop.f32.mrf.mxu0
  %v932 = vadd.f32 %v833, %v931
  %933 = vmatmul.bf16.gmra.mxu0 %v759
  %v934 = vpop.f32.mrf.mxu0
  %v935 = vadd.f32 %v836, %v934
  %v936 = vpop.f32.mrf.mxu0
  %v937 = vadd.f32 %v838, %v936
  %938 = vmatmul.bf16.gmra.mxu0 %v762
  %v939 = vpop.f32.mrf.mxu0
  %v940 = vadd.f32 %v841, %v939
  %v941 = vpop.f32.mrf.mxu0
  %v942 = vadd.f32 %v843, %v941
  %943 = vmatmul.bf16.gmra.mxu0 %v765
  %v944 = vpop.f32.mrf.mxu0
  %v945 = vadd.f32 %v846, %v944
  %v946 = vpop.f32.mrf.mxu0
  %v947 = vadd.f32 %v848, %v946
  %948 = vmatmul.bf16.gmra.mxu0 %v768
  %v949 = vpop.f32.mrf.mxu0
  %v950 = vadd.f32 %v851, %v949
  %v951 = vpop.f32.mrf.mxu0
  %v952 = vadd.f32 %v853, %v951
  %953 = vmatmul.bf16.gmra.mxu0 %v771
  %v954 = vpop.f32.mrf.mxu0
  %v955 = vadd.f32 %v856, %v954
  %v956 = vpop.f32.mrf.mxu0
  %v957 = vadd.f32 %v858, %v956
  %958 = vmatmul.bf16.gmra.mxu0 %v774
  %v959 = vpop.f32.mrf.mxu0
  %v960 = vadd.f32 %v861, %v959
  %v961 = vpop.f32.mrf.mxu0
  %v962 = vadd.f32 %v863, %v961
  %963 = vmatmul.bf16.gmra.mxu0 %v777
  %v964 = vpop.f32.mrf.mxu0
  %v965 = vadd.f32 %v866, %v964
  %v966 = vpop.f32.mrf.mxu0
  %v967 = vadd.f32 %v868, %v966
  %968 = vmatmul.bf16.gmra.mxu0 %v780
  %v969 = vpop.f32.mrf.mxu0
  %v970 = vadd.f32 %v871, %v969
  %v971 = vpop.f32.mrf.mxu0
  %v972 = vadd.f32 %v873, %v971
  %973 = vmatmul.bf16.gmra.mxu0 %v783
  %v974 = vpop.f32.mrf.mxu0
  %v975 = vadd.f32 %v876, %v974
  %v976 = vpop.f32.mrf.mxu0
  %v977 = vadd.f32 %v878, %v976
  %978 = vmatmul.bf16.gmra.mxu0 %v786
  %v979 = vpop.f32.mrf.mxu0
  %v980 = vadd.f32 %v881, %v979
  %v981 = vpop.f32.mrf.mxu0
  %v982 = vadd.f32 %v883, %v981
  %983 = vmatmul.bf16.gmra.mxu0 %v789
  %v984 = vpop.f32.mrf.mxu0
  %v985 = vadd.f32 %v886, %v984
  %v986 = vpop.f32.mrf.mxu0
  %v987 = vadd.f32 %v888, %v986
  %988 = vdwg.mxu0
  %v989 = vmax.f32 %v449, %v900
  %v990 = vmax.f32 %v451, %v902
  %v991 = vmax.f32 %v454, %v905
  %v992 = vmax.f32 %v456, %v907
  %v993 = vmax.f32 %v459, %v910
  %v994 = vmax.f32 %v461, %v912
  %v995 = vmax.f32 %v464, %v915
  %v996 = vmax.f32 %v466, %v917
  %v997 = vmax.f32 %v469, %v920
  %v998 = vmax.f32 %v471, %v922
  %v999 = vmax.f32 %v474, %v925
  %v1000 = vmax.f32 %v476, %v927
  %v1001 = vmax.f32 %v479, %v930
  %v1002 = vmax.f32 %v481, %v932
  %v1003 = vmax.f32 %v484, %v935
  %v1004 = vmax.f32 %v486, %v937
  %v1005 = vmax.f32 %v489, %v940
  %v1006 = vmax.f32 %v491, %v942
  %v1007 = vmax.f32 %v494, %v945
  %v1008 = vmax.f32 %v496, %v947
  %v1009 = vmax.f32 %v499, %v950
  %v1010 = vmax.f32 %v501, %v952
  %v1011 = vmax.f32 %v504, %v955
  %v1012 = vmax.f32 %v506, %v957
  %v1013 = vmax.f32 %v509, %v960
  %v1014 = vmax.f32 %v511, %v962
  %v1015 = vmax.f32 %v514, %v965
  %v1016 = vmax.f32 %v516, %v967
  %v1017 = vmax.f32 %v519, %v970
  %v1018 = vmax.f32 %v521, %v972
  %v1019 = vmax.f32 %v524, %v975
  %v1020 = vmax.f32 %v526, %v977
  %v1021 = vmax.f32 %v529, %v980
  %v1022 = vmax.f32 %v531, %v982
  %v1023 = vmax.f32 %v534, %v985
  %v1024 = vmax.f32 %v536, %v987
  %s1025 = scalar_lea.vmem %s0, 576
  %v1026 = vld [vmem:[%s1025] sm:$0xff]
  %v1027 = vld [vmem:[%s1025 + $0x8] sm:$0xff]
  %v1028 = vld [vmem:[%s1025 + $0x10] sm:$0xff]
  %v1029 = vld [vmem:[%s1025 + $0x18] sm:$0xff]
  %v1030 = vld [vmem:[%s1025 + $0x20] sm:$0xff]
  %v1031 = vld [vmem:[%s1025 + $0x28] sm:$0xff]
  %v1032 = vld [vmem:[%s1025 + $0x30] sm:$0xff]
  %v1033 = vld [vmem:[%s1025 + $0x38] sm:$0xff]
  %v1034 = vld [vmem:[%s1025 + $0x40] sm:$0xff]
  %v1035 = vld [vmem:[%s1025 + $0x48] sm:$0xff]
  %v1036 = vld [vmem:[%s1025 + $0x50] sm:$0xff]
  %v1037 = vld [vmem:[%s1025 + $0x58] sm:$0xff]
  %v1038 = vld [vmem:[%s1025 + $0x60] sm:$0xff]
  %v1039 = vld [vmem:[%s1025 + $0x68] sm:$0xff]
  %v1040 = vld [vmem:[%s1025 + $0x70] sm:$0xff]
  %v1041 = vld [vmem:[%s1025 + $0x78] sm:$0xff]
  %v1042 = vld [vmem:[%s1025 + $0x80] sm:$0xff]
  %v1043 = vld [vmem:[%s1025 + $0x88] sm:$0xff]
  %v1044 = vld [vmem:[%s1025 + $0x90] sm:$0xff]
  %v1045 = vld [vmem:[%s1025 + $0x98] sm:$0xff]
  %v1046 = vld [vmem:[%s1025 + $0xa0] sm:$0xff]
  %v1047 = vld [vmem:[%s1025 + $0xa8] sm:$0xff]
  %v1048 = vld [vmem:[%s1025 + $0xb0] sm:$0xff]
  %v1049 = vld [vmem:[%s1025 + $0xb8] sm:$0xff]
  %v1050 = vld [vmem:[%s1025 + $0xc0] sm:$0xff]
  %v1051 = vld [vmem:[%s1025 + $0xc8] sm:$0xff]
  %v1052 = vld [vmem:[%s1025 + $0xd0] sm:$0xff]
  %v1053 = vld [vmem:[%s1025 + $0xd8] sm:$0xff]
  %v1054 = vld [vmem:[%s1025 + $0xe0] sm:$0xff]
  %v1055 = vld [vmem:[%s1025 + $0xe8] sm:$0xff]
  %v1056 = vld [vmem:[%s1025 + $0xf0] sm:$0xff]
  %v1057 = vld [vmem:[%s1025 + $0xf8] sm:$0xff]
  %v1058 = vld [vmem:[%s1025 + $0x100] sm:$0xff]
  %v1059 = vld [vmem:[%s1025 + $0x108] sm:$0xff]
  %v1060 = vld [vmem:[%s1025 + $0x110] sm:$0xff]
  %v1061 = vld [vmem:[%s1025 + $0x118] sm:$0xff]
  %v1098 = vunpack.c.l.b16 %v1026
  %v1099 = vunpack.c.h.b16 %v1026
  %v1100 = vunpack.c.l.b16 %v1027
  %v1101 = vunpack.c.h.b16 %v1027
  %v1102 = vunpack.c.l.b16 %v1028
  %v1103 = vunpack.c.h.b16 %v1028
  %v1104 = vunpack.c.l.b16 %v1029
  %v1105 = vunpack.c.h.b16 %v1029
  %v1106 = vunpack.c.l.b16 %v1030
  %v1107 = vunpack.c.h.b16 %v1030
  %v1108 = vunpack.c.l.b16 %v1031
  %v1109 = vunpack.c.h.b16 %v1031
  %v1110 = vunpack.c.l.b16 %v1032
  %v1111 = vunpack.c.h.b16 %v1032
  %v1112 = vunpack.c.l.b16 %v1033
  %v1113 = vunpack.c.h.b16 %v1033
  %v1114 = vunpack.c.l.b16 %v1034
  %v1115 = vunpack.c.h.b16 %v1034
  %v1116 = vunpack.c.l.b16 %v1035
  %v1117 = vunpack.c.h.b16 %v1035
  %v1118 = vunpack.c.l.b16 %v1036
  %v1119 = vunpack.c.h.b16 %v1036
  %v1120 = vunpack.c.l.b16 %v1037
  %v1121 = vunpack.c.h.b16 %v1037
  %v1122 = vunpack.c.l.b16 %v1038
  %v1123 = vunpack.c.h.b16 %v1038
  %v1124 = vunpack.c.l.b16 %v1039
  %v1125 = vunpack.c.h.b16 %v1039
  %v1126 = vunpack.c.l.b16 %v1040
  %v1127 = vunpack.c.h.b16 %v1040
  %v1128 = vunpack.c.l.b16 %v1041
  %v1129 = vunpack.c.h.b16 %v1041
  %v1130 = vunpack.c.l.b16 %v1042
  %v1131 = vunpack.c.h.b16 %v1042
  %v1132 = vunpack.c.l.b16 %v1043
  %v1133 = vunpack.c.h.b16 %v1043
  %v1134 = vunpack.c.l.b16 %v1044
  %v1135 = vunpack.c.h.b16 %v1044
  %v1136 = vunpack.c.l.b16 %v1045
  %v1137 = vunpack.c.h.b16 %v1045
  %v1138 = vunpack.c.l.b16 %v1046
  %v1139 = vunpack.c.h.b16 %v1046
  %v1140 = vunpack.c.l.b16 %v1047
  %v1141 = vunpack.c.h.b16 %v1047
  %v1142 = vunpack.c.l.b16 %v1048
  %v1143 = vunpack.c.h.b16 %v1048
  %v1144 = vunpack.c.l.b16 %v1049
  %v1145 = vunpack.c.h.b16 %v1049
  %v1146 = vunpack.c.l.b16 %v1050
  %v1147 = vunpack.c.h.b16 %v1050
  %v1148 = vunpack.c.l.b16 %v1051
  %v1149 = vunpack.c.h.b16 %v1051
  %v1150 = vunpack.c.l.b16 %v1052
  %v1151 = vunpack.c.h.b16 %v1052
  %v1152 = vunpack.c.l.b16 %v1053
  %v1153 = vunpack.c.h.b16 %v1053
  %v1154 = vunpack.c.l.b16 %v1054
  %v1155 = vunpack.c.h.b16 %v1054
  %v1156 = vunpack.c.l.b16 %v1055
  %v1157 = vunpack.c.h.b16 %v1055
  %v1158 = vunpack.c.l.b16 %v1056
  %v1159 = vunpack.c.h.b16 %v1056
  %v1160 = vunpack.c.l.b16 %v1057
  %v1161 = vunpack.c.h.b16 %v1057
  %v1162 = vunpack.c.l.b16 %v1058
  %v1163 = vunpack.c.h.b16 %v1058
  %v1164 = vunpack.c.l.b16 %v1059
  %v1165 = vunpack.c.h.b16 %v1059
  %v1166 = vunpack.c.l.b16 %v1060
  %v1167 = vunpack.c.h.b16 %v1060
  %v1168 = vunpack.c.l.b16 %v1061
  %v1169 = vunpack.c.h.b16 %v1061
  %v1170 = vpack.c.b16 %v1100, %v1098
  %v1171 = vpack.c.b16 %v1101, %v1099
  %v1172 = vpack.c.b16 %v1104, %v1102
  %v1173 = vpack.c.b16 %v1105, %v1103
  %v1174 = vpack.c.b16 %v1108, %v1106
  %v1175 = vpack.c.b16 %v1109, %v1107
  %v1176 = vpack.c.b16 %v1112, %v1110
  %v1177 = vpack.c.b16 %v1113, %v1111
  %v1178 = vpack.c.b16 %v1116, %v1114
  %v1179 = vpack.c.b16 %v1117, %v1115
  %v1180 = vpack.c.b16 %v1120, %v1118
  %v1181 = vpack.c.b16 %v1121, %v1119
  %v1182 = vpack.c.b16 %v1124, %v1122
  %v1183 = vpack.c.b16 %v1125, %v1123
  %v1184 = vpack.c.b16 %v1128, %v1126
  %v1185 = vpack.c.b16 %v1129, %v1127
  %v1186 = vpack.c.b16 %v1132, %v1130
  %v1187 = vpack.c.b16 %v1133, %v1131
  %v1188 = vpack.c.b16 %v1136, %v1134
  %v1189 = vpack.c.b16 %v1137, %v1135
  %v1190 = vpack.c.b16 %v1140, %v1138
  %v1191 = vpack.c.b16 %v1141, %v1139
  %v1192 = vpack.c.b16 %v1144, %v1142
  %v1193 = vpack.c.b16 %v1145, %v1143
  %v1194 = vpack.c.b16 %v1148, %v1146
  %v1195 = vpack.c.b16 %v1149, %v1147
  %v1196 = vpack.c.b16 %v1152, %v1150
  %v1197 = vpack.c.b16 %v1153, %v1151
  %v1198 = vpack.c.b16 %v1156, %v1154
  %v1199 = vpack.c.b16 %v1157, %v1155
  %v1200 = vpack.c.b16 %v1160, %v1158
  %v1201 = vpack.c.b16 %v1161, %v1159
  %v1202 = vpack.c.b16 %v1164, %v1162
  %v1203 = vpack.c.b16 %v1165, %v1163
  %v1204 = vpack.c.b16 %v1168, %v1166
  %v1205 = vpack.c.b16 %v1169, %v1167
  %v1225 = vsel %vm285, %v1171, 0
  %v1228 = vsel %vm285, %v1173, 0
  %v1231 = vsel %vm285, %v1175, 0
  %v1234 = vsel %vm285, %v1177, 0
  %v1237 = vsel %vm285, %v1179, 0
  %v1240 = vsel %vm285, %v1181, 0
  %v1243 = vsel %vm285, %v1183, 0
  %v1246 = vsel %vm285, %v1185, 0
  %v1249 = vsel %vm285, %v1187, 0
  %v1252 = vsel %vm285, %v1189, 0
  %v1255 = vsel %vm285, %v1191, 0
  %v1258 = vsel %vm285, %v1193, 0
  %v1261 = vsel %vm285, %v1195, 0
  %v1264 = vsel %vm285, %v1197, 0
  %v1267 = vsel %vm285, %v1199, 0
  %v1270 = vsel %vm285, %v1201, 0
  %v1273 = vsel %vm285, %v1203, 0
  %v1276 = vsel %vm285, %v1205, 0
  %1278 = vmatpush.bf16.msra.mxu0 %v274
  %1279 = vmatpush.bf16.msra.mxu0 %v273
  %1280 = vmatpush.bf16.msra.mxu0 %v272
  %1281 = vmatpush.bf16.msra.mxu0 %v271
  %1282 = vmatpush.bf16.msra.mxu0 %v270
  %1283 = vmatpush.bf16.msra.mxu0 %v269
  %1284 = vmatpush.bf16.msra.mxu0 %v268
  %1285 = vmatpush.bf16.msra.mxu0 %v267
  %1286 = vmatmul.bf16.gmra.mxu0 %v1170
  %v1287 = vpop.f32.mrf.mxu0
  %v1288 = vadd.f32 0.0, %v1287
  %v1289 = vpop.f32.mrf.mxu0
  %v1290 = vadd.f32 0.0, %v1289
  %1291 = vmatmul.bf16.gmra.mxu0 %v1172
  %v1292 = vpop.f32.mrf.mxu0
  %v1293 = vadd.f32 0.0, %v1292
  %v1294 = vpop.f32.mrf.mxu0
  %v1295 = vadd.f32 0.0, %v1294
  %1296 = vmatmul.bf16.gmra.mxu0 %v1174
  %v1297 = vpop.f32.mrf.mxu0
  %v1298 = vadd.f32 0.0, %v1297
  %v1299 = vpop.f32.mrf.mxu0
  %v1300 = vadd.f32 0.0, %v1299
  %1301 = vmatmul.bf16.gmra.mxu0 %v1176
  %v1302 = vpop.f32.mrf.mxu0
  %v1303 = vadd.f32 0.0, %v1302
  %v1304 = vpop.f32.mrf.mxu0
  %v1305 = vadd.f32 0.0, %v1304
  %1306 = vmatmul.bf16.gmra.mxu0 %v1178
  %v1307 = vpop.f32.mrf.mxu0
  %v1308 = vadd.f32 0.0, %v1307
  %v1309 = vpop.f32.mrf.mxu0
  %v1310 = vadd.f32 0.0, %v1309
  %1311 = vmatmul.bf16.gmra.mxu0 %v1180
  %v1312 = vpop.f32.mrf.mxu0
  %v1313 = vadd.f32 0.0, %v1312
  %v1314 = vpop.f32.mrf.mxu0
  %v1315 = vadd.f32 0.0, %v1314
  %1316 = vmatmul.bf16.gmra.mxu0 %v1182
  %v1317 = vpop.f32.mrf.mxu0
  %v1318 = vadd.f32 0.0, %v1317
  %v1319 = vpop.f32.mrf.mxu0
  %v1320 = vadd.f32 0.0, %v1319
  %1321 = vmatmul.bf16.gmra.mxu0 %v1184
  %v1322 = vpop.f32.mrf.mxu0
  %v1323 = vadd.f32 0.0, %v1322
  %v1324 = vpop.f32.mrf.mxu0
  %v1325 = vadd.f32 0.0, %v1324
  %1326 = vmatmul.bf16.gmra.mxu0 %v1186
  %v1327 = vpop.f32.mrf.mxu0
  %v1328 = vadd.f32 0.0, %v1327
  %v1329 = vpop.f32.mrf.mxu0
  %v1330 = vadd.f32 0.0, %v1329
  %1331 = vmatmul.bf16.gmra.mxu0 %v1188
  %v1332 = vpop.f32.mrf.mxu0
  %v1333 = vadd.f32 0.0, %v1332
  %v1334 = vpop.f32.mrf.mxu0
  %v1335 = vadd.f32 0.0, %v1334
  %1336 = vmatmul.bf16.gmra.mxu0 %v1190
  %v1337 = vpop.f32.mrf.mxu0
  %v1338 = vadd.f32 0.0, %v1337
  %v1339 = vpop.f32.mrf.mxu0
  %v1340 = vadd.f32 0.0, %v1339
  %1341 = vmatmul.bf16.gmra.mxu0 %v1192
  %v1342 = vpop.f32.mrf.mxu0
  %v1343 = vadd.f32 0.0, %v1342
  %v1344 = vpop.f32.mrf.mxu0
  %v1345 = vadd.f32 0.0, %v1344
  %1346 = vmatmul.bf16.gmra.mxu0 %v1194
  %v1347 = vpop.f32.mrf.mxu0
  %v1348 = vadd.f32 0.0, %v1347
  %v1349 = vpop.f32.mrf.mxu0
  %v1350 = vadd.f32 0.0, %v1349
  %1351 = vmatmul.bf16.gmra.mxu0 %v1196
  %v1352 = vpop.f32.mrf.mxu0
  %v1353 = vadd.f32 0.0, %v1352
  %v1354 = vpop.f32.mrf.mxu0
  %v1355 = vadd.f32 0.0, %v1354
  %1356 = vmatmul.bf16.gmra.mxu0 %v1198
  %v1357 = vpop.f32.mrf.mxu0
  %v1358 = vadd.f32 0.0, %v1357
  %v1359 = vpop.f32.mrf.mxu0
  %v1360 = vadd.f32 0.0, %v1359
  %1361 = vmatmul.bf16.gmra.mxu0 %v1200
  %v1362 = vpop.f32.mrf.mxu0
  %v1363 = vadd.f32 0.0, %v1362
  %v1364 = vpop.f32.mrf.mxu0
  %v1365 = vadd.f32 0.0, %v1364
  %1366 = vmatmul.bf16.gmra.mxu0 %v1202
  %v1367 = vpop.f32.mrf.mxu0
  %v1368 = vadd.f32 0.0, %v1367
  %v1369 = vpop.f32.mrf.mxu0
  %v1370 = vadd.f32 0.0, %v1369
  %1371 = vmatmul.bf16.gmra.mxu0 %v1204
  %v1372 = vpop.f32.mrf.mxu0
  %v1373 = vadd.f32 0.0, %v1372
  %v1374 = vpop.f32.mrf.mxu0
  %v1375 = vadd.f32 0.0, %v1374
  %1376 = vdwg.mxu0
  %1377 = vmatpush.bf16.msra.mxu0 0
  %1378 = vmatpush.bf16.msra.mxu0 0
  %1379 = vmatpush.bf16.msra.mxu0 0
  %1380 = vmatpush.bf16.msra.mxu0 0
  %1381 = vmatpush.bf16.msra.mxu0 0
  %1382 = vmatpush.bf16.msra.mxu0 0
  %1383 = vmatpush.bf16.msra.mxu0 0
  %1384 = vmatpush.bf16.msra.mxu0 %v275
  %1385 = vmatmul.bf16.gmra.mxu0 %v1225
  %v1386 = vpop.f32.mrf.mxu0
  %v1387 = vadd.f32 %v1288, %v1386
  %v1388 = vpop.f32.mrf.mxu0
  %v1389 = vadd.f32 %v1290, %v1388
  %1390 = vmatmul.bf16.gmra.mxu0 %v1228
  %v1391 = vpop.f32.mrf.mxu0
  %v1392 = vadd.f32 %v1293, %v1391
  %v1393 = vpop.f32.mrf.mxu0
  %v1394 = vadd.f32 %v1295, %v1393
  %1395 = vmatmul.bf16.gmra.mxu0 %v1231
  %v1396 = vpop.f32.mrf.mxu0
  %v1397 = vadd.f32 %v1298, %v1396
  %v1398 = vpop.f32.mrf.mxu0
  %v1399 = vadd.f32 %v1300, %v1398
  %1400 = vmatmul.bf16.gmra.mxu0 %v1234
  %v1401 = vpop.f32.mrf.mxu0
  %v1402 = vadd.f32 %v1303, %v1401
  %v1403 = vpop.f32.mrf.mxu0
  %v1404 = vadd.f32 %v1305, %v1403
  %1405 = vmatmul.bf16.gmra.mxu0 %v1237
  %v1406 = vpop.f32.mrf.mxu0
  %v1407 = vadd.f32 %v1308, %v1406
  %v1408 = vpop.f32.mrf.mxu0
  %v1409 = vadd.f32 %v1310, %v1408
  %1410 = vmatmul.bf16.gmra.mxu0 %v1240
  %v1411 = vpop.f32.mrf.mxu0
  %v1412 = vadd.f32 %v1313, %v1411
  %v1413 = vpop.f32.mrf.mxu0
  %v1414 = vadd.f32 %v1315, %v1413
  %1415 = vmatmul.bf16.gmra.mxu0 %v1243
  %v1416 = vpop.f32.mrf.mxu0
  %v1417 = vadd.f32 %v1318, %v1416
  %v1418 = vpop.f32.mrf.mxu0
  %v1419 = vadd.f32 %v1320, %v1418
  %1420 = vmatmul.bf16.gmra.mxu0 %v1246
  %v1421 = vpop.f32.mrf.mxu0
  %v1422 = vadd.f32 %v1323, %v1421
  %v1423 = vpop.f32.mrf.mxu0
  %v1424 = vadd.f32 %v1325, %v1423
  %1425 = vmatmul.bf16.gmra.mxu0 %v1249
  %v1426 = vpop.f32.mrf.mxu0
  %v1427 = vadd.f32 %v1328, %v1426
  %v1428 = vpop.f32.mrf.mxu0
  %v1429 = vadd.f32 %v1330, %v1428
  %1430 = vmatmul.bf16.gmra.mxu0 %v1252
  %v1431 = vpop.f32.mrf.mxu0
  %v1432 = vadd.f32 %v1333, %v1431
  %v1433 = vpop.f32.mrf.mxu0
  %v1434 = vadd.f32 %v1335, %v1433
  %1435 = vmatmul.bf16.gmra.mxu0 %v1255
  %v1436 = vpop.f32.mrf.mxu0
  %v1437 = vadd.f32 %v1338, %v1436
  %v1438 = vpop.f32.mrf.mxu0
  %v1439 = vadd.f32 %v1340, %v1438
  %1440 = vmatmul.bf16.gmra.mxu0 %v1258
  %v1441 = vpop.f32.mrf.mxu0
  %v1442 = vadd.f32 %v1343, %v1441
  %v1443 = vpop.f32.mrf.mxu0
  %v1444 = vadd.f32 %v1345, %v1443
  %1445 = vmatmul.bf16.gmra.mxu0 %v1261
  %v1446 = vpop.f32.mrf.mxu0
  %v1447 = vadd.f32 %v1348, %v1446
  %v1448 = vpop.f32.mrf.mxu0
  %v1449 = vadd.f32 %v1350, %v1448
  %1450 = vmatmul.bf16.gmra.mxu0 %v1264
  %v1451 = vpop.f32.mrf.mxu0
  %v1452 = vadd.f32 %v1353, %v1451
  %v1453 = vpop.f32.mrf.mxu0
  %v1454 = vadd.f32 %v1355, %v1453
  %1455 = vmatmul.bf16.gmra.mxu0 %v1267
  %v1456 = vpop.f32.mrf.mxu0
  %v1457 = vadd.f32 %v1358, %v1456
  %v1458 = vpop.f32.mrf.mxu0
  %v1459 = vadd.f32 %v1360, %v1458
  %1460 = vmatmul.bf16.gmra.mxu0 %v1270
  %v1461 = vpop.f32.mrf.mxu0
  %v1462 = vadd.f32 %v1363, %v1461
  %v1463 = vpop.f32.mrf.mxu0
  %v1464 = vadd.f32 %v1365, %v1463
  %1465 = vmatmul.bf16.gmra.mxu0 %v1273
  %v1466 = vpop.f32.mrf.mxu0
  %v1467 = vadd.f32 %v1368, %v1466
  %v1468 = vpop.f32.mrf.mxu0
  %v1469 = vadd.f32 %v1370, %v1468
  %1470 = vmatmul.bf16.gmra.mxu0 %v1276
  %v1471 = vpop.f32.mrf.mxu0
  %v1472 = vadd.f32 %v1373, %v1471
  %v1473 = vpop.f32.mrf.mxu0
  %v1474 = vadd.f32 %v1375, %v1473
  %1475 = vdwg.mxu0
  %v1476 = vmax.f32 %v989, %v1387
  %v1477 = vmax.f32 %v990, %v1389
  %v1478 = vmax.f32 %v991, %v1392
  %v1479 = vmax.f32 %v992, %v1394
  %v1480 = vmax.f32 %v993, %v1397
  %v1481 = vmax.f32 %v994, %v1399
  %v1482 = vmax.f32 %v995, %v1402
  %v1483 = vmax.f32 %v996, %v1404
  %v1484 = vmax.f32 %v997, %v1407
  %v1485 = vmax.f32 %v998, %v1409
  %v1486 = vmax.f32 %v999, %v1412
  %v1487 = vmax.f32 %v1000, %v1414
  %v1488 = vmax.f32 %v1001, %v1417
  %v1489 = vmax.f32 %v1002, %v1419
  %v1490 = vmax.f32 %v1003, %v1422
  %v1491 = vmax.f32 %v1004, %v1424
  %v1492 = vmax.f32 %v1005, %v1427
  %v1493 = vmax.f32 %v1006, %v1429
  %v1494 = vmax.f32 %v1007, %v1432
  %v1495 = vmax.f32 %v1008, %v1434
  %v1496 = vmax.f32 %v1009, %v1437
  %v1497 = vmax.f32 %v1010, %v1439
  %v1498 = vmax.f32 %v1011, %v1442
  %v1499 = vmax.f32 %v1012, %v1444
  %v1500 = vmax.f32 %v1013, %v1447
  %v1501 = vmax.f32 %v1014, %v1449
  %v1502 = vmax.f32 %v1015, %v1452
  %v1503 = vmax.f32 %v1016, %v1454
  %v1504 = vmax.f32 %v1017, %v1457
  %v1505 = vmax.f32 %v1018, %v1459
  %v1506 = vmax.f32 %v1019, %v1462
  %v1507 = vmax.f32 %v1020, %v1464
  %v1508 = vmax.f32 %v1021, %v1467
  %v1509 = vmax.f32 %v1022, %v1469
  %v1510 = vmax.f32 %v1023, %v1472
  %v1511 = vmax.f32 %v1024, %v1474
  %s1512 = scalar_lea.vmem %s0, 864
  %v1513 = vld [vmem:[%s1512] sm:$0xff]
  %v1514 = vld [vmem:[%s1512 + $0x8] sm:$0xff]
  %v1515 = vld [vmem:[%s1512 + $0x10] sm:$0xff]
  %v1516 = vld [vmem:[%s1512 + $0x18] sm:$0xff]
  %v1517 = vld [vmem:[%s1512 + $0x20] sm:$0xff]
  %v1518 = vld [vmem:[%s1512 + $0x28] sm:$0xff]
  %v1519 = vld [vmem:[%s1512 + $0x30] sm:$0xff]
  %v1520 = vld [vmem:[%s1512 + $0x38] sm:$0xff]
  %v1521 = vld [vmem:[%s1512 + $0x40] sm:$0xff]
  %v1522 = vld [vmem:[%s1512 + $0x48] sm:$0xff]
  %v1523 = vld [vmem:[%s1512 + $0x50] sm:$0xff]
  %v1524 = vld [vmem:[%s1512 + $0x58] sm:$0xff]
  %v1525 = vld [vmem:[%s1512 + $0x60] sm:$0xff]
  %v1526 = vld [vmem:[%s1512 + $0x68] sm:$0xff]
  %v1527 = vld [vmem:[%s1512 + $0x70] sm:$0xff]
  %v1528 = vld [vmem:[%s1512 + $0x78] sm:$0xff]
  %v1529 = vld [vmem:[%s1512 + $0x80] sm:$0xff]
  %v1530 = vld [vmem:[%s1512 + $0x88] sm:$0xff]
  %v1531 = vld [vmem:[%s1512 + $0x90] sm:$0xff]
  %v1532 = vld [vmem:[%s1512 + $0x98] sm:$0xff]
  %v1533 = vld [vmem:[%s1512 + $0xa0] sm:$0xff]
  %v1534 = vld [vmem:[%s1512 + $0xa8] sm:$0xff]
  %v1535 = vld [vmem:[%s1512 + $0xb0] sm:$0xff]
  %v1536 = vld [vmem:[%s1512 + $0xb8] sm:$0xff]
  %v1537 = vld [vmem:[%s1512 + $0xc0] sm:$0xff]
  %v1538 = vld [vmem:[%s1512 + $0xc8] sm:$0xff]
  %v1539 = vld [vmem:[%s1512 + $0xd0] sm:$0xff]
  %v1540 = vld [vmem:[%s1512 + $0xd8] sm:$0xff]
  %v1541 = vld [vmem:[%s1512 + $0xe0] sm:$0xff]
  %v1542 = vld [vmem:[%s1512 + $0xe8] sm:$0xff]
  %v1543 = vld [vmem:[%s1512 + $0xf0] sm:$0xff]
  %v1544 = vld [vmem:[%s1512 + $0xf8] sm:$0xff]
  %v1545 = vld [vmem:[%s1512 + $0x100] sm:$0xff]
  %v1546 = vld [vmem:[%s1512 + $0x108] sm:$0xff]
  %v1547 = vld [vmem:[%s1512 + $0x110] sm:$0xff]
  %v1548 = vld [vmem:[%s1512 + $0x118] sm:$0xff]
  %v1585 = vunpack.c.l.b16 %v1513
  %v1586 = vunpack.c.h.b16 %v1513
  %v1587 = vunpack.c.l.b16 %v1514
  %v1588 = vunpack.c.h.b16 %v1514
  %v1589 = vunpack.c.l.b16 %v1515
  %v1590 = vunpack.c.h.b16 %v1515
  %v1591 = vunpack.c.l.b16 %v1516
  %v1592 = vunpack.c.h.b16 %v1516
  %v1593 = vunpack.c.l.b16 %v1517
  %v1594 = vunpack.c.h.b16 %v1517
  %v1595 = vunpack.c.l.b16 %v1518
  %v1596 = vunpack.c.h.b16 %v1518
  %v1597 = vunpack.c.l.b16 %v1519
  %v1598 = vunpack.c.h.b16 %v1519
  %v1599 = vunpack.c.l.b16 %v1520
  %v1600 = vunpack.c.h.b16 %v1520
  %v1601 = vunpack.c.l.b16 %v1521
  %v1602 = vunpack.c.h.b16 %v1521
  %v1603 = vunpack.c.l.b16 %v1522
  %v1604 = vunpack.c.h.b16 %v1522
  %v1605 = vunpack.c.l.b16 %v1523
  %v1606 = vunpack.c.h.b16 %v1523
  %v1607 = vunpack.c.l.b16 %v1524
  %v1608 = vunpack.c.h.b16 %v1524
  %v1609 = vunpack.c.l.b16 %v1525
  %v1610 = vunpack.c.h.b16 %v1525
  %v1611 = vunpack.c.l.b16 %v1526
  %v1612 = vunpack.c.h.b16 %v1526
  %v1613 = vunpack.c.l.b16 %v1527
  %v1614 = vunpack.c.h.b16 %v1527
  %v1615 = vunpack.c.l.b16 %v1528
  %v1616 = vunpack.c.h.b16 %v1528
  %v1617 = vunpack.c.l.b16 %v1529
  %v1618 = vunpack.c.h.b16 %v1529
  %v1619 = vunpack.c.l.b16 %v1530
  %v1620 = vunpack.c.h.b16 %v1530
  %v1621 = vunpack.c.l.b16 %v1531
  %v1622 = vunpack.c.h.b16 %v1531
  %v1623 = vunpack.c.l.b16 %v1532
  %v1624 = vunpack.c.h.b16 %v1532
  %v1625 = vunpack.c.l.b16 %v1533
  %v1626 = vunpack.c.h.b16 %v1533
  %v1627 = vunpack.c.l.b16 %v1534
  %v1628 = vunpack.c.h.b16 %v1534
  %v1629 = vunpack.c.l.b16 %v1535
  %v1630 = vunpack.c.h.b16 %v1535
  %v1631 = vunpack.c.l.b16 %v1536
  %v1632 = vunpack.c.h.b16 %v1536
  %v1633 = vunpack.c.l.b16 %v1537
  %v1634 = vunpack.c.h.b16 %v1537
  %v1635 = vunpack.c.l.b16 %v1538
  %v1636 = vunpack.c.h.b16 %v1538
  %v1637 = vunpack.c.l.b16 %v1539
  %v1638 = vunpack.c.h.b16 %v1539
  %v1639 = vunpack.c.l.b16 %v1540
  %v1640 = vunpack.c.h.b16 %v1540
  %v1641 = vunpack.c.l.b16 %v1541
  %v1642 = vunpack.c.h.b16 %v1541
  %v1643 = vunpack.c.l.b16 %v1542
  %v1644 = vunpack.c.h.b16 %v1542
  %v1645 = vunpack.c.l.b16 %v1543
  %v1646 = vunpack.c.h.b16 %v1543
  %v1647 = vunpack.c.l.b16 %v1544
  %v1648 = vunpack.c.h.b16 %v1544
  %v1649 = vunpack.c.l.b16 %v1545
  %v1650 = vunpack.c.h.b16 %v1545
  %v1651 = vunpack.c.l.b16 %v1546
  %v1652 = vunpack.c.h.b16 %v1546
  %v1653 = vunpack.c.l.b16 %v1547
  %v1654 = vunpack.c.h.b16 %v1547
  %v1655 = vunpack.c.l.b16 %v1548
  %v1656 = vunpack.c.h.b16 %v1548
  %v1657 = vpack.c.b16 %v1587, %v1585
  %v1658 = vpack.c.b16 %v1588, %v1586
  %v1659 = vpack.c.b16 %v1591, %v1589
  %v1660 = vpack.c.b16 %v1592, %v1590
  %v1661 = vpack.c.b16 %v1595, %v1593
  %v1662 = vpack.c.b16 %v1596, %v1594
  %v1663 = vpack.c.b16 %v1599, %v1597
  %v1664 = vpack.c.b16 %v1600, %v1598
  %v1665 = vpack.c.b16 %v1603, %v1601
  %v1666 = vpack.c.b16 %v1604, %v1602
  %v1667 = vpack.c.b16 %v1607, %v1605
  %v1668 = vpack.c.b16 %v1608, %v1606
  %v1669 = vpack.c.b16 %v1611, %v1609
  %v1670 = vpack.c.b16 %v1612, %v1610
  %v1671 = vpack.c.b16 %v1615, %v1613
  %v1672 = vpack.c.b16 %v1616, %v1614
  %v1673 = vpack.c.b16 %v1619, %v1617
  %v1674 = vpack.c.b16 %v1620, %v1618
  %v1675 = vpack.c.b16 %v1623, %v1621
  %v1676 = vpack.c.b16 %v1624, %v1622
  %v1677 = vpack.c.b16 %v1627, %v1625
  %v1678 = vpack.c.b16 %v1628, %v1626
  %v1679 = vpack.c.b16 %v1631, %v1629
  %v1680 = vpack.c.b16 %v1632, %v1630
  %v1681 = vpack.c.b16 %v1635, %v1633
  %v1682 = vpack.c.b16 %v1636, %v1634
  %v1683 = vpack.c.b16 %v1639, %v1637
  %v1684 = vpack.c.b16 %v1640, %v1638
  %v1685 = vpack.c.b16 %v1643, %v1641
  %v1686 = vpack.c.b16 %v1644, %v1642
  %v1687 = vpack.c.b16 %v1647, %v1645
  %v1688 = vpack.c.b16 %v1648, %v1646
  %v1689 = vpack.c.b16 %v1651, %v1649
  %v1690 = vpack.c.b16 %v1652, %v1650
  %v1691 = vpack.c.b16 %v1655, %v1653
  %v1692 = vpack.c.b16 %v1656, %v1654
  %v1712 = vsel %vm285, %v1658, 0
  %v1715 = vsel %vm285, %v1660, 0
  %v1718 = vsel %vm285, %v1662, 0
  %v1721 = vsel %vm285, %v1664, 0
  %v1724 = vsel %vm285, %v1666, 0
  %v1727 = vsel %vm285, %v1668, 0
  %v1730 = vsel %vm285, %v1670, 0
  %v1733 = vsel %vm285, %v1672, 0
  %v1736 = vsel %vm285, %v1674, 0
  %v1739 = vsel %vm285, %v1676, 0
  %v1742 = vsel %vm285, %v1678, 0
  %v1745 = vsel %vm285, %v1680, 0
  %v1748 = vsel %vm285, %v1682, 0
  %v1751 = vsel %vm285, %v1684, 0
  %v1754 = vsel %vm285, %v1686, 0
  %v1757 = vsel %vm285, %v1688, 0
  %v1760 = vsel %vm285, %v1690, 0
  %v1763 = vsel %vm285, %v1692, 0
  %1765 = vmatpush.bf16.msra.mxu0 %v274
  %1766 = vmatpush.bf16.msra.mxu0 %v273
  %1767 = vmatpush.bf16.msra.mxu0 %v272
  %1768 = vmatpush.bf16.msra.mxu0 %v271
  %1769 = vmatpush.bf16.msra.mxu0 %v270
  %1770 = vmatpush.bf16.msra.mxu0 %v269
  %1771 = vmatpush.bf16.msra.mxu0 %v268
  %1772 = vmatpush.bf16.msra.mxu0 %v267
  %1773 = vmatmul.bf16.gmra.mxu0 %v1657
  %v1774 = vpop.f32.mrf.mxu0
  %v1775 = vadd.f32 0.0, %v1774
  %v1776 = vpop.f32.mrf.mxu0
  %v1777 = vadd.f32 0.0, %v1776
  %1778 = vmatmul.bf16.gmra.mxu0 %v1659
  %v1779 = vpop.f32.mrf.mxu0
  %v1780 = vadd.f32 0.0, %v1779
  %v1781 = vpop.f32.mrf.mxu0
  %v1782 = vadd.f32 0.0, %v1781
  %1783 = vmatmul.bf16.gmra.mxu0 %v1661
  %v1784 = vpop.f32.mrf.mxu0
  %v1785 = vadd.f32 0.0, %v1784
  %v1786 = vpop.f32.mrf.mxu0
  %v1787 = vadd.f32 0.0, %v1786
  %1788 = vmatmul.bf16.gmra.mxu0 %v1663
  %v1789 = vpop.f32.mrf.mxu0
  %v1790 = vadd.f32 0.0, %v1789
  %v1791 = vpop.f32.mrf.mxu0
  %v1792 = vadd.f32 0.0, %v1791
  %1793 = vmatmul.bf16.gmra.mxu0 %v1665
  %v1794 = vpop.f32.mrf.mxu0
  %v1795 = vadd.f32 0.0, %v1794
  %v1796 = vpop.f32.mrf.mxu0
  %v1797 = vadd.f32 0.0, %v1796
  %1798 = vmatmul.bf16.gmra.mxu0 %v1667
  %v1799 = vpop.f32.mrf.mxu0
  %v1800 = vadd.f32 0.0, %v1799
  %v1801 = vpop.f32.mrf.mxu0
  %v1802 = vadd.f32 0.0, %v1801
  %1803 = vmatmul.bf16.gmra.mxu0 %v1669
  %v1804 = vpop.f32.mrf.mxu0
  %v1805 = vadd.f32 0.0, %v1804
  %v1806 = vpop.f32.mrf.mxu0
  %v1807 = vadd.f32 0.0, %v1806
  %1808 = vmatmul.bf16.gmra.mxu0 %v1671
  %v1809 = vpop.f32.mrf.mxu0
  %v1810 = vadd.f32 0.0, %v1809
  %v1811 = vpop.f32.mrf.mxu0
  %v1812 = vadd.f32 0.0, %v1811
  %1813 = vmatmul.bf16.gmra.mxu0 %v1673
  %v1814 = vpop.f32.mrf.mxu0
  %v1815 = vadd.f32 0.0, %v1814
  %v1816 = vpop.f32.mrf.mxu0
  %v1817 = vadd.f32 0.0, %v1816
  %1818 = vmatmul.bf16.gmra.mxu0 %v1675
  %v1819 = vpop.f32.mrf.mxu0
  %v1820 = vadd.f32 0.0, %v1819
  %v1821 = vpop.f32.mrf.mxu0
  %v1822 = vadd.f32 0.0, %v1821
  %1823 = vmatmul.bf16.gmra.mxu0 %v1677
  %v1824 = vpop.f32.mrf.mxu0
  %v1825 = vadd.f32 0.0, %v1824
  %v1826 = vpop.f32.mrf.mxu0
  %v1827 = vadd.f32 0.0, %v1826
  %1828 = vmatmul.bf16.gmra.mxu0 %v1679
  %v1829 = vpop.f32.mrf.mxu0
  %v1830 = vadd.f32 0.0, %v1829
  %v1831 = vpop.f32.mrf.mxu0
  %v1832 = vadd.f32 0.0, %v1831
  %1833 = vmatmul.bf16.gmra.mxu0 %v1681
  %v1834 = vpop.f32.mrf.mxu0
  %v1835 = vadd.f32 0.0, %v1834
  %v1836 = vpop.f32.mrf.mxu0
  %v1837 = vadd.f32 0.0, %v1836
  %1838 = vmatmul.bf16.gmra.mxu0 %v1683
  %v1839 = vpop.f32.mrf.mxu0
  %v1840 = vadd.f32 0.0, %v1839
  %v1841 = vpop.f32.mrf.mxu0
  %v1842 = vadd.f32 0.0, %v1841
  %1843 = vmatmul.bf16.gmra.mxu0 %v1685
  %v1844 = vpop.f32.mrf.mxu0
  %v1845 = vadd.f32 0.0, %v1844
  %v1846 = vpop.f32.mrf.mxu0
  %v1847 = vadd.f32 0.0, %v1846
  %1848 = vmatmul.bf16.gmra.mxu0 %v1687
  %v1849 = vpop.f32.mrf.mxu0
  %v1850 = vadd.f32 0.0, %v1849
  %v1851 = vpop.f32.mrf.mxu0
  %v1852 = vadd.f32 0.0, %v1851
  %1853 = vmatmul.bf16.gmra.mxu0 %v1689
  %v1854 = vpop.f32.mrf.mxu0
  %v1855 = vadd.f32 0.0, %v1854
  %v1856 = vpop.f32.mrf.mxu0
  %v1857 = vadd.f32 0.0, %v1856
  %1858 = vmatmul.bf16.gmra.mxu0 %v1691
  %v1859 = vpop.f32.mrf.mxu0
  %v1860 = vadd.f32 0.0, %v1859
  %v1861 = vpop.f32.mrf.mxu0
  %v1862 = vadd.f32 0.0, %v1861
  %1863 = vdwg.mxu0
  %1864 = vmatpush.bf16.msra.mxu0 0
  %1865 = vmatpush.bf16.msra.mxu0 0
  %1866 = vmatpush.bf16.msra.mxu0 0
  %1867 = vmatpush.bf16.msra.mxu0 0
  %1868 = vmatpush.bf16.msra.mxu0 0
  %1869 = vmatpush.bf16.msra.mxu0 0
  %1870 = vmatpush.bf16.msra.mxu0 0
  %1871 = vmatpush.bf16.msra.mxu0 %v275
  %1872 = vmatmul.bf16.gmra.mxu0 %v1712
  %v1873 = vpop.f32.mrf.mxu0
  %v1874 = vadd.f32 %v1775, %v1873
  %v1875 = vpop.f32.mrf.mxu0
  %v1876 = vadd.f32 %v1777, %v1875
  %1877 = vmatmul.bf16.gmra.mxu0 %v1715
  %v1878 = vpop.f32.mrf.mxu0
  %v1879 = vadd.f32 %v1780, %v1878
  %v1880 = vpop.f32.mrf.mxu0
  %v1881 = vadd.f32 %v1782, %v1880
  %1882 = vmatmul.bf16.gmra.mxu0 %v1718
  %v1883 = vpop.f32.mrf.mxu0
  %v1884 = vadd.f32 %v1785, %v1883
  %v1885 = vpop.f32.mrf.mxu0
  %v1886 = vadd.f32 %v1787, %v1885
  %1887 = vmatmul.bf16.gmra.mxu0 %v1721
  %v1888 = vpop.f32.mrf.mxu0
  %v1889 = vadd.f32 %v1790, %v1888
  %v1890 = vpop.f32.mrf.mxu0
  %v1891 = vadd.f32 %v1792, %v1890
  %1892 = vmatmul.bf16.gmra.mxu0 %v1724
  %v1893 = vpop.f32.mrf.mxu0
  %v1894 = vadd.f32 %v1795, %v1893
  %v1895 = vpop.f32.mrf.mxu0
  %v1896 = vadd.f32 %v1797, %v1895
  %1897 = vmatmul.bf16.gmra.mxu0 %v1727
  %v1898 = vpop.f32.mrf.mxu0
  %v1899 = vadd.f32 %v1800, %v1898
  %v1900 = vpop.f32.mrf.mxu0
  %v1901 = vadd.f32 %v1802, %v1900
  %1902 = vmatmul.bf16.gmra.mxu0 %v1730
  %v1903 = vpop.f32.mrf.mxu0
  %v1904 = vadd.f32 %v1805, %v1903
  %v1905 = vpop.f32.mrf.mxu0
  %v1906 = vadd.f32 %v1807, %v1905
  %1907 = vmatmul.bf16.gmra.mxu0 %v1733
  %v1908 = vpop.f32.mrf.mxu0
  %v1909 = vadd.f32 %v1810, %v1908
  %v1910 = vpop.f32.mrf.mxu0
  %v1911 = vadd.f32 %v1812, %v1910
  %1912 = vmatmul.bf16.gmra.mxu0 %v1736
  %v1913 = vpop.f32.mrf.mxu0
  %v1914 = vadd.f32 %v1815, %v1913
  %v1915 = vpop.f32.mrf.mxu0
  %v1916 = vadd.f32 %v1817, %v1915
  %1917 = vmatmul.bf16.gmra.mxu0 %v1739
  %v1918 = vpop.f32.mrf.mxu0
  %v1919 = vadd.f32 %v1820, %v1918
  %v1920 = vpop.f32.mrf.mxu0
  %v1921 = vadd.f32 %v1822, %v1920
  %1922 = vmatmul.bf16.gmra.mxu0 %v1742
  %v1923 = vpop.f32.mrf.mxu0
  %v1924 = vadd.f32 %v1825, %v1923
  %v1925 = vpop.f32.mrf.mxu0
  %v1926 = vadd.f32 %v1827, %v1925
  %1927 = vmatmul.bf16.gmra.mxu0 %v1745
  %v1928 = vpop.f32.mrf.mxu0
  %v1929 = vadd.f32 %v1830, %v1928
  %v1930 = vpop.f32.mrf.mxu0
  %v1931 = vadd.f32 %v1832, %v1930
  %1932 = vmatmul.bf16.gmra.mxu0 %v1748
  %v1933 = vpop.f32.mrf.mxu0
  %v1934 = vadd.f32 %v1835, %v1933
  %v1935 = vpop.f32.mrf.mxu0
  %v1936 = vadd.f32 %v1837, %v1935
  %1937 = vmatmul.bf16.gmra.mxu0 %v1751
  %v1938 = vpop.f32.mrf.mxu0
  %v1939 = vadd.f32 %v1840, %v1938
  %v1940 = vpop.f32.mrf.mxu0
  %v1941 = vadd.f32 %v1842, %v1940
  %1942 = vmatmul.bf16.gmra.mxu0 %v1754
  %v1943 = vpop.f32.mrf.mxu0
  %v1944 = vadd.f32 %v1845, %v1943
  %v1945 = vpop.f32.mrf.mxu0
  %v1946 = vadd.f32 %v1847, %v1945
  %1947 = vmatmul.bf16.gmra.mxu0 %v1757
  %v1948 = vpop.f32.mrf.mxu0
  %v1949 = vadd.f32 %v1850, %v1948
  %v1950 = vpop.f32.mrf.mxu0
  %v1951 = vadd.f32 %v1852, %v1950
  %1952 = vmatmul.bf16.gmra.mxu0 %v1760
  %v1953 = vpop.f32.mrf.mxu0
  %v1954 = vadd.f32 %v1855, %v1953
  %v1955 = vpop.f32.mrf.mxu0
  %v1956 = vadd.f32 %v1857, %v1955
  %1957 = vmatmul.bf16.gmra.mxu0 %v1763
  %v1958 = vpop.f32.mrf.mxu0
  %v1959 = vadd.f32 %v1860, %v1958
  %v1960 = vpop.f32.mrf.mxu0
  %v1961 = vadd.f32 %v1862, %v1960
  %1962 = vdwg.mxu0
  %v1963 = vmax.f32 %v1476, %v1874
  %v1964 = vmax.f32 %v1477, %v1876
  %v1965 = vmax.f32 %v1478, %v1879
  %v1966 = vmax.f32 %v1479, %v1881
  %v1967 = vmax.f32 %v1480, %v1884
  %v1968 = vmax.f32 %v1481, %v1886
  %v1969 = vmax.f32 %v1482, %v1889
  %v1970 = vmax.f32 %v1483, %v1891
  %v1971 = vmax.f32 %v1484, %v1894
  %v1972 = vmax.f32 %v1485, %v1896
  %v1973 = vmax.f32 %v1486, %v1899
  %v1974 = vmax.f32 %v1487, %v1901
  %v1975 = vmax.f32 %v1488, %v1904
  %v1976 = vmax.f32 %v1489, %v1906
  %v1977 = vmax.f32 %v1490, %v1909
  %v1978 = vmax.f32 %v1491, %v1911
  %v1979 = vmax.f32 %v1492, %v1914
  %v1980 = vmax.f32 %v1493, %v1916
  %v1981 = vmax.f32 %v1494, %v1919
  %v1982 = vmax.f32 %v1495, %v1921
  %v1983 = vmax.f32 %v1496, %v1924
  %v1984 = vmax.f32 %v1497, %v1926
  %v1985 = vmax.f32 %v1498, %v1929
  %v1986 = vmax.f32 %v1499, %v1931
  %v1987 = vmax.f32 %v1500, %v1934
  %v1988 = vmax.f32 %v1501, %v1936
  %v1989 = vmax.f32 %v1502, %v1939
  %v1990 = vmax.f32 %v1503, %v1941
  %v1991 = vmax.f32 %v1504, %v1944
  %v1992 = vmax.f32 %v1505, %v1946
  %v1993 = vmax.f32 %v1506, %v1949
  %v1994 = vmax.f32 %v1507, %v1951
  %v1995 = vmax.f32 %v1508, %v1954
  %v1996 = vmax.f32 %v1509, %v1956
  %v1997 = vmax.f32 %v1510, %v1959
  %v1998 = vmax.f32 %v1511, %v1961
  %v1999 = vld [vmem:[%s2] sm:$0x1]
  %v2001 = vperm.slane %v1999, 0
  %v2003 = vadd.f32 %v1963, %v2001
  %v2004 = vadd.f32 %v1964, %v2001
  %v2005 = vadd.f32 %v1965, %v2001
  %v2006 = vadd.f32 %v1966, %v2001
  %v2007 = vadd.f32 %v1967, %v2001
  %v2008 = vadd.f32 %v1968, %v2001
  %v2009 = vadd.f32 %v1969, %v2001
  %v2010 = vadd.f32 %v1970, %v2001
  %v2011 = vadd.f32 %v1971, %v2001
  %v2012 = vadd.f32 %v1972, %v2001
  %v2013 = vadd.f32 %v1973, %v2001
  %v2014 = vadd.f32 %v1974, %v2001
  %v2015 = vadd.f32 %v1975, %v2001
  %v2016 = vadd.f32 %v1976, %v2001
  %v2017 = vadd.f32 %v1977, %v2001
  %v2018 = vadd.f32 %v1978, %v2001
  %v2019 = vadd.f32 %v1979, %v2001
  %v2020 = vadd.f32 %v1980, %v2001
  %v2021 = vadd.f32 %v1981, %v2001
  %v2022 = vadd.f32 %v1982, %v2001
  %v2023 = vadd.f32 %v1983, %v2001
  %v2024 = vadd.f32 %v1984, %v2001
  %v2025 = vadd.f32 %v1985, %v2001
  %v2026 = vadd.f32 %v1986, %v2001
  %v2027 = vadd.f32 %v1987, %v2001
  %v2028 = vadd.f32 %v1988, %v2001
  %v2029 = vadd.f32 %v1989, %v2001
  %v2030 = vadd.f32 %v1990, %v2001
  %v2031 = vadd.f32 %v1991, %v2001
  %v2032 = vadd.f32 %v1992, %v2001
  %v2033 = vadd.f32 %v1993, %v2001
  %v2034 = vadd.f32 %v1994, %v2001
  %v2035 = vadd.f32 %v1995, %v2001
  %v2036 = vadd.f32 %v1996, %v2001
  %v2037 = vadd.f32 %v1997, %v2001
  %v2038 = vadd.f32 %v1998, %v2001
  %v2039 = vpack.c.bf16 %v2003, %v2003
  %v2040 = vpack.c.bf16 %v2004, %v2004
  %v2041 = vpack.c.bf16 %v2005, %v2005
  %v2042 = vpack.c.bf16 %v2006, %v2006
  %v2043 = vpack.c.bf16 %v2007, %v2007
  %v2044 = vpack.c.bf16 %v2008, %v2008
  %v2045 = vpack.c.bf16 %v2009, %v2009
  %v2046 = vpack.c.bf16 %v2010, %v2010
  %v2047 = vpack.c.bf16 %v2011, %v2011
  %v2048 = vpack.c.bf16 %v2012, %v2012
  %v2049 = vpack.c.bf16 %v2013, %v2013
  %v2050 = vpack.c.bf16 %v2014, %v2014
  %v2051 = vpack.c.bf16 %v2015, %v2015
  %v2052 = vpack.c.bf16 %v2016, %v2016
  %v2053 = vpack.c.bf16 %v2017, %v2017
  %v2054 = vpack.c.bf16 %v2018, %v2018
  %v2055 = vpack.c.bf16 %v2019, %v2019
  %v2056 = vpack.c.bf16 %v2020, %v2020
  %v2057 = vpack.c.bf16 %v2021, %v2021
  %v2058 = vpack.c.bf16 %v2022, %v2022
  %v2059 = vpack.c.bf16 %v2023, %v2023
  %v2060 = vpack.c.bf16 %v2024, %v2024
  %v2061 = vpack.c.bf16 %v2025, %v2025
  %v2062 = vpack.c.bf16 %v2026, %v2026
  %v2063 = vpack.c.bf16 %v2027, %v2027
  %v2064 = vpack.c.bf16 %v2028, %v2028
  %v2065 = vpack.c.bf16 %v2029, %v2029
  %v2066 = vpack.c.bf16 %v2030, %v2030
  %v2067 = vpack.c.bf16 %v2031, %v2031
  %v2068 = vpack.c.bf16 %v2032, %v2032
  %v2069 = vpack.c.bf16 %v2033, %v2033
  %v2070 = vpack.c.bf16 %v2034, %v2034
  %v2071 = vpack.c.bf16 %v2035, %v2035
  %v2072 = vpack.c.bf16 %v2036, %v2036
  %v2073 = vpack.c.bf16 %v2037, %v2037
  %v2074 = vpack.c.bf16 %v2038, %v2038
  %vm2075 = vcmask 257024
  %2076 = vst.msk [vmem:[%s3] sm:$0xf] %vm2075, %v2039
  %2077 = vst.msk [vmem:[%s3 + $0x4] sm:$0xf] %vm2075, %v2040
  %2078 = vst.msk [vmem:[%s3 + $0x8] sm:$0xf] %vm2075, %v2041
  %2079 = vst.msk [vmem:[%s3 + $0xc] sm:$0xf] %vm2075, %v2042
  %2080 = vst.msk [vmem:[%s3 + $0x10] sm:$0xf] %vm2075, %v2043
  %2081 = vst.msk [vmem:[%s3 + $0x14] sm:$0xf] %vm2075, %v2044
  %2082 = vst.msk [vmem:[%s3 + $0x18] sm:$0xf] %vm2075, %v2045
  %2083 = vst.msk [vmem:[%s3 + $0x1c] sm:$0xf] %vm2075, %v2046
  %2084 = vst.msk [vmem:[%s3 + $0x20] sm:$0xf] %vm2075, %v2047
  %2085 = vst.msk [vmem:[%s3 + $0x24] sm:$0xf] %vm2075, %v2048
  %2086 = vst.msk [vmem:[%s3 + $0x28] sm:$0xf] %vm2075, %v2049
  %2087 = vst.msk [vmem:[%s3 + $0x2c] sm:$0xf] %vm2075, %v2050
  %2088 = vst.msk [vmem:[%s3 + $0x30] sm:$0xf] %vm2075, %v2051
  %2089 = vst.msk [vmem:[%s3 + $0x34] sm:$0xf] %vm2075, %v2052
  %2090 = vst.msk [vmem:[%s3 + $0x38] sm:$0xf] %vm2075, %v2053
  %2091 = vst.msk [vmem:[%s3 + $0x3c] sm:$0xf] %vm2075, %v2054
  %2092 = vst.msk [vmem:[%s3 + $0x40] sm:$0xf] %vm2075, %v2055
  %2093 = vst.msk [vmem:[%s3 + $0x44] sm:$0xf] %vm2075, %v2056
  %2094 = vst.msk [vmem:[%s3 + $0x48] sm:$0xf] %vm2075, %v2057
  %2095 = vst.msk [vmem:[%s3 + $0x4c] sm:$0xf] %vm2075, %v2058
  %2096 = vst.msk [vmem:[%s3 + $0x50] sm:$0xf] %vm2075, %v2059
  %2097 = vst.msk [vmem:[%s3 + $0x54] sm:$0xf] %vm2075, %v2060
  %2098 = vst.msk [vmem:[%s3 + $0x58] sm:$0xf] %vm2075, %v2061
  %2099 = vst.msk [vmem:[%s3 + $0x5c] sm:$0xf] %vm2075, %v2062
  %2100 = vst.msk [vmem:[%s3 + $0x60] sm:$0xf] %vm2075, %v2063
  %2101 = vst.msk [vmem:[%s3 + $0x64] sm:$0xf] %vm2075, %v2064
  %2102 = vst.msk [vmem:[%s3 + $0x68] sm:$0xf] %vm2075, %v2065
  %2103 = vst.msk [vmem:[%s3 + $0x6c] sm:$0xf] %vm2075, %v2066
  %2104 = vst.msk [vmem:[%s3 + $0x70] sm:$0xf] %vm2075, %v2067
  %2105 = vst.msk [vmem:[%s3 + $0x74] sm:$0xf] %vm2075, %v2068
  %2106 = vst.msk [vmem:[%s3 + $0x78] sm:$0xf] %vm2075, %v2069
  %2107 = vst.msk [vmem:[%s3 + $0x7c] sm:$0xf] %vm2075, %v2070
  %2108 = vst.msk [vmem:[%s3 + $0x80] sm:$0xf] %vm2075, %v2071
  %2109 = vst.msk [vmem:[%s3 + $0x84] sm:$0xf] %vm2075, %v2072
  %2110 = vst.msk [vmem:[%s3 + $0x88] sm:$0xf] %vm2075, %v2073
  %2111 = vst.msk [vmem:[%s3 + $0x8c] sm:$0xf] %vm2075, %v2074
  // Predicated region
  $region14: #{mnist_net_forward.4} parent=0 // pred_check
    _
  $region15: #{mnist_net_forward.4} parent=0 // pred_check_branch
    %2113 = sbr.rel (0) target = $region17
  $region16: #{mnist_net_forward.4} parent=0 // pred_region
    _
  $region17: #{mnist_net_forward.4} parent=0 // pred_fallthru
    _
  // Predicated region
  $region18: #{mnist_net_forward.4} parent=0 // pred_check
    _
  $region19: #{mnist_net_forward.4} parent=0 // pred_check_branch
    %2115 = sbr.rel (0) target = $region21
  $region20: #{mnist_net_forward.4} parent=0 // pred_region
    _
  $region21: #{mnist_net_forward.4} parent=0 // pred_fallthru
    _

// kernel: mnist_net_forward.5
$region0: #{mnist_net_forward.5}
  #allocation0 [shape = 'u32[]', space=smem, size = 0x4, offset = 0x4, fixed_abs, tag = 'smem constant byte address 0x4 - core index']
  #allocation1 [shape = 'u32[72,128]{1,0:T(1,128)}', space=vmem, size = 0x9000, scoped, tag = 'internal scratch']
  %s0 = inlined_call_operand.vmem [shape: bf16[2,4608], index: 0, kind: input, shape index: {}]
  %s1 = inlined_call_operand.vmem [shape: bf16[4608,64], index: 1, kind: input, shape index: {}]
  %s2 = inlined_call_operand.vmem [shape: f32[1,64], index: 2, kind: input, shape index: {}]
  %s3 = inlined_call_operand.vmem [shape: bf16[64,10], index: 3, kind: input, shape index: {}]
  %s4 = inlined_call_operand.vmem [shape: f32[1,10], index: 4, kind: input, shape index: {}]
  %s5 = inlined_call_operand.hbm [shape: f32[2,10], index: 5, kind: output, shape index: {}]
  %s6 = sld [smem:[#allocation0]]
  $region30: #{mnist_net_forward.5} parent=0
    _
  %s8 = ssub.s32 1, %s6
  %s9 = scalar_select 0, %s8, %s6
  $region1: #{mnist_net_forward.5} parent=0
    #allocation2 [shape = 'u8[1024]{0}', space=vmem, size = 0x400, scoped, tag = 'output window, operand 0, single buffered']
    #allocation3 [shape = 's32[1]{0}', space=sflag, size = 0x4, scoped, tag = 'scoped memory for mnist_net_forward.5']
    %10 = vsyncpa [#allocation3], 0
    // Predicated region
    $region2: #{mnist_net_forward.5} parent=1 // pred_check
      _
    $region3: #{mnist_net_forward.5} parent=1 // pred_check_branch
      %12 = sbr.rel (0) target = $region5
    $region4: #{mnist_net_forward.5} parent=1 // pred_region
      _
    $region5: #{mnist_net_forward.5} parent=1 // pred_fallthru
      _
    // Predicated region
    $region6: #{mnist_net_forward.5} parent=1 // pred_check
      _
    $region7: #{mnist_net_forward.5} parent=1 // pred_check_branch
      %14 = sbr.rel (0) target = $region9
    $region8: #{mnist_net_forward.5} parent=1 // pred_region
      _
    $region9: #{mnist_net_forward.5} parent=1 // pred_fallthru
      _
    // Predicated region
    $region10: #{mnist_net_forward.5} parent=1 // pred_check
      _
    $region11: #{mnist_net_forward.5} parent=1 // pred_check_branch
      %16 = sbr.rel (0) target = $region13
    $region12: #{mnist_net_forward.5} parent=1 // pred_region
      _
    $region13: #{mnist_net_forward.5} parent=1 // pred_fallthru
      _
    // Predicated region
    $region14: #{mnist_net_forward.5} parent=1 // pred_check
      _
    $region15: #{mnist_net_forward.5} parent=1 // pred_check_branch
      %18 = sbr.rel (0) target = $region17
    $region16: #{mnist_net_forward.5} parent=1 // pred_region
      _
    $region17: #{mnist_net_forward.5} parent=1 // pred_fallthru
      _
    // Predicated region
    $region18: #{mnist_net_forward.5} parent=1 // pred_check
      _
    $region19: #{mnist_net_forward.5} parent=1 // pred_check_branch
      %20 = sbr.rel (0) target = $region21
    $region20: #{mnist_net_forward.5} parent=1 // pred_region
      _
    $region21: #{mnist_net_forward.5} parent=1 // pred_fallthru
      _
    %v22 = vld [vmem:[%s0] sm:$0xff]
    %v23 = vld [vmem:[%s0 + $0x8] sm:$0xff]
    %v24 = vld [vmem:[%s0 + $0x10] sm:$0xff]
    %v25 = vld [vmem:[%s0 + $0x18] sm:$0xff]
    %v26 = vld [vmem:[%s0 + $0x20] sm:$0xf]
    %v27 = vld [vmem:[%s1] sm:$0xf]
    %v28 = vld [vmem:[%s1 + $0x4] sm:$0xf]
    %v29 = vld [vmem:[%s1 + $0x8] sm:$0xf]
    %v30 = vld [vmem:[%s1 + $0xc] sm:$0xf]
    %v31 = vld [vmem:[%s1 + $0x10] sm:$0xf]
    %v32 = vld [vmem:[%s1 + $0x14] sm:$0xf]
    %v33 = vld [vmem:[%s1 + $0x18] sm:$0xf]
    %v34 = vld [vmem:[%s1 + $0x1c] sm:$0xf]
    %v35 = vld [vmem:[%s1 + $0x20] sm:$0xf]
    %v36 = vld [vmem:[%s1 + $0x24] sm:$0xf]
    %v37 = vld [vmem:[%s1 + $0x28] sm:$0xf]
    %v38 = vld [vmem:[%s1 + $0x2c] sm:$0xf]
    %v39 = vld [vmem:[%s1 + $0x30] sm:$0xf]
    %v40 = vld [vmem:[%s1 + $0x34] sm:$0xf]
    %v41 = vld [vmem:[%s1 + $0x38] sm:$0xf]
    %v42 = vld [vmem:[%s1 + $0x3c] sm:$0xf]
    %v43 = vld [vmem:[%s1 + $0x40] sm:$0xf]
    %v44 = vld [vmem:[%s1 + $0x44] sm:$0xf]
    %v45 = vld [vmem:[%s1 + $0x48] sm:$0xf]
    %v46 = vld [vmem:[%s1 + $0x4c] sm:$0xf]
    %v47 = vld [vmem:[%s1 + $0x50] sm:$0xf]
    %v48 = vld [vmem:[%s1 + $0x54] sm:$0xf]
    %v49 = vld [vmem:[%s1 + $0x58] sm:$0xf]
    %v50 = vld [vmem:[%s1 + $0x5c] sm:$0xf]
    %v51 = vld [vmem:[%s1 + $0x60] sm:$0xf]
    %v52 = vld [vmem:[%s1 + $0x64] sm:$0xf]
    %v53 = vld [vmem:[%s1 + $0x68] sm:$0xf]
    %v54 = vld [vmem:[%s1 + $0x6c] sm:$0xf]
    %v55 = vld [vmem:[%s1 + $0x70] sm:$0xf]
    %v56 = vld [vmem:[%s1 + $0x74] sm:$0xf]
    %v57 = vld [vmem:[%s1 + $0x78] sm:$0xf]
    %v58 = vld [vmem:[%s1 + $0x7c] sm:$0xf]
    %v59 = vld [vmem:[%s1 + $0x80] sm:$0xf]
    %v60 = vld [vmem:[%s1 + $0x84] sm:$0xf]
    %v61 = vld [vmem:[%s1 + $0x88] sm:$0xf]
    %v62 = vld [vmem:[%s1 + $0x8c] sm:$0xf]
    %v63 = vld [vmem:[%s1 + $0x90] sm:$0xf]
    %v64 = vld [vmem:[%s1 + $0x94] sm:$0xf]
    %v65 = vld [vmem:[%s1 + $0x98] sm:$0xf]
    %v66 = vld [vmem:[%s1 + $0x9c] sm:$0xf]
    %v67 = vld [vmem:[%s1 + $0xa0] sm:$0xf]
    %v68 = vld [vmem:[%s1 + $0xa4] sm:$0xf]
    %v69 = vld [vmem:[%s1 + $0xa8] sm:$0xf]
    %v70 = vld [vmem:[%s1 + $0xac] sm:$0xf]
    %v71 = vld [vmem:[%s1 + $0xb0] sm:$0xf]
    %v72 = vld [vmem:[%s1 + $0xb4] sm:$0xf]
    %v73 = vld [vmem:[%s1 + $0xb8] sm:$0xf]
    %v74 = vld [vmem:[%s1 + $0xbc] sm:$0xf]
    %v75 = vld [vmem:[%s1 + $0xc0] sm:$0xf]
    %v76 = vld [vmem:[%s1 + $0xc4] sm:$0xf]
    %v77 = vld [vmem:[%s1 + $0xc8] sm:$0xf]
    %v78 = vld [vmem:[%s1 + $0xcc] sm:$0xf]
    %v79 = vld [vmem:[%s1 + $0xd0] sm:$0xf]
    %v80 = vld [vmem:[%s1 + $0xd4] sm:$0xf]
    %v81 = vld [vmem:[%s1 + $0xd8] sm:$0xf]
    %v82 = vld [vmem:[%s1 + $0xdc] sm:$0xf]
    %v83 = vld [vmem:[%s1 + $0xe0] sm:$0xf]
    %v84 = vld [vmem:[%s1 + $0xe4] sm:$0xf]
    %v85 = vld [vmem:[%s1 + $0xe8] sm:$0xf]
    %v86 = vld [vmem:[%s1 + $0xec] sm:$0xf]
    %v87 = vld [vmem:[%s1 + $0xf0] sm:$0xf]
    %v88 = vld [vmem:[%s1 + $0xf4] sm:$0xf]
    %v89 = vld [vmem:[%s1 + $0xf8] sm:$0xf]
    %v90 = vld [vmem:[%s1 + $0xfc] sm:$0xf]
    %v91 = vld [vmem:[%s1 + $0x100] sm:$0xf]
    %v92 = vld [vmem:[%s1 + $0x104] sm:$0xf]
    %v93 = vld [vmem:[%s1 + $0x108] sm:$0xf]
    %v94 = vld [vmem:[%s1 + $0x10c] sm:$0xf]
    %v95 = vld [vmem:[%s1 + $0x110] sm:$0xf]
    %v96 = vld [vmem:[%s1 + $0x114] sm:$0xf]
    %v97 = vld [vmem:[%s1 + $0x118] sm:$0xf]
    %v98 = vld [vmem:[%s1 + $0x11c] sm:$0xf]
    %v99 = vld [vmem:[%s1 + $0x120] sm:$0xf]
    %v100 = vld [vmem:[%s1 + $0x124] sm:$0xf]
    %v101 = vld [vmem:[%s1 + $0x128] sm:$0xf]
    %v102 = vld [vmem:[%s1 + $0x12c] sm:$0xf]
    %v103 = vld [vmem:[%s1 + $0x130] sm:$0xf]
    %v104 = vld [vmem:[%s1 + $0x134] sm:$0xf]
    %v105 = vld [vmem:[%s1 + $0x138] sm:$0xf]
    %v106 = vld [vmem:[%s1 + $0x13c] sm:$0xf]
    %v107 = vld [vmem:[%s1 + $0x140] sm:$0xf]
    %v108 = vld [vmem:[%s1 + $0x144] sm:$0xf]
    %v109 = vld [vmem:[%s1 + $0x148] sm:$0xf]
    %v110 = vld [vmem:[%s1 + $0x14c] sm:$0xf]
    %v111 = vld [vmem:[%s1 + $0x150] sm:$0xf]
    %v112 = vld [vmem:[%s1 + $0x154] sm:$0xf]
    %v113 = vld [vmem:[%s1 + $0x158] sm:$0xf]
    %v114 = vld [vmem:[%s1 + $0x15c] sm:$0xf]
    %v115 = vld [vmem:[%s1 + $0x160] sm:$0xf]
    %v116 = vld [vmem:[%s1 + $0x164] sm:$0xf]
    %v117 = vld [vmem:[%s1 + $0x168] sm:$0xf]
    %v118 = vld [vmem:[%s1 + $0x16c] sm:$0xf]
    %v119 = vld [vmem:[%s1 + $0x170] sm:$0xf]
    %v120 = vld [vmem:[%s1 + $0x174] sm:$0xf]
    %v121 = vld [vmem:[%s1 + $0x178] sm:$0xf]
    %v122 = vld [vmem:[%s1 + $0x17c] sm:$0xf]
    %v123 = vld [vmem:[%s1 + $0x180] sm:$0xf]
    %v124 = vld [vmem:[%s1 + $0x184] sm:$0xf]
    %v125 = vld [vmem:[%s1 + $0x188] sm:$0xf]
    %v126 = vld [vmem:[%s1 + $0x18c] sm:$0xf]
    %v127 = vld [vmem:[%s1 + $0x190] sm:$0xf]
    %v128 = vld [vmem:[%s1 + $0x194] sm:$0xf]
    %v129 = vld [vmem:[%s1 + $0x198] sm:$0xf]
    %v130 = vld [vmem:[%s1 + $0x19c] sm:$0xf]
    %v131 = vld [vmem:[%s1 + $0x1a0] sm:$0xf]
    %v132 = vld [vmem:[%s1 + $0x1a4] sm:$0xf]
    %v133 = vld [vmem:[%s1 + $0x1a8] sm:$0xf]
    %v134 = vld [vmem:[%s1 + $0x1ac] sm:$0xf]
    %v135 = vld [vmem:[%s1 + $0x1b0] sm:$0xf]
    %v136 = vld [vmem:[%s1 + $0x1b4] sm:$0xf]
    %v137 = vld [vmem:[%s1 + $0x1b8] sm:$0xf]
    %v138 = vld [vmem:[%s1 + $0x1bc] sm:$0xf]
    %v139 = vld [vmem:[%s1 + $0x1c0] sm:$0xf]
    %v140 = vld [vmem:[%s1 + $0x1c4] sm:$0xf]
    %v141 = vld [vmem:[%s1 + $0x1c8] sm:$0xf]
    %v142 = vld [vmem:[%s1 + $0x1cc] sm:$0xf]
    %v143 = vld [vmem:[%s1 + $0x1d0] sm:$0xf]
    %v144 = vld [vmem:[%s1 + $0x1d4] sm:$0xf]
    %v145 = vld [vmem:[%s1 + $0x1d8] sm:$0xf]
    %v146 = vld [vmem:[%s1 + $0x1dc] sm:$0xf]
    %v147 = vld [vmem:[%s1 + $0x1e0] sm:$0xf]
    %v148 = vld [vmem:[%s1 + $0x1e4] sm:$0xf]
    %v149 = vld [vmem:[%s1 + $0x1e8] sm:$0xf]
    %v150 = vld [vmem:[%s1 + $0x1ec] sm:$0xf]
    %v151 = vld [vmem:[%s1 + $0x1f0] sm:$0xf]
    %v152 = vld [vmem:[%s1 + $0x1f4] sm:$0xf]
    %v153 = vld [vmem:[%s1 + $0x1f8] sm:$0xf]
    %v154 = vld [vmem:[%s1 + $0x1fc] sm:$0xf]
    %v155 = vld [vmem:[%s1 + $0x200] sm:$0xf]
    %v156 = vld [vmem:[%s1 + $0x204] sm:$0xf]
    %v157 = vld [vmem:[%s1 + $0x208] sm:$0xf]
    %v158 = vld [vmem:[%s1 + $0x20c] sm:$0xf]
    %v159 = vld [vmem:[%s1 + $0x210] sm:$0xf]
    %v160 = vld [vmem:[%s1 + $0x214] sm:$0xf]
    %v161 = vld [vmem:[%s1 + $0x218] sm:$0xf]
    %v162 = vld [vmem:[%s1 + $0x21c] sm:$0xf]
    %v163 = vld [vmem:[%s1 + $0x220] sm:$0xf]
    %v164 = vld [vmem:[%s1 + $0x224] sm:$0xf]
    %v165 = vld [vmem:[%s1 + $0x228] sm:$0xf]
    %v166 = vld [vmem:[%s1 + $0x22c] sm:$0xf]
    %v167 = vld [vmem:[%s1 + $0x230] sm:$0xf]
    %v168 = vld [vmem:[%s1 + $0x234] sm:$0xf]
    %v169 = vld [vmem:[%s1 + $0x238] sm:$0xf]
    %v170 = vld [vmem:[%s1 + $0x23c] sm:$0xf]
    %v171 = vld [vmem:[%s1 + $0x240] sm:$0xf]
    %v172 = vld [vmem:[%s1 + $0x244] sm:$0xf]
    %v173 = vld [vmem:[%s1 + $0x248] sm:$0xf]
    %v174 = vld [vmem:[%s1 + $0x24c] sm:$0xf]
    %v175 = vld [vmem:[%s1 + $0x250] sm:$0xf]
    %v176 = vld [vmem:[%s1 + $0x254] sm:$0xf]
    %v177 = vld [vmem:[%s1 + $0x258] sm:$0xf]
    %v178 = vld [vmem:[%s1 + $0x25c] sm:$0xf]
    %v179 = vld [vmem:[%s1 + $0x260] sm:$0xf]
    %v180 = vld [vmem:[%s1 + $0x264] sm:$0xf]
    %v181 = vld [vmem:[%s1 + $0x268] sm:$0xf]
    %v182 = vld [vmem:[%s1 + $0x26c] sm:$0xf]
    %v183 = vld [vmem:[%s1 + $0x270] sm:$0xf]
    %v184 = vld [vmem:[%s1 + $0x274] sm:$0xf]
    %v185 = vld [vmem:[%s1 + $0x278] sm:$0xf]
    %v186 = vld [vmem:[%s1 + $0x27c] sm:$0xf]
    %v187 = vld [vmem:[%s1 + $0x280] sm:$0xf]
    %v188 = vld [vmem:[%s1 + $0x284] sm:$0xf]
    %v189 = vld [vmem:[%s1 + $0x288] sm:$0xf]
    %v190 = vld [vmem:[%s1 + $0x28c] sm:$0xf]
    %v191 = vld [vmem:[%s1 + $0x290] sm:$0xf]
    %v192 = vld [vmem:[%s1 + $0x294] sm:$0xf]
    %v193 = vld [vmem:[%s1 + $0x298] sm:$0xf]
    %v194 = vld [vmem:[%s1 + $0x29c] sm:$0xf]
    %v195 = vld [vmem:[%s1 + $0x2a0] sm:$0xf]
    %v196 = vld [vmem:[%s1 + $0x2a4] sm:$0xf]
    %v197 = vld [vmem:[%s1 + $0x2a8] sm:$0xf]
    %v198 = vld [vmem:[%s1 + $0x2ac] sm:$0xf]
    %v199 = vld [vmem:[%s1 + $0x2b0] sm:$0xf]
    %v200 = vld [vmem:[%s1 + $0x2b4] sm:$0xf]
    %v201 = vld [vmem:[%s1 + $0x2b8] sm:$0xf]
    %v202 = vld [vmem:[%s1 + $0x2bc] sm:$0xf]
    %v203 = vld [vmem:[%s1 + $0x2c0] sm:$0xf]
    %v204 = vld [vmem:[%s1 + $0x2c4] sm:$0xf]
    %v205 = vld [vmem:[%s1 + $0x2c8] sm:$0xf]
    %v206 = vld [vmem:[%s1 + $0x2cc] sm:$0xf]
    %v207 = vld [vmem:[%s1 + $0x2d0] sm:$0xf]
    %v208 = vld [vmem:[%s1 + $0x2d4] sm:$0xf]
    %v209 = vld [vmem:[%s1 + $0x2d8] sm:$0xf]
    %v210 = vld [vmem:[%s1 + $0x2dc] sm:$0xf]
    %v211 = vld [vmem:[%s1 + $0x2e0] sm:$0xf]
    %v212 = vld [vmem:[%s1 + $0x2e4] sm:$0xf]
    %v213 = vld [vmem:[%s1 + $0x2e8] sm:$0xf]
    %v214 = vld [vmem:[%s1 + $0x2ec] sm:$0xf]
    %v215 = vld [vmem:[%s1 + $0x2f0] sm:$0xf]
    %v216 = vld [vmem:[%s1 + $0x2f4] sm:$0xf]
    %v217 = vld [vmem:[%s1 + $0x2f8] sm:$0xf]
    %v218 = vld [vmem:[%s1 + $0x2fc] sm:$0xf]
    %v219 = vld [vmem:[%s1 + $0x300] sm:$0xf]
    %v220 = vld [vmem:[%s1 + $0x304] sm:$0xf]
    %v221 = vld [vmem:[%s1 + $0x308] sm:$0xf]
    %v222 = vld [vmem:[%s1 + $0x30c] sm:$0xf]
    %v223 = vld [vmem:[%s1 + $0x310] sm:$0xf]
    %v224 = vld [vmem:[%s1 + $0x314] sm:$0xf]
    %v225 = vld [vmem:[%s1 + $0x318] sm:$0xf]
    %v226 = vld [vmem:[%s1 + $0x31c] sm:$0xf]
    %v227 = vld [vmem:[%s1 + $0x320] sm:$0xf]
    %v228 = vld [vmem:[%s1 + $0x324] sm:$0xf]
    %v229 = vld [vmem:[%s1 + $0x328] sm:$0xf]
    %v230 = vld [vmem:[%s1 + $0x32c] sm:$0xf]
    %v231 = vld [vmem:[%s1 + $0x330] sm:$0xf]
    %v232 = vld [vmem:[%s1 + $0x334] sm:$0xf]
    %v233 = vld [vmem:[%s1 + $0x338] sm:$0xf]
    %v234 = vld [vmem:[%s1 + $0x33c] sm:$0xf]
    %v235 = vld [vmem:[%s1 + $0x340] sm:$0xf]
    %v236 = vld [vmem:[%s1 + $0x344] sm:$0xf]
    %v237 = vld [vmem:[%s1 + $0x348] sm:$0xf]
    %v238 = vld [vmem:[%s1 + $0x34c] sm:$0xf]
    %v239 = vld [vmem:[%s1 + $0x350] sm:$0xf]
    %v240 = vld [vmem:[%s1 + $0x354] sm:$0xf]
    %v241 = vld [vmem:[%s1 + $0x358] sm:$0xf]
    %v242 = vld [vmem:[%s1 + $0x35c] sm:$0xf]
    %v243 = vld [vmem:[%s1 + $0x360] sm:$0xf]
    %v244 = vld [vmem:[%s1 + $0x364] sm:$0xf]
    %v245 = vld [vmem:[%s1 + $0x368] sm:$0xf]
    %v246 = vld [vmem:[%s1 + $0x36c] sm:$0xf]
    %v247 = vld [vmem:[%s1 + $0x370] sm:$0xf]
    %v248 = vld [vmem:[%s1 + $0x374] sm:$0xf]
    %v249 = vld [vmem:[%s1 + $0x378] sm:$0xf]
    %v250 = vld [vmem:[%s1 + $0x37c] sm:$0xf]
    %v251 = vld [vmem:[%s1 + $0x380] sm:$0xf]
    %v252 = vld [vmem:[%s1 + $0x384] sm:$0xf]
    %v253 = vld [vmem:[%s1 + $0x388] sm:$0xf]
    %v254 = vld [vmem:[%s1 + $0x38c] sm:$0xf]
    %v255 = vld [vmem:[%s1 + $0x390] sm:$0xf]
    %v256 = vld [vmem:[%s1 + $0x394] sm:$0xf]
    %v257 = vld [vmem:[%s1 + $0x398] sm:$0xf]
    %v258 = vld [vmem:[%s1 + $0x39c] sm:$0xf]
    %v259 = vld [vmem:[%s1 + $0x3a0] sm:$0xf]
    %v260 = vld [vmem:[%s1 + $0x3a4] sm:$0xf]
    %v261 = vld [vmem:[%s1 + $0x3a8] sm:$0xf]
    %v262 = vld [vmem:[%s1 + $0x3ac] sm:$0xf]
    %v263 = vld [vmem:[%s1 + $0x3b0] sm:$0xf]
    %v264 = vld [vmem:[%s1 + $0x3b4] sm:$0xf]
    %v265 = vld [vmem:[%s1 + $0x3b8] sm:$0xf]
    %v266 = vld [vmem:[%s1 + $0x3bc] sm:$0xf]
    %v267 = vld [vmem:[%s1 + $0x3c0] sm:$0xf]
    %v268 = vld [vmem:[%s1 + $0x3c4] sm:$0xf]
    %v269 = vld [vmem:[%s1 + $0x3c8] sm:$0xf]
    %v270 = vld [vmem:[%s1 + $0x3cc] sm:$0xf]
    %v271 = vld [vmem:[%s1 + $0x3d0] sm:$0xf]
    %v272 = vld [vmem:[%s1 + $0x3d4] sm:$0xf]
    %v273 = vld [vmem:[%s1 + $0x3d8] sm:$0xf]
    %v274 = vld [vmem:[%s1 + $0x3dc] sm:$0xf]
    %v275 = vld [vmem:[%s1 + $0x3e0] sm:$0xf]
    %v276 = vld [vmem:[%s1 + $0x3e4] sm:$0xf]
    %v277 = vld [vmem:[%s1 + $0x3e8] sm:$0xf]
    %v278 = vld [vmem:[%s1 + $0x3ec] sm:$0xf]
    %v279 = vld [vmem:[%s1 + $0x3f0] sm:$0xf]
    %v280 = vld [vmem:[%s1 + $0x3f4] sm:$0xf]
    %v281 = vld [vmem:[%s1 + $0x3f8] sm:$0xf]
    %v282 = vld [vmem:[%s1 + $0x3fc] sm:$0xf]
    %v283 = vld [vmem:[%s1 + $0x400] sm:$0xf]
    %v284 = vld [vmem:[%s1 + $0x404] sm:$0xf]
    %v285 = vld [vmem:[%s1 + $0x408] sm:$0xf]
    %v286 = vld [vmem:[%s1 + $0x40c] sm:$0xf]
    %v287 = vld [vmem:[%s1 + $0x410] sm:$0xf]
    %v288 = vld [vmem:[%s1 + $0x414] sm:$0xf]
    %v289 = vld [vmem:[%s1 + $0x418] sm:$0xf]
    %v290 = vld [vmem:[%s1 + $0x41c] sm:$0xf]
    %v291 = vld [vmem:[%s1 + $0x420] sm:$0xf]
    %v292 = vld [vmem:[%s1 + $0x424] sm:$0xf]
    %v293 = vld [vmem:[%s1 + $0x428] sm:$0xf]
    %v294 = vld [vmem:[%s1 + $0x42c] sm:$0xf]
    %v295 = vld [vmem:[%s1 + $0x430] sm:$0xf]
    %v296 = vld [vmem:[%s1 + $0x434] sm:$0xf]
    %v297 = vld [vmem:[%s1 + $0x438] sm:$0xf]
    %v298 = vld [vmem:[%s1 + $0x43c] sm:$0xf]
    %v299 = vld [vmem:[%s1 + $0x440] sm:$0xf]
    %v300 = vld [vmem:[%s1 + $0x444] sm:$0xf]
    %v301 = vld [vmem:[%s1 + $0x448] sm:$0xf]
    %v302 = vld [vmem:[%s1 + $0x44c] sm:$0xf]
    %v303 = vld [vmem:[%s1 + $0x450] sm:$0xf]
    %v304 = vld [vmem:[%s1 + $0x454] sm:$0xf]
    %v305 = vld [vmem:[%s1 + $0x458] sm:$0xf]
    %v306 = vld [vmem:[%s1 + $0x45c] sm:$0xf]
    %v307 = vld [vmem:[%s1 + $0x460] sm:$0xf]
    %v308 = vld [vmem:[%s1 + $0x464] sm:$0xf]
    %v309 = vld [vmem:[%s1 + $0x468] sm:$0xf]
    %v310 = vld [vmem:[%s1 + $0x46c] sm:$0xf]
    %v311 = vld [vmem:[%s1 + $0x470] sm:$0xf]
    %v312 = vld [vmem:[%s1 + $0x474] sm:$0xf]
    %v313 = vld [vmem:[%s1 + $0x478] sm:$0xf]
    %v314 = vld [vmem:[%s1 + $0x47c] sm:$0xf]
    %v315 = vld [vmem:[%s1 + $0x480] sm:$0xf]
    %v316 = vld [vmem:[%s1 + $0x484] sm:$0xf]
    %v317 = vld [vmem:[%s1 + $0x488] sm:$0xf]
    %v318 = vld [vmem:[%s1 + $0x48c] sm:$0xf]
    %v319 = vld [vmem:[%s1 + $0x490] sm:$0xf]
    %v320 = vld [vmem:[%s1 + $0x494] sm:$0xf]
    %v321 = vld [vmem:[%s1 + $0x498] sm:$0xf]
    %v322 = vld [vmem:[%s1 + $0x49c] sm:$0xf]
    %v323 = vld [vmem:[%s1 + $0x4a0] sm:$0xf]
    %v324 = vld [vmem:[%s1 + $0x4a4] sm:$0xf]
    %v325 = vld [vmem:[%s1 + $0x4a8] sm:$0xf]
    %v326 = vld [vmem:[%s1 + $0x4ac] sm:$0xf]
    %v327 = vld [vmem:[%s1 + $0x4b0] sm:$0xf]
    %v328 = vld [vmem:[%s1 + $0x4b4] sm:$0xf]
    %v329 = vld [vmem:[%s1 + $0x4b8] sm:$0xf]
    %v330 = vld [vmem:[%s1 + $0x4bc] sm:$0xf]
    %v331 = vld [vmem:[%s1 + $0x4c0] sm:$0xf]
    %v332 = vld [vmem:[%s1 + $0x4c4] sm:$0xf]
    %v333 = vld [vmem:[%s1 + $0x4c8] sm:$0xf]
    %v334 = vld [vmem:[%s1 + $0x4cc] sm:$0xf]
    %v335 = vld [vmem:[%s1 + $0x4d0] sm:$0xf]
    %v336 = vld [vmem:[%s1 + $0x4d4] sm:$0xf]
    %v337 = vld [vmem:[%s1 + $0x4d8] sm:$0xf]
    %v338 = vld [vmem:[%s1 + $0x4dc] sm:$0xf]
    %v339 = vld [vmem:[%s1 + $0x4e0] sm:$0xf]
    %v340 = vld [vmem:[%s1 + $0x4e4] sm:$0xf]
    %v341 = vld [vmem:[%s1 + $0x4e8] sm:$0xf]
    %v342 = vld [vmem:[%s1 + $0x4ec] sm:$0xf]
    %v343 = vld [vmem:[%s1 + $0x4f0] sm:$0xf]
    %v344 = vld [vmem:[%s1 + $0x4f4] sm:$0xf]
    %v345 = vld [vmem:[%s1 + $0x4f8] sm:$0xf]
    %v346 = vld [vmem:[%s1 + $0x4fc] sm:$0xf]
    %v347 = vld [vmem:[%s1 + $0x500] sm:$0xf]
    %v348 = vld [vmem:[%s1 + $0x504] sm:$0xf]
    %v349 = vld [vmem:[%s1 + $0x508] sm:$0xf]
    %v350 = vld [vmem:[%s1 + $0x50c] sm:$0xf]
    %v351 = vld [vmem:[%s1 + $0x510] sm:$0xf]
    %v352 = vld [vmem:[%s1 + $0x514] sm:$0xf]
    %v353 = vld [vmem:[%s1 + $0x518] sm:$0xf]
    %v354 = vld [vmem:[%s1 + $0x51c] sm:$0xf]
    %v355 = vld [vmem:[%s1 + $0x520] sm:$0xf]
    %v356 = vld [vmem:[%s1 + $0x524] sm:$0xf]
    %v357 = vld [vmem:[%s1 + $0x528] sm:$0xf]
    %v358 = vld [vmem:[%s1 + $0x52c] sm:$0xf]
    %v359 = vld [vmem:[%s1 + $0x530] sm:$0xf]
    %v360 = vld [vmem:[%s1 + $0x534] sm:$0xf]
    %v361 = vld [vmem:[%s1 + $0x538] sm:$0xf]
    %v362 = vld [vmem:[%s1 + $0x53c] sm:$0xf]
    %v363 = vld [vmem:[%s1 + $0x540] sm:$0xf]
    %v364 = vld [vmem:[%s1 + $0x544] sm:$0xf]
    %v365 = vld [vmem:[%s1 + $0x548] sm:$0xf]
    %v366 = vld [vmem:[%s1 + $0x54c] sm:$0xf]
    %v367 = vld [vmem:[%s1 + $0x550] sm:$0xf]
    %v368 = vld [vmem:[%s1 + $0x554] sm:$0xf]
    %v369 = vld [vmem:[%s1 + $0x558] sm:$0xf]
    %v370 = vld [vmem:[%s1 + $0x55c] sm:$0xf]
    %v371 = vld [vmem:[%s1 + $0x560] sm:$0xf]
    %v372 = vld [vmem:[%s1 + $0x564] sm:$0xf]
    %v373 = vld [vmem:[%s1 + $0x568] sm:$0xf]
    %v374 = vld [vmem:[%s1 + $0x56c] sm:$0xf]
    %v375 = vld [vmem:[%s1 + $0x570] sm:$0xf]
    %v376 = vld [vmem:[%s1 + $0x574] sm:$0xf]
    %v377 = vld [vmem:[%s1 + $0x578] sm:$0xf]
    %v378 = vld [vmem:[%s1 + $0x57c] sm:$0xf]
    %v379 = vld [vmem:[%s1 + $0x580] sm:$0xf]
    %v380 = vld [vmem:[%s1 + $0x584] sm:$0xf]
    %v381 = vld [vmem:[%s1 + $0x588] sm:$0xf]
    %v382 = vld [vmem:[%s1 + $0x58c] sm:$0xf]
    %v383 = vld [vmem:[%s1 + $0x590] sm:$0xf]
    %v384 = vld [vmem:[%s1 + $0x594] sm:$0xf]
    %v385 = vld [vmem:[%s1 + $0x598] sm:$0xf]
    %v386 = vld [vmem:[%s1 + $0x59c] sm:$0xf]
    %v387 = vld [vmem:[%s1 + $0x5a0] sm:$0xf]
    %v388 = vld [vmem:[%s1 + $0x5a4] sm:$0xf]
    %v389 = vld [vmem:[%s1 + $0x5a8] sm:$0xf]
    %v390 = vld [vmem:[%s1 + $0x5ac] sm:$0xf]
    %v391 = vld [vmem:[%s1 + $0x5b0] sm:$0xf]
    %v392 = vld [vmem:[%s1 + $0x5b4] sm:$0xf]
    %v393 = vld [vmem:[%s1 + $0x5b8] sm:$0xf]
    %v394 = vld [vmem:[%s1 + $0x5bc] sm:$0xf]
    %v395 = vld [vmem:[%s1 + $0x5c0] sm:$0xf]
    %v396 = vld [vmem:[%s1 + $0x5c4] sm:$0xf]
    %v397 = vld [vmem:[%s1 + $0x5c8] sm:$0xf]
    %v398 = vld [vmem:[%s1 + $0x5cc] sm:$0xf]
    %v399 = vld [vmem:[%s1 + $0x5d0] sm:$0xf]
    %v400 = vld [vmem:[%s1 + $0x5d4] sm:$0xf]
    %v401 = vld [vmem:[%s1 + $0x5d8] sm:$0xf]
    %v402 = vld [vmem:[%s1 + $0x5dc] sm:$0xf]
    %v403 = vld [vmem:[%s1 + $0x5e0] sm:$0xf]
    %v404 = vld [vmem:[%s1 + $0x5e4] sm:$0xf]
    %v405 = vld [vmem:[%s1 + $0x5e8] sm:$0xf]
    %v406 = vld [vmem:[%s1 + $0x5ec] sm:$0xf]
    %v407 = vld [vmem:[%s1 + $0x5f0] sm:$0xf]
    %v408 = vld [vmem:[%s1 + $0x5f4] sm:$0xf]
    %v409 = vld [vmem:[%s1 + $0x5f8] sm:$0xf]
    %v410 = vld [vmem:[%s1 + $0x5fc] sm:$0xf]
    %v411 = vld [vmem:[%s1 + $0x600] sm:$0xf]
    %v412 = vld [vmem:[%s1 + $0x604] sm:$0xf]
    %v413 = vld [vmem:[%s1 + $0x608] sm:$0xf]
    %v414 = vld [vmem:[%s1 + $0x60c] sm:$0xf]
    %v415 = vld [vmem:[%s1 + $0x610] sm:$0xf]
    %v416 = vld [vmem:[%s1 + $0x614] sm:$0xf]
    %v417 = vld [vmem:[%s1 + $0x618] sm:$0xf]
    %v418 = vld [vmem:[%s1 + $0x61c] sm:$0xf]
    %v419 = vld [vmem:[%s1 + $0x620] sm:$0xf]
    %v420 = vld [vmem:[%s1 + $0x624] sm:$0xf]
    %v421 = vld [vmem:[%s1 + $0x628] sm:$0xf]
    %v422 = vld [vmem:[%s1 + $0x62c] sm:$0xf]
    %v423 = vld [vmem:[%s1 + $0x630] sm:$0xf]
    %v424 = vld [vmem:[%s1 + $0x634] sm:$0xf]
    %v425 = vld [vmem:[%s1 + $0x638] sm:$0xf]
    %v426 = vld [vmem:[%s1 + $0x63c] sm:$0xf]
    %v427 = vld [vmem:[%s1 + $0x640] sm:$0xf]
    %v428 = vld [vmem:[%s1 + $0x644] sm:$0xf]
    %v429 = vld [vmem:[%s1 + $0x648] sm:$0xf]
    %v430 = vld [vmem:[%s1 + $0x64c] sm:$0xf]
    %v431 = vld [vmem:[%s1 + $0x650] sm:$0xf]
    %v432 = vld [vmem:[%s1 + $0x654] sm:$0xf]
    %v433 = vld [vmem:[%s1 + $0x658] sm:$0xf]
    %v434 = vld [vmem:[%s1 + $0x65c] sm:$0xf]
    %v435 = vld [vmem:[%s1 + $0x660] sm:$0xf]
    %v436 = vld [vmem:[%s1 + $0x664] sm:$0xf]
    %v437 = vld [vmem:[%s1 + $0x668] sm:$0xf]
    %v438 = vld [vmem:[%s1 + $0x66c] sm:$0xf]
    %v439 = vld [vmem:[%s1 + $0x670] sm:$0xf]
    %v440 = vld [vmem:[%s1 + $0x674] sm:$0xf]
    %v441 = vld [vmem:[%s1 + $0x678] sm:$0xf]
    %v442 = vld [vmem:[%s1 + $0x67c] sm:$0xf]
    %v443 = vld [vmem:[%s1 + $0x680] sm:$0xf]
    %v444 = vld [vmem:[%s1 + $0x684] sm:$0xf]
    %v445 = vld [vmem:[%s1 + $0x688] sm:$0xf]
    %v446 = vld [vmem:[%s1 + $0x68c] sm:$0xf]
    %v447 = vld [vmem:[%s1 + $0x690] sm:$0xf]
    %v448 = vld [vmem:[%s1 + $0x694] sm:$0xf]
    %v449 = vld [vmem:[%s1 + $0x698] sm:$0xf]
    %v450 = vld [vmem:[%s1 + $0x69c] sm:$0xf]
    %v451 = vld [vmem:[%s1 + $0x6a0] sm:$0xf]
    %v452 = vld [vmem:[%s1 + $0x6a4] sm:$0xf]
    %v453 = vld [vmem:[%s1 + $0x6a8] sm:$0xf]
    %v454 = vld [vmem:[%s1 + $0x6ac] sm:$0xf]
    %v455 = vld [vmem:[%s1 + $0x6b0] sm:$0xf]
    %v456 = vld [vmem:[%s1 + $0x6b4] sm:$0xf]
    %v457 = vld [vmem:[%s1 + $0x6b8] sm:$0xf]
    %v458 = vld [vmem:[%s1 + $0x6bc] sm:$0xf]
    %v459 = vld [vmem:[%s1 + $0x6c0] sm:$0xf]
    %v460 = vld [vmem:[%s1 + $0x6c4] sm:$0xf]
    %v461 = vld [vmem:[%s1 + $0x6c8] sm:$0xf]
    %v462 = vld [vmem:[%s1 + $0x6cc] sm:$0xf]
    %v463 = vld [vmem:[%s1 + $0x6d0] sm:$0xf]
    %v464 = vld [vmem:[%s1 + $0x6d4] sm:$0xf]
    %v465 = vld [vmem:[%s1 + $0x6d8] sm:$0xf]
    %v466 = vld [vmem:[%s1 + $0x6dc] sm:$0xf]
    %v467 = vld [vmem:[%s1 + $0x6e0] sm:$0xf]
    %v468 = vld [vmem:[%s1 + $0x6e4] sm:$0xf]
    %v469 = vld [vmem:[%s1 + $0x6e8] sm:$0xf]
    %v470 = vld [vmem:[%s1 + $0x6ec] sm:$0xf]
    %v471 = vld [vmem:[%s1 + $0x6f0] sm:$0xf]
    %v472 = vld [vmem:[%s1 + $0x6f4] sm:$0xf]
    %v473 = vld [vmem:[%s1 + $0x6f8] sm:$0xf]
    %v474 = vld [vmem:[%s1 + $0x6fc] sm:$0xf]
    %v475 = vld [vmem:[%s1 + $0x700] sm:$0xf]
    %v476 = vld [vmem:[%s1 + $0x704] sm:$0xf]
    %v477 = vld [vmem:[%s1 + $0x708] sm:$0xf]
    %v478 = vld [vmem:[%s1 + $0x70c] sm:$0xf]
    %v479 = vld [vmem:[%s1 + $0x710] sm:$0xf]
    %v480 = vld [vmem:[%s1 + $0x714] sm:$0xf]
    %v481 = vld [vmem:[%s1 + $0x718] sm:$0xf]
    %v482 = vld [vmem:[%s1 + $0x71c] sm:$0xf]
    %v483 = vld [vmem:[%s1 + $0x720] sm:$0xf]
    %v484 = vld [vmem:[%s1 + $0x724] sm:$0xf]
    %v485 = vld [vmem:[%s1 + $0x728] sm:$0xf]
    %v486 = vld [vmem:[%s1 + $0x72c] sm:$0xf]
    %v487 = vld [vmem:[%s1 + $0x730] sm:$0xf]
    %v488 = vld [vmem:[%s1 + $0x734] sm:$0xf]
    %v489 = vld [vmem:[%s1 + $0x738] sm:$0xf]
    %v490 = vld [vmem:[%s1 + $0x73c] sm:$0xf]
    %v491 = vld [vmem:[%s1 + $0x740] sm:$0xf]
    %v492 = vld [vmem:[%s1 + $0x744] sm:$0xf]
    %v493 = vld [vmem:[%s1 + $0x748] sm:$0xf]
    %v494 = vld [vmem:[%s1 + $0x74c] sm:$0xf]
    %v495 = vld [vmem:[%s1 + $0x750] sm:$0xf]
    %v496 = vld [vmem:[%s1 + $0x754] sm:$0xf]
    %v497 = vld [vmem:[%s1 + $0x758] sm:$0xf]
    %v498 = vld [vmem:[%s1 + $0x75c] sm:$0xf]
    %v499 = vld [vmem:[%s1 + $0x760] sm:$0xf]
    %v500 = vld [vmem:[%s1 + $0x764] sm:$0xf]
    %v501 = vld [vmem:[%s1 + $0x768] sm:$0xf]
    %v502 = vld [vmem:[%s1 + $0x76c] sm:$0xf]
    %v503 = vld [vmem:[%s1 + $0x770] sm:$0xf]
    %v504 = vld [vmem:[%s1 + $0x774] sm:$0xf]
    %v505 = vld [vmem:[%s1 + $0x778] sm:$0xf]
    %v506 = vld [vmem:[%s1 + $0x77c] sm:$0xf]
    %v507 = vld [vmem:[%s1 + $0x780] sm:$0xf]
    %v508 = vld [vmem:[%s1 + $0x784] sm:$0xf]
    %v509 = vld [vmem:[%s1 + $0x788] sm:$0xf]
    %v510 = vld [vmem:[%s1 + $0x78c] sm:$0xf]
    %v511 = vld [vmem:[%s1 + $0x790] sm:$0xf]
    %v512 = vld [vmem:[%s1 + $0x794] sm:$0xf]
    %v513 = vld [vmem:[%s1 + $0x798] sm:$0xf]
    %v514 = vld [vmem:[%s1 + $0x79c] sm:$0xf]
    %v515 = vld [vmem:[%s1 + $0x7a0] sm:$0xf]
    %v516 = vld [vmem:[%s1 + $0x7a4] sm:$0xf]
    %v517 = vld [vmem:[%s1 + $0x7a8] sm:$0xf]
    %v518 = vld [vmem:[%s1 + $0x7ac] sm:$0xf]
    %v519 = vld [vmem:[%s1 + $0x7b0] sm:$0xf]
    %v520 = vld [vmem:[%s1 + $0x7b4] sm:$0xf]
    %v521 = vld [vmem:[%s1 + $0x7b8] sm:$0xf]
    %v522 = vld [vmem:[%s1 + $0x7bc] sm:$0xf]
    %v523 = vld [vmem:[%s1 + $0x7c0] sm:$0xf]
    %v524 = vld [vmem:[%s1 + $0x7c4] sm:$0xf]
    %v525 = vld [vmem:[%s1 + $0x7c8] sm:$0xf]
    %v526 = vld [vmem:[%s1 + $0x7cc] sm:$0xf]
    %v527 = vld [vmem:[%s1 + $0x7d0] sm:$0xf]
    %v528 = vld [vmem:[%s1 + $0x7d4] sm:$0xf]
    %v529 = vld [vmem:[%s1 + $0x7d8] sm:$0xf]
    %v530 = vld [vmem:[%s1 + $0x7dc] sm:$0xf]
    %v531 = vld [vmem:[%s1 + $0x7e0] sm:$0xf]
    %v532 = vld [vmem:[%s1 + $0x7e4] sm:$0xf]
    %v533 = vld [vmem:[%s1 + $0x7e8] sm:$0xf]
    %v534 = vld [vmem:[%s1 + $0x7ec] sm:$0xf]
    %v535 = vld [vmem:[%s1 + $0x7f0] sm:$0xf]
    %v536 = vld [vmem:[%s1 + $0x7f4] sm:$0xf]
    %v537 = vld [vmem:[%s1 + $0x7f8] sm:$0xf]
    %v538 = vld [vmem:[%s1 + $0x7fc] sm:$0xf]
    %v539 = vld [vmem:[%s1 + $0x800] sm:$0xf]
    %v540 = vld [vmem:[%s1 + $0x804] sm:$0xf]
    %v541 = vld [vmem:[%s1 + $0x808] sm:$0xf]
    %v542 = vld [vmem:[%s1 + $0x80c] sm:$0xf]
    %v543 = vld [vmem:[%s1 + $0x810] sm:$0xf]
    %v544 = vld [vmem:[%s1 + $0x814] sm:$0xf]
    %v545 = vld [vmem:[%s1 + $0x818] sm:$0xf]
    %v546 = vld [vmem:[%s1 + $0x81c] sm:$0xf]
    %v547 = vld [vmem:[%s1 + $0x820] sm:$0xf]
    %v548 = vld [vmem:[%s1 + $0x824] sm:$0xf]
    %v549 = vld [vmem:[%s1 + $0x828] sm:$0xf]
    %v550 = vld [vmem:[%s1 + $0x82c] sm:$0xf]
    %v551 = vld [vmem:[%s1 + $0x830] sm:$0xf]
    %v552 = vld [vmem:[%s1 + $0x834] sm:$0xf]
    %v553 = vld [vmem:[%s1 + $0x838] sm:$0xf]
    %v554 = vld [vmem:[%s1 + $0x83c] sm:$0xf]
    %v555 = vld [vmem:[%s1 + $0x840] sm:$0xf]
    %v556 = vld [vmem:[%s1 + $0x844] sm:$0xf]
    %v557 = vld [vmem:[%s1 + $0x848] sm:$0xf]
    %v558 = vld [vmem:[%s1 + $0x84c] sm:$0xf]
    %v559 = vld [vmem:[%s1 + $0x850] sm:$0xf]
    %v560 = vld [vmem:[%s1 + $0x854] sm:$0xf]
    %v561 = vld [vmem:[%s1 + $0x858] sm:$0xf]
    %v562 = vld [vmem:[%s1 + $0x85c] sm:$0xf]
    %v563 = vld [vmem:[%s1 + $0x860] sm:$0xf]
    %v564 = vld [vmem:[%s1 + $0x864] sm:$0xf]
    %v565 = vld [vmem:[%s1 + $0x868] sm:$0xf]
    %v566 = vld [vmem:[%s1 + $0x86c] sm:$0xf]
    %v567 = vld [vmem:[%s1 + $0x870] sm:$0xf]
    %v568 = vld [vmem:[%s1 + $0x874] sm:$0xf]
    %v569 = vld [vmem:[%s1 + $0x878] sm:$0xf]
    %v570 = vld [vmem:[%s1 + $0x87c] sm:$0xf]
    %v571 = vld [vmem:[%s1 + $0x880] sm:$0xf]
    %v572 = vld [vmem:[%s1 + $0x884] sm:$0xf]
    %v573 = vld [vmem:[%s1 + $0x888] sm:$0xf]
    %v574 = vld [vmem:[%s1 + $0x88c] sm:$0xf]
    %v575 = vld [vmem:[%s1 + $0x890] sm:$0xf]
    %v576 = vld [vmem:[%s1 + $0x894] sm:$0xf]
    %v577 = vld [vmem:[%s1 + $0x898] sm:$0xf]
    %v578 = vld [vmem:[%s1 + $0x89c] sm:$0xf]
    %v579 = vld [vmem:[%s1 + $0x8a0] sm:$0xf]
    %v580 = vld [vmem:[%s1 + $0x8a4] sm:$0xf]
    %v581 = vld [vmem:[%s1 + $0x8a8] sm:$0xf]
    %v582 = vld [vmem:[%s1 + $0x8ac] sm:$0xf]
    %v583 = vld [vmem:[%s1 + $0x8b0] sm:$0xf]
    %v584 = vld [vmem:[%s1 + $0x8b4] sm:$0xf]
    %v585 = vld [vmem:[%s1 + $0x8b8] sm:$0xf]
    %v586 = vld [vmem:[%s1 + $0x8bc] sm:$0xf]
    %v587 = vld [vmem:[%s1 + $0x8c0] sm:$0xf]
    %v588 = vld [vmem:[%s1 + $0x8c4] sm:$0xf]
    %v589 = vld [vmem:[%s1 + $0x8c8] sm:$0xf]
    %v590 = vld [vmem:[%s1 + $0x8cc] sm:$0xf]
    %v591 = vld [vmem:[%s1 + $0x8d0] sm:$0xf]
    %v592 = vld [vmem:[%s1 + $0x8d4] sm:$0xf]
    %v593 = vld [vmem:[%s1 + $0x8d8] sm:$0xf]
    %v594 = vld [vmem:[%s1 + $0x8dc] sm:$0xf]
    %v595 = vld [vmem:[%s1 + $0x8e0] sm:$0xf]
    %v596 = vld [vmem:[%s1 + $0x8e4] sm:$0xf]
    %v597 = vld [vmem:[%s1 + $0x8e8] sm:$0xf]
    %v598 = vld [vmem:[%s1 + $0x8ec] sm:$0xf]
    %v599 = vld [vmem:[%s1 + $0x8f0] sm:$0xf]
    %v600 = vld [vmem:[%s1 + $0x8f4] sm:$0xf]
    %v601 = vld [vmem:[%s1 + $0x8f8] sm:$0xf]
    %v602 = vld [vmem:[%s1 + $0x8fc] sm:$0xf]
    %v603 = vld [vmem:[%s2] sm:$0x1]
    %v605 = vperm.slane %v603, 0
    %608 = vst [vmem:[#allocation1] ss:$9 sm:$0xff] %v22
    %v609 = vld [vmem:[#allocation1] sm:$0xff]
    %v610 = vld [vmem:[#allocation1 + $0x9] sm:$0xff]
    %v611 = vld [vmem:[#allocation1 + $0x12] sm:$0xff]
    %v612 = vld [vmem:[#allocation1 + $0x1b] sm:$0xff]
    %v613 = vld [vmem:[#allocation1 + $0x24] sm:$0xff]
    %v614 = vld [vmem:[#allocation1 + $0x2d] sm:$0xff]
    %v615 = vld [vmem:[#allocation1 + $0x36] sm:$0xff]
    %v616 = vld [vmem:[#allocation1 + $0x3f] sm:$0xff]
    %618 = vst [vmem:[#allocation1] ss:$9 sm:$0xff] %v23
    %v619 = vld [vmem:[#allocation1] sm:$0xff]
    %v620 = vld [vmem:[#allocation1 + $0x9] sm:$0xff]
    %v621 = vld [vmem:[#allocation1 + $0x12] sm:$0xff]
    %v622 = vld [vmem:[#allocation1 + $0x1b] sm:$0xff]
    %v623 = vld [vmem:[#allocation1 + $0x24] sm:$0xff]
    %v624 = vld [vmem:[#allocation1 + $0x2d] sm:$0xff]
    %v625 = vld [vmem:[#allocation1 + $0x36] sm:$0xff]
    %v626 = vld [vmem:[#allocation1 + $0x3f] sm:$0xff]
    %628 = vst [vmem:[#allocation1] ss:$9 sm:$0xff] %v24
    %v629 = vld [vmem:[#allocation1] sm:$0xff]
    %v630 = vld [vmem:[#allocation1 + $0x9] sm:$0xff]
    %v631 = vld [vmem:[#allocation1 + $0x12] sm:$0xff]
    %v632 = vld [vmem:[#allocation1 + $0x1b] sm:$0xff]
    %v633 = vld [vmem:[#allocation1 + $0x24] sm:$0xff]
    %v634 = vld [vmem:[#allocation1 + $0x2d] sm:$0xff]
    %v635 = vld [vmem:[#allocation1 + $0x36] sm:$0xff]
    %v636 = vld [vmem:[#allocation1 + $0x3f] sm:$0xff]
    %638 = vst [vmem:[#allocation1] ss:$9 sm:$0xff] %v25
    %v639 = vld [vmem:[#allocation1] sm:$0xff]
    %v640 = vld [vmem:[#allocation1 + $0x9] sm:$0xff]
    %v641 = vld [vmem:[#allocation1 + $0x12] sm:$0xff]
    %v642 = vld [vmem:[#allocation1 + $0x1b] sm:$0xff]
    %v643 = vld [vmem:[#allocation1 + $0x24] sm:$0xff]
    %v644 = vld [vmem:[#allocation1 + $0x2d] sm:$0xff]
    %v645 = vld [vmem:[#allocation1 + $0x36] sm:$0xff]
    %v646 = vld [vmem:[#allocation1 + $0x3f] sm:$0xff]
    %648 = vst [vmem:[#allocation1] ss:$9 sm:$0xff] %v26
    %v649 = vld [vmem:[#allocation1] sm:$0xff]
    %v650 = vld [vmem:[#allocation1 + $0x9] sm:$0xff]
    %v651 = vld [vmem:[#allocation1 + $0x12] sm:$0xff]
    %v652 = vld [vmem:[#allocation1 + $0x1b] sm:$0xff]
    %v1265 = vunpack.c.l.b16 %v27
    %v1266 = vunpack.c.l.b16 %v28
    %v1267 = vunpack.c.l.b16 %v29
    %v1268 = vunpack.c.l.b16 %v30
    %v1269 = vunpack.c.l.b16 %v31
    %v1270 = vunpack.c.l.b16 %v32
    %v1271 = vunpack.c.l.b16 %v33
    %v1272 = vunpack.c.l.b16 %v34
    %v1273 = vunpack.c.l.b16 %v35
    %v1274 = vunpack.c.l.b16 %v36
    %v1275 = vunpack.c.l.b16 %v37
    %v1276 = vunpack.c.l.b16 %v38
    %v1277 = vunpack.c.l.b16 %v39
    %v1278 = vunpack.c.l.b16 %v40
    %v1279 = vunpack.c.l.b16 %v41
    %v1280 = vunpack.c.l.b16 %v42
    %v1281 = vunpack.c.l.b16 %v43
    %v1282 = vunpack.c.l.b16 %v44
    %v1283 = vunpack.c.l.b16 %v45
    %v1284 = vunpack.c.l.b16 %v46
    %v1285 = vunpack.c.l.b16 %v47
    %v1286 = vunpack.c.l.b16 %v48
    %v1287 = vunpack.c.l.b16 %v49
    %v1288 = vunpack.c.l.b16 %v50
    %v1289 = vunpack.c.l.b16 %v51
    %v1290 = vunpack.c.l.b16 %v52
    %v1291 = vunpack.c.l.b16 %v53
    %v1292 = vunpack.c.l.b16 %v54
    %v1293 = vunpack.c.l.b16 %v55
    %v1294 = vunpack.c.l.b16 %v56
    %v1295 = vunpack.c.l.b16 %v57
    %v1296 = vunpack.c.l.b16 %v58
    %v1297 = vunpack.c.l.b16 %v59
    %v1298 = vunpack.c.l.b16 %v60
    %v1299 = vunpack.c.l.b16 %v61
    %v1300 = vunpack.c.l.b16 %v62
    %v1301 = vunpack.c.l.b16 %v63
    %v1302 = vunpack.c.l.b16 %v64
    %v1303 = vunpack.c.l.b16 %v65
    %v1304 = vunpack.c.l.b16 %v66
    %v1305 = vunpack.c.l.b16 %v67
    %v1306 = vunpack.c.l.b16 %v68
    %v1307 = vunpack.c.l.b16 %v69
    %v1308 = vunpack.c.l.b16 %v70
    %v1309 = vunpack.c.l.b16 %v71
    %v1310 = vunpack.c.l.b16 %v72
    %v1311 = vunpack.c.l.b16 %v73
    %v1312 = vunpack.c.l.b16 %v74
    %v1313 = vunpack.c.l.b16 %v75
    %v1314 = vunpack.c.l.b16 %v76
    %v1315 = vunpack.c.l.b16 %v77
    %v1316 = vunpack.c.l.b16 %v78
    %v1317 = vunpack.c.l.b16 %v79
    %v1318 = vunpack.c.l.b16 %v80
    %v1319 = vunpack.c.l.b16 %v81
    %v1320 = vunpack.c.l.b16 %v82
    %v1321 = vunpack.c.l.b16 %v83
    %v1322 = vunpack.c.l.b16 %v84
    %v1323 = vunpack.c.l.b16 %v85
    %v1324 = vunpack.c.l.b16 %v86
    %v1325 = vunpack.c.l.b16 %v87
    %v1326 = vunpack.c.l.b16 %v88
    %v1327 = vunpack.c.l.b16 %v89
    %v1328 = vunpack.c.l.b16 %v90
    %v1329 = vunpack.c.l.b16 %v91
    %v1330 = vunpack.c.l.b16 %v92
    %v1331 = vunpack.c.l.b16 %v93
    %v1332 = vunpack.c.l.b16 %v94
    %v1333 = vunpack.c.l.b16 %v95
    %v1334 = vunpack.c.l.b16 %v96
    %v1335 = vunpack.c.l.b16 %v97
    %v1336 = vunpack.c.l.b16 %v98
    %v1337 = vunpack.c.l.b16 %v99
    %v1338 = vunpack.c.l.b16 %v100
    %v1339 = vunpack.c.l.b16 %v101
    %v1340 = vunpack.c.l.b16 %v102
    %v1341 = vunpack.c.l.b16 %v103
    %v1342 = vunpack.c.l.b16 %v104
    %v1343 = vunpack.c.l.b16 %v105
    %v1344 = vunpack.c.l.b16 %v106
    %v1345 = vunpack.c.l.b16 %v107
    %v1346 = vunpack.c.l.b16 %v108
    %v1347 = vunpack.c.l.b16 %v109
    %v1348 = vunpack.c.l.b16 %v110
    %v1349 = vunpack.c.l.b16 %v111
    %v1350 = vunpack.c.l.b16 %v112
    %v1351 = vunpack.c.l.b16 %v113
    %v1352 = vunpack.c.l.b16 %v114
    %v1353 = vunpack.c.l.b16 %v115
    %v1354 = vunpack.c.l.b16 %v116
    %v1355 = vunpack.c.l.b16 %v117
    %v1356 = vunpack.c.l.b16 %v118
    %v1357 = vunpack.c.l.b16 %v119
    %v1358 = vunpack.c.l.b16 %v120
    %v1359 = vunpack.c.l.b16 %v121
    %v1360 = vunpack.c.l.b16 %v122
    %v1361 = vunpack.c.l.b16 %v123
    %v1362 = vunpack.c.l.b16 %v124
    %v1363 = vunpack.c.l.b16 %v125
    %v1364 = vunpack.c.l.b16 %v126
    %v1365 = vunpack.c.l.b16 %v127
    %v1366 = vunpack.c.l.b16 %v128
    %v1367 = vunpack.c.l.b16 %v129
    %v1368 = vunpack.c.l.b16 %v130
    %v1369 = vunpack.c.l.b16 %v131
    %v1370 = vunpack.c.l.b16 %v132
    %v1371 = vunpack.c.l.b16 %v133
    %v1372 = vunpack.c.l.b16 %v134
    %v1373 = vunpack.c.l.b16 %v135
    %v1374 = vunpack.c.l.b16 %v136
    %v1375 = vunpack.c.l.b16 %v137
    %v1376 = vunpack.c.l.b16 %v138
    %v1377 = vunpack.c.l.b16 %v139
    %v1378 = vunpack.c.l.b16 %v140
    %v1379 = vunpack.c.l.b16 %v141
    %v1380 = vunpack.c.l.b16 %v142
    %v1381 = vunpack.c.l.b16 %v143
    %v1382 = vunpack.c.l.b16 %v144
    %v1383 = vunpack.c.l.b16 %v145
    %v1384 = vunpack.c.l.b16 %v146
    %v1385 = vunpack.c.l.b16 %v147
    %v1386 = vunpack.c.l.b16 %v148
    %v1387 = vunpack.c.l.b16 %v149
    %v1388 = vunpack.c.l.b16 %v150
    %v1389 = vunpack.c.l.b16 %v151
    %v1390 = vunpack.c.l.b16 %v152
    %v1391 = vunpack.c.l.b16 %v153
    %v1392 = vunpack.c.l.b16 %v154
    %v1393 = vunpack.c.l.b16 %v155
    %v1394 = vunpack.c.l.b16 %v156
    %v1395 = vunpack.c.l.b16 %v157
    %v1396 = vunpack.c.l.b16 %v158
    %v1397 = vunpack.c.l.b16 %v159
    %v1398 = vunpack.c.l.b16 %v160
    %v1399 = vunpack.c.l.b16 %v161
    %v1400 = vunpack.c.l.b16 %v162
    %v1401 = vunpack.c.l.b16 %v163
    %v1402 = vunpack.c.l.b16 %v164
    %v1403 = vunpack.c.l.b16 %v165
    %v1404 = vunpack.c.l.b16 %v166
    %v1405 = vunpack.c.l.b16 %v167
    %v1406 = vunpack.c.l.b16 %v168
    %v1407 = vunpack.c.l.b16 %v169
    %v1408 = vunpack.c.l.b16 %v170
    %v1409 = vunpack.c.l.b16 %v171
    %v1410 = vunpack.c.l.b16 %v172
    %v1411 = vunpack.c.l.b16 %v173
    %v1412 = vunpack.c.l.b16 %v174
    %v1413 = vunpack.c.l.b16 %v175
    %v1414 = vunpack.c.l.b16 %v176
    %v1415 = vunpack.c.l.b16 %v177
    %v1416 = vunpack.c.l.b16 %v178
    %v1417 = vunpack.c.l.b16 %v179
    %v1418 = vunpack.c.l.b16 %v180
    %v1419 = vunpack.c.l.b16 %v181
    %v1420 = vunpack.c.l.b16 %v182
    %v1421 = vunpack.c.l.b16 %v183
    %v1422 = vunpack.c.l.b16 %v184
    %v1423 = vunpack.c.l.b16 %v185
    %v1424 = vunpack.c.l.b16 %v186
    %v1425 = vunpack.c.l.b16 %v187
    %v1426 = vunpack.c.l.b16 %v188
    %v1427 = vunpack.c.l.b16 %v189
    %v1428 = vunpack.c.l.b16 %v190
    %v1429 = vunpack.c.l.b16 %v191
    %v1430 = vunpack.c.l.b16 %v192
    %v1431 = vunpack.c.l.b16 %v193
    %v1432 = vunpack.c.l.b16 %v194
    %v1433 = vunpack.c.l.b16 %v195
    %v1434 = vunpack.c.l.b16 %v196
    %v1435 = vunpack.c.l.b16 %v197
    %v1436 = vunpack.c.l.b16 %v198
    %v1437 = vunpack.c.l.b16 %v199
    %v1438 = vunpack.c.l.b16 %v200
    %v1439 = vunpack.c.l.b16 %v201
    %v1440 = vunpack.c.l.b16 %v202
    %v1441 = vunpack.c.l.b16 %v203
    %v1442 = vunpack.c.l.b16 %v204
    %v1443 = vunpack.c.l.b16 %v205
    %v1444 = vunpack.c.l.b16 %v206
    %v1445 = vunpack.c.l.b16 %v207
    %v1446 = vunpack.c.l.b16 %v208
    %v1447 = vunpack.c.l.b16 %v209
    %v1448 = vunpack.c.l.b16 %v210
    %v1449 = vunpack.c.l.b16 %v211
    %v1450 = vunpack.c.l.b16 %v212
    %v1451 = vunpack.c.l.b16 %v213
    %v1452 = vunpack.c.l.b16 %v214
    %v1453 = vunpack.c.l.b16 %v215
    %v1454 = vunpack.c.l.b16 %v216
    %v1455 = vunpack.c.l.b16 %v217
    %v1456 = vunpack.c.l.b16 %v218
    %v1457 = vunpack.c.l.b16 %v219
    %v1458 = vunpack.c.l.b16 %v220
    %v1459 = vunpack.c.l.b16 %v221
    %v1460 = vunpack.c.l.b16 %v222
    %v1461 = vunpack.c.l.b16 %v223
    %v1462 = vunpack.c.l.b16 %v224
    %v1463 = vunpack.c.l.b16 %v225
    %v1464 = vunpack.c.l.b16 %v226
    %v1465 = vunpack.c.l.b16 %v227
    %v1466 = vunpack.c.l.b16 %v228
    %v1467 = vunpack.c.l.b16 %v229
    %v1468 = vunpack.c.l.b16 %v230
    %v1469 = vunpack.c.l.b16 %v231
    %v1470 = vunpack.c.l.b16 %v232
    %v1471 = vunpack.c.l.b16 %v233
    %v1472 = vunpack.c.l.b16 %v234
    %v1473 = vunpack.c.l.b16 %v235
    %v1474 = vunpack.c.l.b16 %v236
    %v1475 = vunpack.c.l.b16 %v237
    %v1476 = vunpack.c.l.b16 %v238
    %v1477 = vunpack.c.l.b16 %v239
    %v1478 = vunpack.c.l.b16 %v240
    %v1479 = vunpack.c.l.b16 %v241
    %v1480 = vunpack.c.l.b16 %v242
    %v1481 = vunpack.c.l.b16 %v243
    %v1482 = vunpack.c.l.b16 %v244
    %v1483 = vunpack.c.l.b16 %v245
    %v1484 = vunpack.c.l.b16 %v246
    %v1485 = vunpack.c.l.b16 %v247
    %v1486 = vunpack.c.l.b16 %v248
    %v1487 = vunpack.c.l.b16 %v249
    %v1488 = vunpack.c.l.b16 %v250
    %v1489 = vunpack.c.l.b16 %v251
    %v1490 = vunpack.c.l.b16 %v252
    %v1491 = vunpack.c.l.b16 %v253
    %v1492 = vunpack.c.l.b16 %v254
    %v1493 = vunpack.c.l.b16 %v255
    %v1494 = vunpack.c.l.b16 %v256
    %v1495 = vunpack.c.l.b16 %v257
    %v1496 = vunpack.c.l.b16 %v258
    %v1497 = vunpack.c.l.b16 %v259
    %v1498 = vunpack.c.l.b16 %v260
    %v1499 = vunpack.c.l.b16 %v261
    %v1500 = vunpack.c.l.b16 %v262
    %v1501 = vunpack.c.l.b16 %v263
    %v1502 = vunpack.c.l.b16 %v264
    %v1503 = vunpack.c.l.b16 %v265
    %v1504 = vunpack.c.l.b16 %v266
    %v1505 = vunpack.c.l.b16 %v267
    %v1506 = vunpack.c.l.b16 %v268
    %v1507 = vunpack.c.l.b16 %v269
    %v1508 = vunpack.c.l.b16 %v270
    %v1509 = vunpack.c.l.b16 %v271
    %v1510 = vunpack.c.l.b16 %v272
    %v1511 = vunpack.c.l.b16 %v273
    %v1512 = vunpack.c.l.b16 %v274
    %v1513 = vunpack.c.l.b16 %v275
    %v1514 = vunpack.c.l.b16 %v276
    %v1515 = vunpack.c.l.b16 %v277
    %v1516 = vunpack.c.l.b16 %v278
    %v1517 = vunpack.c.l.b16 %v279
    %v1518 = vunpack.c.l.b16 %v280
    %v1519 = vunpack.c.l.b16 %v281
    %v1520 = vunpack.c.l.b16 %v282
    %v1521 = vunpack.c.l.b16 %v283
    %v1522 = vunpack.c.l.b16 %v284
    %v1523 = vunpack.c.l.b16 %v285
    %v1524 = vunpack.c.l.b16 %v286
    %v1525 = vunpack.c.l.b16 %v287
    %v1526 = vunpack.c.l.b16 %v288
    %v1527 = vunpack.c.l.b16 %v289
    %v1528 = vunpack.c.l.b16 %v290
    %v1529 = vunpack.c.l.b16 %v291
    %v1530 = vunpack.c.l.b16 %v292
    %v1531 = vunpack.c.l.b16 %v293
    %v1532 = vunpack.c.l.b16 %v294
    %v1533 = vunpack.c.l.b16 %v295
    %v1534 = vunpack.c.l.b16 %v296
    %v1535 = vunpack.c.l.b16 %v297
    %v1536 = vunpack.c.l.b16 %v298
    %v1537 = vunpack.c.l.b16 %v299
    %v1538 = vunpack.c.l.b16 %v300
    %v1539 = vunpack.c.l.b16 %v301
    %v1540 = vunpack.c.l.b16 %v302
    %v1541 = vunpack.c.l.b16 %v303
    %v1542 = vunpack.c.l.b16 %v304
    %v1543 = vunpack.c.l.b16 %v305
    %v1544 = vunpack.c.l.b16 %v306
    %v1545 = vunpack.c.l.b16 %v307
    %v1546 = vunpack.c.l.b16 %v308
    %v1547 = vunpack.c.l.b16 %v309
    %v1548 = vunpack.c.l.b16 %v310
    %v1549 = vunpack.c.l.b16 %v311
    %v1550 = vunpack.c.l.b16 %v312
    %v1551 = vunpack.c.l.b16 %v313
    %v1552 = vunpack.c.l.b16 %v314
    %v1553 = vunpack.c.l.b16 %v315
    %v1554 = vunpack.c.l.b16 %v316
    %v1555 = vunpack.c.l.b16 %v317
    %v1556 = vunpack.c.l.b16 %v318
    %v1557 = vunpack.c.l.b16 %v319
    %v1558 = vunpack.c.l.b16 %v320
    %v1559 = vunpack.c.l.b16 %v321
    %v1560 = vunpack.c.l.b16 %v322
    %v1561 = vunpack.c.l.b16 %v323
    %v1562 = vunpack.c.l.b16 %v324
    %v1563 = vunpack.c.l.b16 %v325
    %v1564 = vunpack.c.l.b16 %v326
    %v1565 = vunpack.c.l.b16 %v327
    %v1566 = vunpack.c.l.b16 %v328
    %v1567 = vunpack.c.l.b16 %v329
    %v1568 = vunpack.c.l.b16 %v330
    %v1569 = vunpack.c.l.b16 %v331
    %v1570 = vunpack.c.l.b16 %v332
    %v1571 = vunpack.c.l.b16 %v333
    %v1572 = vunpack.c.l.b16 %v334
    %v1573 = vunpack.c.l.b16 %v335
    %v1574 = vunpack.c.l.b16 %v336
    %v1575 = vunpack.c.l.b16 %v337
    %v1576 = vunpack.c.l.b16 %v338
    %v1577 = vunpack.c.l.b16 %v339
    %v1578 = vunpack.c.l.b16 %v340
    %v1579 = vunpack.c.l.b16 %v341
    %v1580 = vunpack.c.l.b16 %v342
    %v1581 = vunpack.c.l.b16 %v343
    %v1582 = vunpack.c.l.b16 %v344
    %v1583 = vunpack.c.l.b16 %v345
    %v1584 = vunpack.c.l.b16 %v346
    %v1585 = vunpack.c.l.b16 %v347
    %v1586 = vunpack.c.l.b16 %v348
    %v1587 = vunpack.c.l.b16 %v349
    %v1588 = vunpack.c.l.b16 %v350
    %v1589 = vunpack.c.l.b16 %v351
    %v1590 = vunpack.c.l.b16 %v352
    %v1591 = vunpack.c.l.b16 %v353
    %v1592 = vunpack.c.l.b16 %v354
    %v1593 = vunpack.c.l.b16 %v355
    %v1594 = vunpack.c.l.b16 %v356
    %v1595 = vunpack.c.l.b16 %v357
    %v1596 = vunpack.c.l.b16 %v358
    %v1597 = vunpack.c.l.b16 %v359
    %v1598 = vunpack.c.l.b16 %v360
    %v1599 = vunpack.c.l.b16 %v361
    %v1600 = vunpack.c.l.b16 %v362
    %v1601 = vunpack.c.l.b16 %v363
    %v1602 = vunpack.c.l.b16 %v364
    %v1603 = vunpack.c.l.b16 %v365
    %v1604 = vunpack.c.l.b16 %v366
    %v1605 = vunpack.c.l.b16 %v367
    %v1606 = vunpack.c.l.b16 %v368
    %v1607 = vunpack.c.l.b16 %v369
    %v1608 = vunpack.c.l.b16 %v370
    %v1609 = vunpack.c.l.b16 %v371
    %v1610 = vunpack.c.l.b16 %v372
    %v1611 = vunpack.c.l.b16 %v373
    %v1612 = vunpack.c.l.b16 %v374
    %v1613 = vunpack.c.l.b16 %v375
    %v1614 = vunpack.c.l.b16 %v376
    %v1615 = vunpack.c.l.b16 %v377
    %v1616 = vunpack.c.l.b16 %v378
    %v1617 = vunpack.c.l.b16 %v379
    %v1618 = vunpack.c.l.b16 %v380
    %v1619 = vunpack.c.l.b16 %v381
    %v1620 = vunpack.c.l.b16 %v382
    %v1621 = vunpack.c.l.b16 %v383
    %v1622 = vunpack.c.l.b16 %v384
    %v1623 = vunpack.c.l.b16 %v385
    %v1624 = vunpack.c.l.b16 %v386
    %v1625 = vunpack.c.l.b16 %v387
    %v1626 = vunpack.c.l.b16 %v388
    %v1627 = vunpack.c.l.b16 %v389
    %v1628 = vunpack.c.l.b16 %v390
    %v1629 = vunpack.c.l.b16 %v391
    %v1630 = vunpack.c.l.b16 %v392
    %v1631 = vunpack.c.l.b16 %v393
    %v1632 = vunpack.c.l.b16 %v394
    %v1633 = vunpack.c.l.b16 %v395
    %v1634 = vunpack.c.l.b16 %v396
    %v1635 = vunpack.c.l.b16 %v397
    %v1636 = vunpack.c.l.b16 %v398
    %v1637 = vunpack.c.l.b16 %v399
    %v1638 = vunpack.c.l.b16 %v400
    %v1639 = vunpack.c.l.b16 %v401
    %v1640 = vunpack.c.l.b16 %v402
    %v1641 = vunpack.c.l.b16 %v403
    %v1642 = vunpack.c.l.b16 %v404
    %v1643 = vunpack.c.l.b16 %v405
    %v1644 = vunpack.c.l.b16 %v406
    %v1645 = vunpack.c.l.b16 %v407
    %v1646 = vunpack.c.l.b16 %v408
    %v1647 = vunpack.c.l.b16 %v409
    %v1648 = vunpack.c.l.b16 %v410
    %v1649 = vunpack.c.l.b16 %v411
    %v1650 = vunpack.c.l.b16 %v412
    %v1651 = vunpack.c.l.b16 %v413
    %v1652 = vunpack.c.l.b16 %v414
    %v1653 = vunpack.c.l.b16 %v415
    %v1654 = vunpack.c.l.b16 %v416
    %v1655 = vunpack.c.l.b16 %v417
    %v1656 = vunpack.c.l.b16 %v418
    %v1657 = vunpack.c.l.b16 %v419
    %v1658 = vunpack.c.l.b16 %v420
    %v1659 = vunpack.c.l.b16 %v421
    %v1660 = vunpack.c.l.b16 %v422
    %v1661 = vunpack.c.l.b16 %v423
    %v1662 = vunpack.c.l.b16 %v424
    %v1663 = vunpack.c.l.b16 %v425
    %v1664 = vunpack.c.l.b16 %v426
    %v1665 = vunpack.c.l.b16 %v427
    %v1666 = vunpack.c.l.b16 %v428
    %v1667 = vunpack.c.l.b16 %v429
    %v1668 = vunpack.c.l.b16 %v430
    %v1669 = vunpack.c.l.b16 %v431
    %v1670 = vunpack.c.l.b16 %v432
    %v1671 = vunpack.c.l.b16 %v433
    %v1672 = vunpack.c.l.b16 %v434
    %v1673 = vunpack.c.l.b16 %v435
    %v1674 = vunpack.c.l.b16 %v436
    %v1675 = vunpack.c.l.b16 %v437
    %v1676 = vunpack.c.l.b16 %v438
    %v1677 = vunpack.c.l.b16 %v439
    %v1678 = vunpack.c.l.b16 %v440
    %v1679 = vunpack.c.l.b16 %v441
    %v1680 = vunpack.c.l.b16 %v442
    %v1681 = vunpack.c.l.b16 %v443
    %v1682 = vunpack.c.l.b16 %v444
    %v1683 = vunpack.c.l.b16 %v445
    %v1684 = vunpack.c.l.b16 %v446
    %v1685 = vunpack.c.l.b16 %v447
    %v1686 = vunpack.c.l.b16 %v448
    %v1687 = vunpack.c.l.b16 %v449
    %v1688 = vunpack.c.l.b16 %v450
    %v1689 = vunpack.c.l.b16 %v451
    %v1690 = vunpack.c.l.b16 %v452
    %v1691 = vunpack.c.l.b16 %v453
    %v1692 = vunpack.c.l.b16 %v454
    %v1693 = vunpack.c.l.b16 %v455
    %v1694 = vunpack.c.l.b16 %v456
    %v1695 = vunpack.c.l.b16 %v457
    %v1696 = vunpack.c.l.b16 %v458
    %v1697 = vunpack.c.l.b16 %v459
    %v1698 = vunpack.c.l.b16 %v460
    %v1699 = vunpack.c.l.b16 %v461
    %v1700 = vunpack.c.l.b16 %v462
    %v1701 = vunpack.c.l.b16 %v463
    %v1702 = vunpack.c.l.b16 %v464
    %v1703 = vunpack.c.l.b16 %v465
    %v1704 = vunpack.c.l.b16 %v466
    %v1705 = vunpack.c.l.b16 %v467
    %v1706 = vunpack.c.l.b16 %v468
    %v1707 = vunpack.c.l.b16 %v469
    %v1708 = vunpack.c.l.b16 %v470
    %v1709 = vunpack.c.l.b16 %v471
    %v1710 = vunpack.c.l.b16 %v472
    %v1711 = vunpack.c.l.b16 %v473
    %v1712 = vunpack.c.l.b16 %v474
    %v1713 = vunpack.c.l.b16 %v475
    %v1714 = vunpack.c.l.b16 %v476
    %v1715 = vunpack.c.l.b16 %v477
    %v1716 = vunpack.c.l.b16 %v478
    %v1717 = vunpack.c.l.b16 %v479
    %v1718 = vunpack.c.l.b16 %v480
    %v1719 = vunpack.c.l.b16 %v481
    %v1720 = vunpack.c.l.b16 %v482
    %v1721 = vunpack.c.l.b16 %v483
    %v1722 = vunpack.c.l.b16 %v484
    %v1723 = vunpack.c.l.b16 %v485
    %v1724 = vunpack.c.l.b16 %v486
    %v1725 = vunpack.c.l.b16 %v487
    %v1726 = vunpack.c.l.b16 %v488
    %v1727 = vunpack.c.l.b16 %v489
    %v1728 = vunpack.c.l.b16 %v490
    %v1729 = vunpack.c.l.b16 %v491
    %v1730 = vunpack.c.l.b16 %v492
    %v1731 = vunpack.c.l.b16 %v493
    %v1732 = vunpack.c.l.b16 %v494
    %v1733 = vunpack.c.l.b16 %v495
    %v1734 = vunpack.c.l.b16 %v496
    %v1735 = vunpack.c.l.b16 %v497
    %v1736 = vunpack.c.l.b16 %v498
    %v1737 = vunpack.c.l.b16 %v499
    %v1738 = vunpack.c.l.b16 %v500
    %v1739 = vunpack.c.l.b16 %v501
    %v1740 = vunpack.c.l.b16 %v502
    %v1741 = vunpack.c.l.b16 %v503
    %v1742 = vunpack.c.l.b16 %v504
    %v1743 = vunpack.c.l.b16 %v505
    %v1744 = vunpack.c.l.b16 %v506
    %v1745 = vunpack.c.l.b16 %v507
    %v1746 = vunpack.c.l.b16 %v508
    %v1747 = vunpack.c.l.b16 %v509
    %v1748 = vunpack.c.l.b16 %v510
    %v1749 = vunpack.c.l.b16 %v511
    %v1750 = vunpack.c.l.b16 %v512
    %v1751 = vunpack.c.l.b16 %v513
    %v1752 = vunpack.c.l.b16 %v514
    %v1753 = vunpack.c.l.b16 %v515
    %v1754 = vunpack.c.l.b16 %v516
    %v1755 = vunpack.c.l.b16 %v517
    %v1756 = vunpack.c.l.b16 %v518
    %v1757 = vunpack.c.l.b16 %v519
    %v1758 = vunpack.c.l.b16 %v520
    %v1759 = vunpack.c.l.b16 %v521
    %v1760 = vunpack.c.l.b16 %v522
    %v1761 = vunpack.c.l.b16 %v523
    %v1762 = vunpack.c.l.b16 %v524
    %v1763 = vunpack.c.l.b16 %v525
    %v1764 = vunpack.c.l.b16 %v526
    %v1765 = vunpack.c.l.b16 %v527
    %v1766 = vunpack.c.l.b16 %v528
    %v1767 = vunpack.c.l.b16 %v529
    %v1768 = vunpack.c.l.b16 %v530
    %v1769 = vunpack.c.l.b16 %v531
    %v1770 = vunpack.c.l.b16 %v532
    %v1771 = vunpack.c.l.b16 %v533
    %v1772 = vunpack.c.l.b16 %v534
    %v1773 = vunpack.c.l.b16 %v535
    %v1774 = vunpack.c.l.b16 %v536
    %v1775 = vunpack.c.l.b16 %v537
    %v1776 = vunpack.c.l.b16 %v538
    %v1777 = vunpack.c.l.b16 %v539
    %v1778 = vunpack.c.l.b16 %v540
    %v1779 = vunpack.c.l.b16 %v541
    %v1780 = vunpack.c.l.b16 %v542
    %v1781 = vunpack.c.l.b16 %v543
    %v1782 = vunpack.c.l.b16 %v544
    %v1783 = vunpack.c.l.b16 %v545
    %v1784 = vunpack.c.l.b16 %v546
    %v1785 = vunpack.c.l.b16 %v547
    %v1786 = vunpack.c.l.b16 %v548
    %v1787 = vunpack.c.l.b16 %v549
    %v1788 = vunpack.c.l.b16 %v550
    %v1789 = vunpack.c.l.b16 %v551
    %v1790 = vunpack.c.l.b16 %v552
    %v1791 = vunpack.c.l.b16 %v553
    %v1792 = vunpack.c.l.b16 %v554
    %v1793 = vunpack.c.l.b16 %v555
    %v1794 = vunpack.c.l.b16 %v556
    %v1795 = vunpack.c.l.b16 %v557
    %v1796 = vunpack.c.l.b16 %v558
    %v1797 = vunpack.c.l.b16 %v559
    %v1798 = vunpack.c.l.b16 %v560
    %v1799 = vunpack.c.l.b16 %v561
    %v1800 = vunpack.c.l.b16 %v562
    %v1801 = vunpack.c.l.b16 %v563
    %v1802 = vunpack.c.l.b16 %v564
    %v1803 = vunpack.c.l.b16 %v565
    %v1804 = vunpack.c.l.b16 %v566
    %v1805 = vunpack.c.l.b16 %v567
    %v1806 = vunpack.c.l.b16 %v568
    %v1807 = vunpack.c.l.b16 %v569
    %v1808 = vunpack.c.l.b16 %v570
    %v1809 = vunpack.c.l.b16 %v571
    %v1810 = vunpack.c.l.b16 %v572
    %v1811 = vunpack.c.l.b16 %v573
    %v1812 = vunpack.c.l.b16 %v574
    %v1813 = vunpack.c.l.b16 %v575
    %v1814 = vunpack.c.l.b16 %v576
    %v1815 = vunpack.c.l.b16 %v577
    %v1816 = vunpack.c.l.b16 %v578
    %v1817 = vunpack.c.l.b16 %v579
    %v1818 = vunpack.c.l.b16 %v580
    %v1819 = vunpack.c.l.b16 %v581
    %v1820 = vunpack.c.l.b16 %v582
    %v1821 = vunpack.c.l.b16 %v583
    %v1822 = vunpack.c.l.b16 %v584
    %v1823 = vunpack.c.l.b16 %v585
    %v1824 = vunpack.c.l.b16 %v586
    %v1825 = vunpack.c.l.b16 %v587
    %v1826 = vunpack.c.l.b16 %v588
    %v1827 = vunpack.c.l.b16 %v589
    %v1828 = vunpack.c.l.b16 %v590
    %v1829 = vunpack.c.l.b16 %v591
    %v1830 = vunpack.c.l.b16 %v592
    %v1831 = vunpack.c.l.b16 %v593
    %v1832 = vunpack.c.l.b16 %v594
    %v1833 = vunpack.c.l.b16 %v595
    %v1834 = vunpack.c.l.b16 %v596
    %v1835 = vunpack.c.l.b16 %v597
    %v1836 = vunpack.c.l.b16 %v598
    %v1837 = vunpack.c.l.b16 %v599
    %v1838 = vunpack.c.l.b16 %v600
    %v1839 = vunpack.c.l.b16 %v601
    %v1840 = vunpack.c.l.b16 %v602
    %v1841 = vpack.c.b16 %v1266, %v1265
    %v1842 = vpack.c.b16 %v1268, %v1267
    %v1843 = vpack.c.b16 %v1270, %v1269
    %v1844 = vpack.c.b16 %v1272, %v1271
    %v1845 = vpack.c.b16 %v1274, %v1273
    %v1846 = vpack.c.b16 %v1276, %v1275
    %v1847 = vpack.c.b16 %v1278, %v1277
    %v1848 = vpack.c.b16 %v1280, %v1279
    %v1849 = vpack.c.b16 %v1282, %v1281
    %v1850 = vpack.c.b16 %v1284, %v1283
    %v1851 = vpack.c.b16 %v1286, %v1285
    %v1852 = vpack.c.b16 %v1288, %v1287
    %v1853 = vpack.c.b16 %v1290, %v1289
    %v1854 = vpack.c.b16 %v1292, %v1291
    %v1855 = vpack.c.b16 %v1294, %v1293
    %v1856 = vpack.c.b16 %v1296, %v1295
    %v1857 = vpack.c.b16 %v1298, %v1297
    %v1858 = vpack.c.b16 %v1300, %v1299
    %v1859 = vpack.c.b16 %v1302, %v1301
    %v1860 = vpack.c.b16 %v1304, %v1303
    %v1861 = vpack.c.b16 %v1306, %v1305
    %v1862 = vpack.c.b16 %v1308, %v1307
    %v1863 = vpack.c.b16 %v1310, %v1309
    %v1864 = vpack.c.b16 %v1312, %v1311
    %v1865 = vpack.c.b16 %v1314, %v1313
    %v1866 = vpack.c.b16 %v1316, %v1315
    %v1867 = vpack.c.b16 %v1318, %v1317
    %v1868 = vpack.c.b16 %v1320, %v1319
    %v1869 = vpack.c.b16 %v1322, %v1321
    %v1870 = vpack.c.b16 %v1324, %v1323
    %v1871 = vpack.c.b16 %v1326, %v1325
    %v1872 = vpack.c.b16 %v1328, %v1327
    %v1873 = vpack.c.b16 %v1330, %v1329
    %v1874 = vpack.c.b16 %v1332, %v1331
    %v1875 = vpack.c.b16 %v1334, %v1333
    %v1876 = vpack.c.b16 %v1336, %v1335
    %v1877 = vpack.c.b16 %v1338, %v1337
    %v1878 = vpack.c.b16 %v1340, %v1339
    %v1879 = vpack.c.b16 %v1342, %v1341
    %v1880 = vpack.c.b16 %v1344, %v1343
    %v1881 = vpack.c.b16 %v1346, %v1345
    %v1882 = vpack.c.b16 %v1348, %v1347
    %v1883 = vpack.c.b16 %v1350, %v1349
    %v1884 = vpack.c.b16 %v1352, %v1351
    %v1885 = vpack.c.b16 %v1354, %v1353
    %v1886 = vpack.c.b16 %v1356, %v1355
    %v1887 = vpack.c.b16 %v1358, %v1357
    %v1888 = vpack.c.b16 %v1360, %v1359
    %v1889 = vpack.c.b16 %v1362, %v1361
    %v1890 = vpack.c.b16 %v1364, %v1363
    %v1891 = vpack.c.b16 %v1366, %v1365
    %v1892 = vpack.c.b16 %v1368, %v1367
    %v1893 = vpack.c.b16 %v1370, %v1369
    %v1894 = vpack.c.b16 %v1372, %v1371
    %v1895 = vpack.c.b16 %v1374, %v1373
    %v1896 = vpack.c.b16 %v1376, %v1375
    %v1897 = vpack.c.b16 %v1378, %v1377
    %v1898 = vpack.c.b16 %v1380, %v1379
    %v1899 = vpack.c.b16 %v1382, %v1381
    %v1900 = vpack.c.b16 %v1384, %v1383
    %v1901 = vpack.c.b16 %v1386, %v1385
    %v1902 = vpack.c.b16 %v1388, %v1387
    %v1903 = vpack.c.b16 %v1390, %v1389
    %v1904 = vpack.c.b16 %v1392, %v1391
    %v1905 = vpack.c.b16 %v1394, %v1393
    %v1906 = vpack.c.b16 %v1396, %v1395
    %v1907 = vpack.c.b16 %v1398, %v1397
    %v1908 = vpack.c.b16 %v1400, %v1399
    %v1909 = vpack.c.b16 %v1402, %v1401
    %v1910 = vpack.c.b16 %v1404, %v1403
    %v1911 = vpack.c.b16 %v1406, %v1405
    %v1912 = vpack.c.b16 %v1408, %v1407
    %v1913 = vpack.c.b16 %v1410, %v1409
    %v1914 = vpack.c.b16 %v1412, %v1411
    %v1915 = vpack.c.b16 %v1414, %v1413
    %v1916 = vpack.c.b16 %v1416, %v1415
    %v1917 = vpack.c.b16 %v1418, %v1417
    %v1918 = vpack.c.b16 %v1420, %v1419
    %v1919 = vpack.c.b16 %v1422, %v1421
    %v1920 = vpack.c.b16 %v1424, %v1423
    %v1921 = vpack.c.b16 %v1426, %v1425
    %v1922 = vpack.c.b16 %v1428, %v1427
    %v1923 = vpack.c.b16 %v1430, %v1429
    %v1924 = vpack.c.b16 %v1432, %v1431
    %v1925 = vpack.c.b16 %v1434, %v1433
    %v1926 = vpack.c.b16 %v1436, %v1435
    %v1927 = vpack.c.b16 %v1438, %v1437
    %v1928 = vpack.c.b16 %v1440, %v1439
    %v1929 = vpack.c.b16 %v1442, %v1441
    %v1930 = vpack.c.b16 %v1444, %v1443
    %v1931 = vpack.c.b16 %v1446, %v1445
    %v1932 = vpack.c.b16 %v1448, %v1447
    %v1933 = vpack.c.b16 %v1450, %v1449
    %v1934 = vpack.c.b16 %v1452, %v1451
    %v1935 = vpack.c.b16 %v1454, %v1453
    %v1936 = vpack.c.b16 %v1456, %v1455
    %v1937 = vpack.c.b16 %v1458, %v1457
    %v1938 = vpack.c.b16 %v1460, %v1459
    %v1939 = vpack.c.b16 %v1462, %v1461
    %v1940 = vpack.c.b16 %v1464, %v1463
    %v1941 = vpack.c.b16 %v1466, %v1465
    %v1942 = vpack.c.b16 %v1468, %v1467
    %v1943 = vpack.c.b16 %v1470, %v1469
    %v1944 = vpack.c.b16 %v1472, %v1471
    %v1945 = vpack.c.b16 %v1474, %v1473
    %v1946 = vpack.c.b16 %v1476, %v1475
    %v1947 = vpack.c.b16 %v1478, %v1477
    %v1948 = vpack.c.b16 %v1480, %v1479
    %v1949 = vpack.c.b16 %v1482, %v1481
    %v1950 = vpack.c.b16 %v1484, %v1483
    %v1951 = vpack.c.b16 %v1486, %v1485
    %v1952 = vpack.c.b16 %v1488, %v1487
    %v1953 = vpack.c.b16 %v1490, %v1489
    %v1954 = vpack.c.b16 %v1492, %v1491
    %v1955 = vpack.c.b16 %v1494, %v1493
    %v1956 = vpack.c.b16 %v1496, %v1495
    %v1957 = vpack.c.b16 %v1498, %v1497
    %v1958 = vpack.c.b16 %v1500, %v1499
    %v1959 = vpack.c.b16 %v1502, %v1501
    %v1960 = vpack.c.b16 %v1504, %v1503
    %v1961 = vpack.c.b16 %v1506, %v1505
    %v1962 = vpack.c.b16 %v1508, %v1507
    %v1963 = vpack.c.b16 %v1510, %v1509
    %v1964 = vpack.c.b16 %v1512, %v1511
    %v1965 = vpack.c.b16 %v1514, %v1513
    %v1966 = vpack.c.b16 %v1516, %v1515
    %v1967 = vpack.c.b16 %v1518, %v1517
    %v1968 = vpack.c.b16 %v1520, %v1519
    %v1969 = vpack.c.b16 %v1522, %v1521
    %v1970 = vpack.c.b16 %v1524, %v1523
    %v1971 = vpack.c.b16 %v1526, %v1525
    %v1972 = vpack.c.b16 %v1528, %v1527
    %v1973 = vpack.c.b16 %v1530, %v1529
    %v1974 = vpack.c.b16 %v1532, %v1531
    %v1975 = vpack.c.b16 %v1534, %v1533
    %v1976 = vpack.c.b16 %v1536, %v1535
    %v1977 = vpack.c.b16 %v1538, %v1537
    %v1978 = vpack.c.b16 %v1540, %v1539
    %v1979 = vpack.c.b16 %v1542, %v1541
    %v1980 = vpack.c.b16 %v1544, %v1543
    %v1981 = vpack.c.b16 %v1546, %v1545
    %v1982 = vpack.c.b16 %v1548, %v1547
    %v1983 = vpack.c.b16 %v1550, %v1549
    %v1984 = vpack.c.b16 %v1552, %v1551
    %v1985 = vpack.c.b16 %v1554, %v1553
    %v1986 = vpack.c.b16 %v1556, %v1555
    %v1987 = vpack.c.b16 %v1558, %v1557
    %v1988 = vpack.c.b16 %v1560, %v1559
    %v1989 = vpack.c.b16 %v1562, %v1561
    %v1990 = vpack.c.b16 %v1564, %v1563
    %v1991 = vpack.c.b16 %v1566, %v1565
    %v1992 = vpack.c.b16 %v1568, %v1567
    %v1993 = vpack.c.b16 %v1570, %v1569
    %v1994 = vpack.c.b16 %v1572, %v1571
    %v1995 = vpack.c.b16 %v1574, %v1573
    %v1996 = vpack.c.b16 %v1576, %v1575
    %v1997 = vpack.c.b16 %v1578, %v1577
    %v1998 = vpack.c.b16 %v1580, %v1579
    %v1999 = vpack.c.b16 %v1582, %v1581
    %v2000 = vpack.c.b16 %v1584, %v1583
    %v2001 = vpack.c.b16 %v1586, %v1585
    %v2002 = vpack.c.b16 %v1588, %v1587
    %v2003 = vpack.c.b16 %v1590, %v1589
    %v2004 = vpack.c.b16 %v1592, %v1591
    %v2005 = vpack.c.b16 %v1594, %v1593
    %v2006 = vpack.c.b16 %v1596, %v1595
    %v2007 = vpack.c.b16 %v1598, %v1597
    %v2008 = vpack.c.b16 %v1600, %v1599
    %v2009 = vpack.c.b16 %v1602, %v1601
    %v2010 = vpack.c.b16 %v1604, %v1603
    %v2011 = vpack.c.b16 %v1606, %v1605
    %v2012 = vpack.c.b16 %v1608, %v1607
    %v2013 = vpack.c.b16 %v1610, %v1609
    %v2014 = vpack.c.b16 %v1612, %v1611
    %v2015 = vpack.c.b16 %v1614, %v1613
    %v2016 = vpack.c.b16 %v1616, %v1615
    %v2017 = vpack.c.b16 %v1618, %v1617
    %v2018 = vpack.c.b16 %v1620, %v1619
    %v2019 = vpack.c.b16 %v1622, %v1621
    %v2020 = vpack.c.b16 %v1624, %v1623
    %v2021 = vpack.c.b16 %v1626, %v1625
    %v2022 = vpack.c.b16 %v1628, %v1627
    %v2023 = vpack.c.b16 %v1630, %v1629
    %v2024 = vpack.c.b16 %v1632, %v1631
    %v2025 = vpack.c.b16 %v1634, %v1633
    %v2026 = vpack.c.b16 %v1636, %v1635
    %v2027 = vpack.c.b16 %v1638, %v1637
    %v2028 = vpack.c.b16 %v1640, %v1639
    %v2029 = vpack.c.b16 %v1642, %v1641
    %v2030 = vpack.c.b16 %v1644, %v1643
    %v2031 = vpack.c.b16 %v1646, %v1645
    %v2032 = vpack.c.b16 %v1648, %v1647
    %v2033 = vpack.c.b16 %v1650, %v1649
    %v2034 = vpack.c.b16 %v1652, %v1651
    %v2035 = vpack.c.b16 %v1654, %v1653
    %v2036 = vpack.c.b16 %v1656, %v1655
    %v2037 = vpack.c.b16 %v1658, %v1657
    %v2038 = vpack.c.b16 %v1660, %v1659
    %v2039 = vpack.c.b16 %v1662, %v1661
    %v2040 = vpack.c.b16 %v1664, %v1663
    %v2041 = vpack.c.b16 %v1666, %v1665
    %v2042 = vpack.c.b16 %v1668, %v1667
    %v2043 = vpack.c.b16 %v1670, %v1669
    %v2044 = vpack.c.b16 %v1672, %v1671
    %v2045 = vpack.c.b16 %v1674, %v1673
    %v2046 = vpack.c.b16 %v1676, %v1675
    %v2047 = vpack.c.b16 %v1678, %v1677
    %v2048 = vpack.c.b16 %v1680, %v1679
    %v2049 = vpack.c.b16 %v1682, %v1681
    %v2050 = vpack.c.b16 %v1684, %v1683
    %v2051 = vpack.c.b16 %v1686, %v1685
    %v2052 = vpack.c.b16 %v1688, %v1687
    %v2053 = vpack.c.b16 %v1690, %v1689
    %v2054 = vpack.c.b16 %v1692, %v1691
    %v2055 = vpack.c.b16 %v1694, %v1693
    %v2056 = vpack.c.b16 %v1696, %v1695
    %v2057 = vpack.c.b16 %v1698, %v1697
    %v2058 = vpack.c.b16 %v1700, %v1699
    %v2059 = vpack.c.b16 %v1702, %v1701
    %v2060 = vpack.c.b16 %v1704, %v1703
    %v2061 = vpack.c.b16 %v1706, %v1705
    %v2062 = vpack.c.b16 %v1708, %v1707
    %v2063 = vpack.c.b16 %v1710, %v1709
    %v2064 = vpack.c.b16 %v1712, %v1711
    %v2065 = vpack.c.b16 %v1714, %v1713
    %v2066 = vpack.c.b16 %v1716, %v1715
    %v2067 = vpack.c.b16 %v1718, %v1717
    %v2068 = vpack.c.b16 %v1720, %v1719
    %v2069 = vpack.c.b16 %v1722, %v1721
    %v2070 = vpack.c.b16 %v1724, %v1723
    %v2071 = vpack.c.b16 %v1726, %v1725
    %v2072 = vpack.c.b16 %v1728, %v1727
    %v2073 = vpack.c.b16 %v1730, %v1729
    %v2074 = vpack.c.b16 %v1732, %v1731
    %v2075 = vpack.c.b16 %v1734, %v1733
    %v2076 = vpack.c.b16 %v1736, %v1735
    %v2077 = vpack.c.b16 %v1738, %v1737
    %v2078 = vpack.c.b16 %v1740, %v1739
    %v2079 = vpack.c.b16 %v1742, %v1741
    %v2080 = vpack.c.b16 %v1744, %v1743
    %v2081 = vpack.c.b16 %v1746, %v1745
    %v2082 = vpack.c.b16 %v1748, %v1747
    %v2083 = vpack.c.b16 %v1750, %v1749
    %v2084 = vpack.c.b16 %v1752, %v1751
    %v2085 = vpack.c.b16 %v1754, %v1753
    %v2086 = vpack.c.b16 %v1756, %v1755
    %v2087 = vpack.c.b16 %v1758, %v1757
    %v2088 = vpack.c.b16 %v1760, %v1759
    %v2089 = vpack.c.b16 %v1762, %v1761
    %v2090 = vpack.c.b16 %v1764, %v1763
    %v2091 = vpack.c.b16 %v1766, %v1765
    %v2092 = vpack.c.b16 %v1768, %v1767
    %v2093 = vpack.c.b16 %v1770, %v1769
    %v2094 = vpack.c.b16 %v1772, %v1771
    %v2095 = vpack.c.b16 %v1774, %v1773
    %v2096 = vpack.c.b16 %v1776, %v1775
    %v2097 = vpack.c.b16 %v1778, %v1777
    %v2098 = vpack.c.b16 %v1780, %v1779
    %v2099 = vpack.c.b16 %v1782, %v1781
    %v2100 = vpack.c.b16 %v1784, %v1783
    %v2101 = vpack.c.b16 %v1786, %v1785
    %v2102 = vpack.c.b16 %v1788, %v1787
    %v2103 = vpack.c.b16 %v1790, %v1789
    %v2104 = vpack.c.b16 %v1792, %v1791
    %v2105 = vpack.c.b16 %v1794, %v1793
    %v2106 = vpack.c.b16 %v1796, %v1795
    %v2107 = vpack.c.b16 %v1798, %v1797
    %v2108 = vpack.c.b16 %v1800, %v1799
    %v2109 = vpack.c.b16 %v1802, %v1801
    %v2110 = vpack.c.b16 %v1804, %v1803
    %v2111 = vpack.c.b16 %v1806, %v1805
    %v2112 = vpack.c.b16 %v1808, %v1807
    %v2113 = vpack.c.b16 %v1810, %v1809
    %v2114 = vpack.c.b16 %v1812, %v1811
    %v2115 = vpack.c.b16 %v1814, %v1813
    %v2116 = vpack.c.b16 %v1816, %v1815
    %v2117 = vpack.c.b16 %v1818, %v1817
    %v2118 = vpack.c.b16 %v1820, %v1819
    %v2119 = vpack.c.b16 %v1822, %v1821
    %v2120 = vpack.c.b16 %v1824, %v1823
    %v2121 = vpack.c.b16 %v1826, %v1825
    %v2122 = vpack.c.b16 %v1828, %v1827
    %v2123 = vpack.c.b16 %v1830, %v1829
    %v2124 = vpack.c.b16 %v1832, %v1831
    %v2125 = vpack.c.b16 %v1834, %v1833
    %v2126 = vpack.c.b16 %v1836, %v1835
    %v2127 = vpack.c.b16 %v1838, %v1837
    %v2128 = vpack.c.b16 %v1840, %v1839
    %2417 = vmatpush.bf16.msra.mxu0 %v1848
    %2418 = vmatpush.bf16.msra.mxu0 %v1847
    %2419 = vmatpush.bf16.msra.mxu0 %v1846
    %2420 = vmatpush.bf16.msra.mxu0 %v1845
    %2421 = vmatpush.bf16.msra.mxu0 %v1844
    %2422 = vmatpush.bf16.msra.mxu0 %v1843
    %2423 = vmatpush.bf16.msra.mxu0 %v1842
    %2424 = vmatpush.bf16.msra.mxu0 %v1841
    %2425 = vmatmul.bf16.gmra.mxu0 %v609
    %v2426 = vpop.f32.mrf.mxu0
    %v2427 = vadd.f32 %v605, %v2426
    %v2428 = vpop.f32.mrf.mxu0
    %2429 = vdwg.mxu0
    %2430 = vmatpush.bf16.msra.mxu0 %v1856
    %2431 = vmatpush.bf16.msra.mxu0 %v1855
    %2432 = vmatpush.bf16.msra.mxu0 %v1854
    %2433 = vmatpush.bf16.msra.mxu0 %v1853
    %2434 = vmatpush.bf16.msra.mxu0 %v1852
    %2435 = vmatpush.bf16.msra.mxu0 %v1851
    %2436 = vmatpush.bf16.msra.mxu0 %v1850
    %2437 = vmatpush.bf16.msra.mxu0 %v1849
    %2438 = vmatmul.bf16.gmra.mxu0 %v610
    %v2439 = vpop.f32.mrf.mxu0
    %v2440 = vadd.f32 %v2427, %v2439
    %v2441 = vpop.f32.mrf.mxu0
    %2442 = vdwg.mxu0
    %2443 = vmatpush.bf16.msra.mxu0 %v1864
    %2444 = vmatpush.bf16.msra.mxu0 %v1863
    %2445 = vmatpush.bf16.msra.mxu0 %v1862
    %2446 = vmatpush.bf16.msra.mxu0 %v1861
    %2447 = vmatpush.bf16.msra.mxu0 %v1860
    %2448 = vmatpush.bf16.msra.mxu0 %v1859
    %2449 = vmatpush.bf16.msra.mxu0 %v1858
    %2450 = vmatpush.bf16.msra.mxu0 %v1857
    %2451 = vmatmul.bf16.gmra.mxu0 %v611
    %v2452 = vpop.f32.mrf.mxu0
    %v2453 = vadd.f32 %v2440, %v2452
    %v2454 = vpop.f32.mrf.mxu0
    %2455 = vdwg.mxu0
    %2456 = vmatpush.bf16.msra.mxu0 %v1872
    %2457 = vmatpush.bf16.msra.mxu0 %v1871
    %2458 = vmatpush.bf16.msra.mxu0 %v1870
    %2459 = vmatpush.bf16.msra.mxu0 %v1869
    %2460 = vmatpush.bf16.msra.mxu0 %v1868
    %2461 = vmatpush.bf16.msra.mxu0 %v1867
    %2462 = vmatpush.bf16.msra.mxu0 %v1866
    %2463 = vmatpush.bf16.msra.mxu0 %v1865
    %2464 = vmatmul.bf16.gmra.mxu0 %v612
    %v2465 = vpop.f32.mrf.mxu0
    %v2466 = vadd.f32 %v2453, %v2465
    %v2467 = vpop.f32.mrf.mxu0
    %2468 = vdwg.mxu0
    %2469 = vmatpush.bf16.msra.mxu0 %v1880
    %2470 = vmatpush.bf16.msra.mxu0 %v1879
    %2471 = vmatpush.bf16.msra.mxu0 %v1878
    %2472 = vmatpush.bf16.msra.mxu0 %v1877
    %2473 = vmatpush.bf16.msra.mxu0 %v1876
    %2474 = vmatpush.bf16.msra.mxu0 %v1875
    %2475 = vmatpush.bf16.msra.mxu0 %v1874
    %2476 = vmatpush.bf16.msra.mxu0 %v1873
    %2477 = vmatmul.bf16.gmra.mxu0 %v613
    %v2478 = vpop.f32.mrf.mxu0
    %v2479 = vadd.f32 %v2466, %v2478
    %v2480 = vpop.f32.mrf.mxu0
    %2481 = vdwg.mxu0
    %2482 = vmatpush.bf16.msra.mxu0 %v1888
    %2483 = vmatpush.bf16.msra.mxu0 %v1887
    %2484 = vmatpush.bf16.msra.mxu0 %v1886
    %2485 = vmatpush.bf16.msra.mxu0 %v1885
    %2486 = vmatpush.bf16.msra.mxu0 %v1884
    %2487 = vmatpush.bf16.msra.mxu0 %v1883
    %2488 = vmatpush.bf16.msra.mxu0 %v1882
    %2489 = vmatpush.bf16.msra.mxu0 %v1881
    %2490 = vmatmul.bf16.gmra.mxu0 %v614
    %v2491 = vpop.f32.mrf.mxu0
    %v2492 = vadd.f32 %v2479, %v2491
    %v2493 = vpop.f32.mrf.mxu0
    %2494 = vdwg.mxu0
    %2495 = vmatpush.bf16.msra.mxu0 %v1896
    %2496 = vmatpush.bf16.msra.mxu0 %v1895
    %2497 = vmatpush.bf16.msra.mxu0 %v1894
    %2498 = vmatpush.bf16.msra.mxu0 %v1893
    %2499 = vmatpush.bf16.msra.mxu0 %v1892
    %2500 = vmatpush.bf16.msra.mxu0 %v1891
    %2501 = vmatpush.bf16.msra.mxu0 %v1890
    %2502 = vmatpush.bf16.msra.mxu0 %v1889
    %2503 = vmatmul.bf16.gmra.mxu0 %v615
    %v2504 = vpop.f32.mrf.mxu0
    %v2505 = vadd.f32 %v2492, %v2504
    %v2506 = vpop.f32.mrf.mxu0
    %2507 = vdwg.mxu0
    %2508 = vmatpush.bf16.msra.mxu0 %v1904
    %2509 = vmatpush.bf16.msra.mxu0 %v1903
    %2510 = vmatpush.bf16.msra.mxu0 %v1902
    %2511 = vmatpush.bf16.msra.mxu0 %v1901
    %2512 = vmatpush.bf16.msra.mxu0 %v1900
    %2513 = vmatpush.bf16.msra.mxu0 %v1899
    %2514 = vmatpush.bf16.msra.mxu0 %v1898
    %2515 = vmatpush.bf16.msra.mxu0 %v1897
    %2516 = vmatmul.bf16.gmra.mxu0 %v616
    %v2517 = vpop.f32.mrf.mxu0
    %v2518 = vadd.f32 %v2505, %v2517
    %v2519 = vpop.f32.mrf.mxu0
    %2520 = vdwg.mxu0
    %2521 = vmatpush.bf16.msra.mxu0 %v1912
    %2522 = vmatpush.bf16.msra.mxu0 %v1911
    %2523 = vmatpush.bf16.msra.mxu0 %v1910
    %2524 = vmatpush.bf16.msra.mxu0 %v1909
    %2525 = vmatpush.bf16.msra.mxu0 %v1908
    %2526 = vmatpush.bf16.msra.mxu0 %v1907
    %2527 = vmatpush.bf16.msra.mxu0 %v1906
    %2528 = vmatpush.bf16.msra.mxu0 %v1905
    %2529 = vmatmul.bf16.gmra.mxu0 %v619
    %v2530 = vpop.f32.mrf.mxu0
    %v2531 = vadd.f32 %v2518, %v2530
    %v2532 = vpop.f32.mrf.mxu0
    %2533 = vdwg.mxu0
    %2534 = vmatpush.bf16.msra.mxu0 %v1920
    %2535 = vmatpush.bf16.msra.mxu0 %v1919
    %2536 = vmatpush.bf16.msra.mxu0 %v1918
    %2537 = vmatpush.bf16.msra.mxu0 %v1917
    %2538 = vmatpush.bf16.msra.mxu0 %v1916
    %2539 = vmatpush.bf16.msra.mxu0 %v1915
    %2540 = vmatpush.bf16.msra.mxu0 %v1914
    %2541 = vmatpush.bf16.msra.mxu0 %v1913
    %2542 = vmatmul.bf16.gmra.mxu0 %v620
    %v2543 = vpop.f32.mrf.mxu0
    %v2544 = vadd.f32 %v2531, %v2543
    %v2545 = vpop.f32.mrf.mxu0
    %2546 = vdwg.mxu0
    %2547 = vmatpush.bf16.msra.mxu0 %v1928
    %2548 = vmatpush.bf16.msra.mxu0 %v1927
    %2549 = vmatpush.bf16.msra.mxu0 %v1926
    %2550 = vmatpush.bf16.msra.mxu0 %v1925
    %2551 = vmatpush.bf16.msra.mxu0 %v1924
    %2552 = vmatpush.bf16.msra.mxu0 %v1923
    %2553 = vmatpush.bf16.msra.mxu0 %v1922
    %2554 = vmatpush.bf16.msra.mxu0 %v1921
    %2555 = vmatmul.bf16.gmra.mxu0 %v621
    %v2556 = vpop.f32.mrf.mxu0
    %v2557 = vadd.f32 %v2544, %v2556
    %v2558 = vpop.f32.mrf.mxu0
    %2559 = vdwg.mxu0
    %2560 = vmatpush.bf16.msra.mxu0 %v1936
    %2561 = vmatpush.bf16.msra.mxu0 %v1935
    %2562 = vmatpush.bf16.msra.mxu0 %v1934
    %2563 = vmatpush.bf16.msra.mxu0 %v1933
    %2564 = vmatpush.bf16.msra.mxu0 %v1932
    %2565 = vmatpush.bf16.msra.mxu0 %v1931
    %2566 = vmatpush.bf16.msra.mxu0 %v1930
    %2567 = vmatpush.bf16.msra.mxu0 %v1929
    %2568 = vmatmul.bf16.gmra.mxu0 %v622
    %v2569 = vpop.f32.mrf.mxu0
    %v2570 = vadd.f32 %v2557, %v2569
    %v2571 = vpop.f32.mrf.mxu0
    %2572 = vdwg.mxu0
    %2573 = vmatpush.bf16.msra.mxu0 %v1944
    %2574 = vmatpush.bf16.msra.mxu0 %v1943
    %2575 = vmatpush.bf16.msra.mxu0 %v1942
    %2576 = vmatpush.bf16.msra.mxu0 %v1941
    %2577 = vmatpush.bf16.msra.mxu0 %v1940
    %2578 = vmatpush.bf16.msra.mxu0 %v1939
    %2579 = vmatpush.bf16.msra.mxu0 %v1938
    %2580 = vmatpush.bf16.msra.mxu0 %v1937
    %2581 = vmatmul.bf16.gmra.mxu0 %v623
    %v2582 = vpop.f32.mrf.mxu0
    %v2583 = vadd.f32 %v2570, %v2582
    %v2584 = vpop.f32.mrf.mxu0
    %2585 = vdwg.mxu0
    %2586 = vmatpush.bf16.msra.mxu0 %v1952
    %2587 = vmatpush.bf16.msra.mxu0 %v1951
    %2588 = vmatpush.bf16.msra.mxu0 %v1950
    %2589 = vmatpush.bf16.msra.mxu0 %v1949
    %2590 = vmatpush.bf16.msra.mxu0 %v1948
    %2591 = vmatpush.bf16.msra.mxu0 %v1947
    %2592 = vmatpush.bf16.msra.mxu0 %v1946
    %2593 = vmatpush.bf16.msra.mxu0 %v1945
    %2594 = vmatmul.bf16.gmra.mxu0 %v624
    %v2595 = vpop.f32.mrf.mxu0
    %v2596 = vadd.f32 %v2583, %v2595
    %v2597 = vpop.f32.mrf.mxu0
    %2598 = vdwg.mxu0
    %2599 = vmatpush.bf16.msra.mxu0 %v1960
    %2600 = vmatpush.bf16.msra.mxu0 %v1959
    %2601 = vmatpush.bf16.msra.mxu0 %v1958
    %2602 = vmatpush.bf16.msra.mxu0 %v1957
    %2603 = vmatpush.bf16.msra.mxu0 %v1956
    %2604 = vmatpush.bf16.msra.mxu0 %v1955
    %2605 = vmatpush.bf16.msra.mxu0 %v1954
    %2606 = vmatpush.bf16.msra.mxu0 %v1953
    %2607 = vmatmul.bf16.gmra.mxu0 %v625
    %v2608 = vpop.f32.mrf.mxu0
    %v2609 = vadd.f32 %v2596, %v2608
    %v2610 = vpop.f32.mrf.mxu0
    %2611 = vdwg.mxu0
    %2612 = vmatpush.bf16.msra.mxu0 %v1968
    %2613 = vmatpush.bf16.msra.mxu0 %v1967
    %2614 = vmatpush.bf16.msra.mxu0 %v1966
    %2615 = vmatpush.bf16.msra.mxu0 %v1965
    %2616 = vmatpush.bf16.msra.mxu0 %v1964
    %2617 = vmatpush.bf16.msra.mxu0 %v1963
    %2618 = vmatpush.bf16.msra.mxu0 %v1962
    %2619 = vmatpush.bf16.msra.mxu0 %v1961
    %2620 = vmatmul.bf16.gmra.mxu0 %v626
    %v2621 = vpop.f32.mrf.mxu0
    %v2622 = vadd.f32 %v2609, %v2621
    %v2623 = vpop.f32.mrf.mxu0
    %2624 = vdwg.mxu0
    %2625 = vmatpush.bf16.msra.mxu0 %v1976
    %2626 = vmatpush.bf16.msra.mxu0 %v1975
    %2627 = vmatpush.bf16.msra.mxu0 %v1974
    %2628 = vmatpush.bf16.msra.mxu0 %v1973
    %2629 = vmatpush.bf16.msra.mxu0 %v1972
    %2630 = vmatpush.bf16.msra.mxu0 %v1971
    %2631 = vmatpush.bf16.msra.mxu0 %v1970
    %2632 = vmatpush.bf16.msra.mxu0 %v1969
    %2633 = vmatmul.bf16.gmra.mxu0 %v629
    %v2634 = vpop.f32.mrf.mxu0
    %v2635 = vadd.f32 %v2622, %v2634
    %v2636 = vpop.f32.mrf.mxu0
    %2637 = vdwg.mxu0
    %2638 = vmatpush.bf16.msra.mxu0 %v1984
    %2639 = vmatpush.bf16.msra.mxu0 %v1983
    %2640 = vmatpush.bf16.msra.mxu0 %v1982
    %2641 = vmatpush.bf16.msra.mxu0 %v1981
    %2642 = vmatpush.bf16.msra.mxu0 %v1980
    %2643 = vmatpush.bf16.msra.mxu0 %v1979
    %2644 = vmatpush.bf16.msra.mxu0 %v1978
    %2645 = vmatpush.bf16.msra.mxu0 %v1977
    %2646 = vmatmul.bf16.gmra.mxu0 %v630
    %v2647 = vpop.f32.mrf.mxu0
    %v2648 = vadd.f32 %v2635, %v2647
    %v2649 = vpop.f32.mrf.mxu0
    %2650 = vdwg.mxu0
    %2651 = vmatpush.bf16.msra.mxu0 %v1992
    %2652 = vmatpush.bf16.msra.mxu0 %v1991
    %2653 = vmatpush.bf16.msra.mxu0 %v1990
    %2654 = vmatpush.bf16.msra.mxu0 %v1989
    %2655 = vmatpush.bf16.msra.mxu0 %v1988
    %2656 = vmatpush.bf16.msra.mxu0 %v1987
    %2657 = vmatpush.bf16.msra.mxu0 %v1986
    %2658 = vmatpush.bf16.msra.mxu0 %v1985
    %2659 = vmatmul.bf16.gmra.mxu0 %v631
    %v2660 = vpop.f32.mrf.mxu0
    %v2661 = vadd.f32 %v2648, %v2660
    %v2662 = vpop.f32.mrf.mxu0
    %2663 = vdwg.mxu0
    %2664 = vmatpush.bf16.msra.mxu0 %v2000
    %2665 = vmatpush.bf16.msra.mxu0 %v1999
    %2666 = vmatpush.bf16.msra.mxu0 %v1998
    %2667 = vmatpush.bf16.msra.mxu0 %v1997
    %2668 = vmatpush.bf16.msra.mxu0 %v1996
    %2669 = vmatpush.bf16.msra.mxu0 %v1995
    %2670 = vmatpush.bf16.msra.mxu0 %v1994
    %2671 = vmatpush.bf16.msra.mxu0 %v1993
    %2672 = vmatmul.bf16.gmra.mxu0 %v632
    %v2673 = vpop.f32.mrf.mxu0
    %v2674 = vadd.f32 %v2661, %v2673
    %v2675 = vpop.f32.mrf.mxu0
    %2676 = vdwg.mxu0
    %2677 = vmatpush.bf16.msra.mxu0 %v2008
    %2678 = vmatpush.bf16.msra.mxu0 %v2007
    %2679 = vmatpush.bf16.msra.mxu0 %v2006
    %2680 = vmatpush.bf16.msra.mxu0 %v2005
    %2681 = vmatpush.bf16.msra.mxu0 %v2004
    %2682 = vmatpush.bf16.msra.mxu0 %v2003
    %2683 = vmatpush.bf16.msra.mxu0 %v2002
    %2684 = vmatpush.bf16.msra.mxu0 %v2001
    %2685 = vmatmul.bf16.gmra.mxu0 %v633
    %v2686 = vpop.f32.mrf.mxu0
    %v2687 = vadd.f32 %v2674, %v2686
    %v2688 = vpop.f32.mrf.mxu0
    %2689 = vdwg.mxu0
    %2690 = vmatpush.bf16.msra.mxu0 %v2016
    %2691 = vmatpush.bf16.msra.mxu0 %v2015
    %2692 = vmatpush.bf16.msra.mxu0 %v2014
    %2693 = vmatpush.bf16.msra.mxu0 %v2013
    %2694 = vmatpush.bf16.msra.mxu0 %v2012
    %2695 = vmatpush.bf16.msra.mxu0 %v2011
    %2696 = vmatpush.bf16.msra.mxu0 %v2010
    %2697 = vmatpush.bf16.msra.mxu0 %v2009
    %2698 = vmatmul.bf16.gmra.mxu0 %v634
    %v2699 = vpop.f32.mrf.mxu0
    %v2700 = vadd.f32 %v2687, %v2699
    %v2701 = vpop.f32.mrf.mxu0
    %2702 = vdwg.mxu0
    %2703 = vmatpush.bf16.msra.mxu0 %v2024
    %2704 = vmatpush.bf16.msra.mxu0 %v2023
    %2705 = vmatpush.bf16.msra.mxu0 %v2022
    %2706 = vmatpush.bf16.msra.mxu0 %v2021
    %2707 = vmatpush.bf16.msra.mxu0 %v2020
    %2708 = vmatpush.bf16.msra.mxu0 %v2019
    %2709 = vmatpush.bf16.msra.mxu0 %v2018
    %2710 = vmatpush.bf16.msra.mxu0 %v2017
    %2711 = vmatmul.bf16.gmra.mxu0 %v635
    %v2712 = vpop.f32.mrf.mxu0
    %v2713 = vadd.f32 %v2700, %v2712
    %v2714 = vpop.f32.mrf.mxu0
    %2715 = vdwg.mxu0
    %2716 = vmatpush.bf16.msra.mxu0 %v2032
    %2717 = vmatpush.bf16.msra.mxu0 %v2031
    %2718 = vmatpush.bf16.msra.mxu0 %v2030
    %2719 = vmatpush.bf16.msra.mxu0 %v2029
    %2720 = vmatpush.bf16.msra.mxu0 %v2028
    %2721 = vmatpush.bf16.msra.mxu0 %v2027
    %2722 = vmatpush.bf16.msra.mxu0 %v2026
    %2723 = vmatpush.bf16.msra.mxu0 %v2025
    %2724 = vmatmul.bf16.gmra.mxu0 %v636
    %v2725 = vpop.f32.mrf.mxu0
    %v2726 = vadd.f32 %v2713, %v2725
    %v2727 = vpop.f32.mrf.mxu0
    %2728 = vdwg.mxu0
    %2729 = vmatpush.bf16.msra.mxu0 %v2040
    %2730 = vmatpush.bf16.msra.mxu0 %v2039
    %2731 = vmatpush.bf16.msra.mxu0 %v2038
    %2732 = vmatpush.bf16.msra.mxu0 %v2037
    %2733 = vmatpush.bf16.msra.mxu0 %v2036
    %2734 = vmatpush.bf16.msra.mxu0 %v2035
    %2735 = vmatpush.bf16.msra.mxu0 %v2034
    %2736 = vmatpush.bf16.msra.mxu0 %v2033
    %2737 = vmatmul.bf16.gmra.mxu0 %v639
    %v2738 = vpop.f32.mrf.mxu0
    %v2739 = vadd.f32 %v2726, %v2738
    %v2740 = vpop.f32.mrf.mxu0
    %2741 = vdwg.mxu0
    %2742 = vmatpush.bf16.msra.mxu0 %v2048
    %2743 = vmatpush.bf16.msra.mxu0 %v2047
    %2744 = vmatpush.bf16.msra.mxu0 %v2046
    %2745 = vmatpush.bf16.msra.mxu0 %v2045
    %2746 = vmatpush.bf16.msra.mxu0 %v2044
    %2747 = vmatpush.bf16.msra.mxu0 %v2043
    %2748 = vmatpush.bf16.msra.mxu0 %v2042
    %2749 = vmatpush.bf16.msra.mxu0 %v2041
    %2750 = vmatmul.bf16.gmra.mxu0 %v640
    %v2751 = vpop.f32.mrf.mxu0
    %v2752 = vadd.f32 %v2739, %v2751
    %v2753 = vpop.f32.mrf.mxu0
    %2754 = vdwg.mxu0
    %2755 = vmatpush.bf16.msra.mxu0 %v2056
    %2756 = vmatpush.bf16.msra.mxu0 %v2055
    %2757 = vmatpush.bf16.msra.mxu0 %v2054
    %2758 = vmatpush.bf16.msra.mxu0 %v2053
    %2759 = vmatpush.bf16.msra.mxu0 %v2052
    %2760 = vmatpush.bf16.msra.mxu0 %v2051
    %2761 = vmatpush.bf16.msra.mxu0 %v2050
    %2762 = vmatpush.bf16.msra.mxu0 %v2049
    %2763 = vmatmul.bf16.gmra.mxu0 %v641
    %v2764 = vpop.f32.mrf.mxu0
    %v2765 = vadd.f32 %v2752, %v2764
    %v2766 = vpop.f32.mrf.mxu0
    %2767 = vdwg.mxu0
    %2768 = vmatpush.bf16.msra.mxu0 %v2064
    %2769 = vmatpush.bf16.msra.mxu0 %v2063
    %2770 = vmatpush.bf16.msra.mxu0 %v2062
    %2771 = vmatpush.bf16.msra.mxu0 %v2061
    %2772 = vmatpush.bf16.msra.mxu0 %v2060
    %2773 = vmatpush.bf16.msra.mxu0 %v2059
    %2774 = vmatpush.bf16.msra.mxu0 %v2058
    %2775 = vmatpush.bf16.msra.mxu0 %v2057
    %2776 = vmatmul.bf16.gmra.mxu0 %v642
    %v2777 = vpop.f32.mrf.mxu0
    %v2778 = vadd.f32 %v2765, %v2777
    %v2779 = vpop.f32.mrf.mxu0
    %2780 = vdwg.mxu0
    %2781 = vmatpush.bf16.msra.mxu0 %v2072
    %2782 = vmatpush.bf16.msra.mxu0 %v2071
    %2783 = vmatpush.bf16.msra.mxu0 %v2070
    %2784 = vmatpush.bf16.msra.mxu0 %v2069
    %2785 = vmatpush.bf16.msra.mxu0 %v2068
    %2786 = vmatpush.bf16.msra.mxu0 %v2067
    %2787 = vmatpush.bf16.msra.mxu0 %v2066
    %2788 = vmatpush.bf16.msra.mxu0 %v2065
    %2789 = vmatmul.bf16.gmra.mxu0 %v643
    %v2790 = vpop.f32.mrf.mxu0
    %v2791 = vadd.f32 %v2778, %v2790
    %v2792 = vpop.f32.mrf.mxu0
    %2793 = vdwg.mxu0
    %2794 = vmatpush.bf16.msra.mxu0 %v2080
    %2795 = vmatpush.bf16.msra.mxu0 %v2079
    %2796 = vmatpush.bf16.msra.mxu0 %v2078
    %2797 = vmatpush.bf16.msra.mxu0 %v2077
    %2798 = vmatpush.bf16.msra.mxu0 %v2076
    %2799 = vmatpush.bf16.msra.mxu0 %v2075
    %2800 = vmatpush.bf16.msra.mxu0 %v2074
    %2801 = vmatpush.bf16.msra.mxu0 %v2073
    %2802 = vmatmul.bf16.gmra.mxu0 %v644
    %v2803 = vpop.f32.mrf.mxu0
    %v2804 = vadd.f32 %v2791, %v2803
    %v2805 = vpop.f32.mrf.mxu0
    %2806 = vdwg.mxu0
    %2807 = vmatpush.bf16.msra.mxu0 %v2088
    %2808 = vmatpush.bf16.msra.mxu0 %v2087
    %2809 = vmatpush.bf16.msra.mxu0 %v2086
    %2810 = vmatpush.bf16.msra.mxu0 %v2085
    %2811 = vmatpush.bf16.msra.mxu0 %v2084
    %2812 = vmatpush.bf16.msra.mxu0 %v2083
    %2813 = vmatpush.bf16.msra.mxu0 %v2082
    %2814 = vmatpush.bf16.msra.mxu0 %v2081
    %2815 = vmatmul.bf16.gmra.mxu0 %v645
    %v2816 = vpop.f32.mrf.mxu0
    %v2817 = vadd.f32 %v2804, %v2816
    %v2818 = vpop.f32.mrf.mxu0
    %2819 = vdwg.mxu0
    %2820 = vmatpush.bf16.msra.mxu0 %v2096
    %2821 = vmatpush.bf16.msra.mxu0 %v2095
    %2822 = vmatpush.bf16.msra.mxu0 %v2094
    %2823 = vmatpush.bf16.msra.mxu0 %v2093
    %2824 = vmatpush.bf16.msra.mxu0 %v2092
    %2825 = vmatpush.bf16.msra.mxu0 %v2091
    %2826 = vmatpush.bf16.msra.mxu0 %v2090
    %2827 = vmatpush.bf16.msra.mxu0 %v2089
    %2828 = vmatmul.bf16.gmra.mxu0 %v646
    %v2829 = vpop.f32.mrf.mxu0
    %v2830 = vadd.f32 %v2817, %v2829
    %v2831 = vpop.f32.mrf.mxu0
    %2832 = vdwg.mxu0
    %2833 = vmatpush.bf16.msra.mxu0 %v2104
    %2834 = vmatpush.bf16.msra.mxu0 %v2103
    %2835 = vmatpush.bf16.msra.mxu0 %v2102
    %2836 = vmatpush.bf16.msra.mxu0 %v2101
    %2837 = vmatpush.bf16.msra.mxu0 %v2100
    %2838 = vmatpush.bf16.msra.mxu0 %v2099
    %2839 = vmatpush.bf16.msra.mxu0 %v2098
    %2840 = vmatpush.bf16.msra.mxu0 %v2097
    %2841 = vmatmul.bf16.gmra.mxu0 %v649
    %v2842 = vpop.f32.mrf.mxu0
    %v2843 = vadd.f32 %v2830, %v2842
    %v2844 = vpop.f32.mrf.mxu0
    %2845 = vdwg.mxu0
    %2846 = vmatpush.bf16.msra.mxu0 %v2112
    %2847 = vmatpush.bf16.msra.mxu0 %v2111
    %2848 = vmatpush.bf16.msra.mxu0 %v2110
    %2849 = vmatpush.bf16.msra.mxu0 %v2109
    %2850 = vmatpush.bf16.msra.mxu0 %v2108
    %2851 = vmatpush.bf16.msra.mxu0 %v2107
    %2852 = vmatpush.bf16.msra.mxu0 %v2106
    %2853 = vmatpush.bf16.msra.mxu0 %v2105
    %2854 = vmatmul.bf16.gmra.mxu0 %v650
    %v2855 = vpop.f32.mrf.mxu0
    %v2856 = vadd.f32 %v2843, %v2855
    %v2857 = vpop.f32.mrf.mxu0
    %2858 = vdwg.mxu0
    %2859 = vmatpush.bf16.msra.mxu0 %v2120
    %2860 = vmatpush.bf16.msra.mxu0 %v2119
    %2861 = vmatpush.bf16.msra.mxu0 %v2118
    %2862 = vmatpush.bf16.msra.mxu0 %v2117
    %2863 = vmatpush.bf16.msra.mxu0 %v2116
    %2864 = vmatpush.bf16.msra.mxu0 %v2115
    %2865 = vmatpush.bf16.msra.mxu0 %v2114
    %2866 = vmatpush.bf16.msra.mxu0 %v2113
    %2867 = vmatmul.bf16.gmra.mxu0 %v651
    %v2868 = vpop.f32.mrf.mxu0
    %v2869 = vadd.f32 %v2856, %v2868
    %v2870 = vpop.f32.mrf.mxu0
    %2871 = vdwg.mxu0
    %2872 = vmatpush.bf16.msra.mxu0 %v2128
    %2873 = vmatpush.bf16.msra.mxu0 %v2127
    %2874 = vmatpush.bf16.msra.mxu0 %v2126
    %2875 = vmatpush.bf16.msra.mxu0 %v2125
    %2876 = vmatpush.bf16.msra.mxu0 %v2124
    %2877 = vmatpush.bf16.msra.mxu0 %v2123
    %2878 = vmatpush.bf16.msra.mxu0 %v2122
    %2879 = vmatpush.bf16.msra.mxu0 %v2121
    %2880 = vmatmul.bf16.gmra.mxu0 %v652
    %v2881 = vpop.f32.mrf.mxu0
    %v2882 = vadd.f32 %v2869, %v2881
    %v2883 = vpop.f32.mrf.mxu0
    %2884 = vdwg.mxu0
    %v2885 = vmax.f32 %v2882, 0.0
    %v2886 = vpack.c.bf16 %v2885, %v2885
    %v2887 = vld [vmem:[%s3] sm:$0xf]
    %v2888 = vld [vmem:[%s3 + $0x4] sm:$0xf]
    %v2889 = vld [vmem:[%s3 + $0x8] sm:$0xf]
    %v2890 = vld [vmem:[%s3 + $0xc] sm:$0xf]
    %v2891 = vld [vmem:[%s3 + $0x10] sm:$0xf]
    %v2892 = vld [vmem:[%s3 + $0x14] sm:$0xf]
    %v2893 = vld [vmem:[%s3 + $0x18] sm:$0xf]
    %v2894 = vld [vmem:[%s3 + $0x1c] sm:$0xf]
    %v2895 = vld [vmem:[%s4] sm:$0x1]
    %v2897 = vperm.slane %v2895, 0
    %v2907 = vunpack.c.l.b16 %v2887
    %v2908 = vunpack.c.l.b16 %v2888
    %v2909 = vunpack.c.l.b16 %v2889
    %v2910 = vunpack.c.l.b16 %v2890
    %v2911 = vunpack.c.l.b16 %v2891
    %v2912 = vunpack.c.l.b16 %v2892
    %v2913 = vunpack.c.l.b16 %v2893
    %v2914 = vunpack.c.l.b16 %v2894
    %v2915 = vpack.c.b16 %v2908, %v2907
    %v2916 = vpack.c.b16 %v2910, %v2909
    %v2917 = vpack.c.b16 %v2912, %v2911
    %v2918 = vpack.c.b16 %v2914, %v2913
    %vm2923 = vcmask 523264
    %v2925 = vsel %vm2923, %v2886, 0
    %2927 = vmatpush.bf16.msra.mxu0 0
    %2928 = vmatpush.bf16.msra.mxu0 0
    %2929 = vmatpush.bf16.msra.mxu0 0
    %2930 = vmatpush.bf16.msra.mxu0 0
    %2931 = vmatpush.bf16.msra.mxu0 %v2918
    %2932 = vmatpush.bf16.msra.mxu0 %v2917
    %2933 = vmatpush.bf16.msra.mxu0 %v2916
    %2934 = vmatpush.bf16.msra.mxu0 %v2915
    %2935 = vmatmul.bf16.gmra.mxu0 %v2925
    %v2936 = vpop.f32.mrf.mxu0
    %v2937 = vadd.f32 %v2897, %v2936
    %v2938 = vpop.f32.mrf.mxu0
    %2939 = vdwg.mxu0
    %vm2940 = vcmask 74752
    %2941 = vst.msk [vmem:[#allocation2] sm:$0x3] %vm2940, %v2937
    // Predicated region
    $region22: #{mnist_net_forward.5} parent=1 // pred_check
      _
    $region23: #{mnist_net_forward.5} parent=1 // pred_check_branch
      %2943 = sbr.rel (0) target = $region25
    $region24: #{mnist_net_forward.5} parent=1 // pred_region
      %2945 = vsyncadd [#allocation3], 0
      %s2947 = sshll.u32 [#allocation2], 4
      %s2948 = int_to_ptr.vmem [resolvable:$true] %s2947
      %s2949 = sshll.u32 %s5, 4
      %s2950 = int_to_ptr.hbm [resolvable:$true] %s2949
      %2952 = dma.vmem_to_hbm [thread:$0]  %s2948, 32, %s2950, [#allocation3]
    $region25: #{mnist_net_forward.5} parent=1 // pred_fallthru
      _
    // Predicated region
    $region26: #{mnist_net_forward.5} parent=1 // pred_check
      _
    $region27: #{mnist_net_forward.5} parent=1 // pred_check_branch
      %2954 = sbr.rel (0) target = $region29
    $region28: #{mnist_net_forward.5} parent=1 // pred_region
      %2956 = dma.done [#allocation3], 32
    $region29: #{mnist_net_forward.5} parent=1 // pred_fallthru
      _
    %2957 = vsyncpa [#allocation3], 1

</llo_original>
